<compile_context>
chip_gen: v7x
topology: tpu7x:2x2x1
jax: 0.10.0
libtpu: 0.0.40
codegen_flags: <defaults>
</compile_context>

<pallas_src>
import numpy as np
import jax
import jax.numpy as jnp
from jax import lax
from jax.experimental import pallas as pl
from jax.experimental.pallas import tpu as pltpu


def _upsample_kernel(xm_ref, xh_ref, w_ref, b_ref, o_ref, cs_ref):
    # xm_ref: (1, TH, W+2, C)    padded-input rows [t*TH, t*TH+TH)          (compute dtype)
    # xh_ref: (1, 1, 2, W+2, C)  halo rows t*TH+TH, t*TH+TH+1 (pre-gathered in the wrapper)
    # w_ref : (2, 2, 2, 2, C, C) w_ref[r, s, dh, dw, ci, co] = W[ci, co, 3-r-2dh, 3-s-2dw]
    # b_ref : (1, 2C)            bias duplicated for both s parities, f32
    # o_ref : (1, TH, 2, W, 2C)  out[b, 2*(t*TH+i)+r, 2*j+s, c] = o_ref[0, i, r, j, s*C+c]
    # cs_ref: (3, (TH+2)*W, C)   column-shifted, row-flattened copies of the padded slab
    _, th, wp, c = xm_ref.shape
    wd = wp - 2

    # Hoisted sublane-shift relayout: build the 3 column-shifted copies of the (TH+2)-row
    # slab once per grid step.  Every tap patch below is a contiguous row-range slice of
    # these (no per-tap relayouts, no full-tile stitch copy).
    for do in range(3):
        cs_ref[do, :th * wd, :] = xm_ref[0, :, do:do + wd, :].reshape(th * wd, c)
        cs_ref[do, th * wd:, :] = xh_ref[0, 0, :, do:do + wd, :].reshape(2 * wd, c)

    bias = b_ref[...]                                            # (1, 2C) f32

    for r in range(2):
        acc = []
        for s in range(2):
            a = jnp.zeros((th * wd, c), jnp.float32)
            for dh in range(2):
                for dw in range(2):
                    start = (r + dh) * wd
                    patch = cs_ref[s + dw, start:start + th * wd, :]     # (TH*W, C)
                    a = a + jnp.dot(patch, w_ref[r, s, dh, dw],
                                    preferred_element_type=jnp.float32)
            acc.append(a)
        # Lane-dense store: both s parities fused into one 2C-wide write per row parity r.
        y = jnp.concatenate(acc, axis=-1) + bias                 # (TH*W, 2C) f32
        o_ref[:, :, r:r + 1, :, :] = y.astype(o_ref.dtype).reshape(1, th, 1, wd, 2 * c)


def _vmem_capacity_bytes():
    try:
        return int(pltpu.get_tpu_info().vmem_capacity_bytes)
    except Exception:
        return 64 * 1024 * 1024       # conservative (v7x-sized) fallback


def _pick_tile_h(B, H, W, C, budget_bytes, in_itemsize=2, out_itemsize=2):
    """Largest divisor of H whose (honest) per-grid-step VMEM footprint fits the budget.

    Prefers >= 2 H-tiles when B == 1 so both v7x TensorCores get work.
    """
    min_tiles = 2 if (B == 1 and H >= 2) else 1
    divisors = [d for d in range(H, 0, -1) if H % d == 0]
    candidates = [d for d in divisors if H // d >= min_tiles] or divisors
    for th in candidates:
        est = (2 * th * (W + 2) * C * in_itemsize          # main input block, double-buffered
               + 2 * 2 * (W + 2) * C * in_itemsize         # halo block, double-buffered
               + 2 * 16 * C * C * in_itemsize              # weights, double-buffered
               + 2 * 2 * C * 4                             # bias
               + 2 * th * 2 * W * 2 * C * out_itemsize     # output block, double-buffered
               + 3 * (th + 2) * W * C * in_itemsize        # column-shifted slab scratch
               + 6 * th * W * C * 4)                       # f32 accumulators + patch temporaries
        if est <= budget_bytes:
            return th
    return candidates[-1]


def upsample_conv_transpose(x_nchw, weight, bias, *, tile_h=None,
                            compute_dtype=jnp.bfloat16,
                            kernel_out_dtype=jnp.bfloat16,
                            out_dtype=jnp.float32):
    """ConvTranspose2d(C, C, kernel_size=4, stride=2, padding=1) forward.

    x_nchw : (B, C, H, W) float32
    weight : (C_in, C_out, 4, 4)  (PyTorch ConvTranspose2d layout)
    bias   : (C_out,)
    returns: (B, C, 2H, 2W) in `out_dtype` (kernel emits `kernel_out_dtype`, default bf16).
    """
    B, C, H, W = x_nchw.shape

    # Generation-aware VMEM budgeting (128 MiB on v5e/v6e, 64 MiB on v7x).
    vmem_cap = _vmem_capacity_bytes()
    vmem_limit = min((vmem_cap * 3) // 4, 100 * 1024 * 1024)     # ~96-100 MiB / ~48 MiB
    tile_budget = (vmem_limit * 3) // 4                          # headroom for compiler scratch

    # NCHW -> NHWC + zero pad + dtype cast; XLA fuses these into a single copy.
    x = jnp.transpose(x_nchw, (0, 2, 3, 1))
    x_pad = jnp.pad(x, ((0, 0), (1, 1), (1, 1), (0, 0))).astype(compute_dtype)   # (B, H+2, W+2, C)

    if tile_h is None:
        tile_h = _pick_tile_h(B, H, W, C, tile_budget,
                              in_itemsize=np.dtype(compute_dtype).itemsize,
                              out_itemsize=np.dtype(kernel_out_dtype).itemsize)
    assert H % tile_h == 0, f"tile_h={tile_h} must divide H={H}"
    th = tile_h
    n_t = H // th

    # Tiny per-tile halo array (rows (t+1)*th, (t+1)*th + 1 of the padded input), so the
    # kernel gets exactly one small halo DMA per step and no fragile row indexing.
    rows = ((jnp.arange(n_t) + 1) * th)[:, None] + jnp.arange(2)[None, :]        # (n_t, 2)
    x_halo = jnp.take(x_pad, rows.reshape(-1), axis=1).reshape(B, n_t, 2, W + 2, C)

    # Tap weights: w6[r, s, dh, dw, ci, co] = weight[ci, co, 3-r-2dh, 3-s-2dw]
    w_perm = jnp.transpose(weight, (2, 3, 0, 1))                                 # (kh, kw, ci, co)
    w6 = jnp.stack([
        jnp.stack([
            jnp.stack([
                jnp.stack([w_perm[3 - r - 2 * dh, 3 - s - 2 * dw]
                           for dw in range(2)], axis=0)
                for dh in range(2)], axis=0)
            for s in range(2)], axis=0)
        for r in range(2)], axis=0).astype(compute_dtype)                        # (2,2,2,2,C,C)

    bias2 = jnp.concatenate([bias, bias]).reshape(1, 2 * C).astype(jnp.float32)

    flops = 2 * B * (2 * H) * (2 * W) * C * (4 * C)              # 4 taps * C MACs per output elem
    bytes_accessed = (x_pad.size * x_pad.dtype.itemsize
                      + x_halo.size * x_halo.dtype.itemsize
                      + w6.size * w6.dtype.itemsize
                      + bias2.size * 4
                      + B * H * 2 * W * 2 * C * np.dtype(kernel_out_dtype).itemsize)

    out5 = pl.pallas_call(
        _upsample_kernel,
        grid=(B, n_t),
        in_specs=[
            pl.BlockSpec((1, th, W + 2, C), lambda b, t: (b, t, 0, 0)),
            pl.BlockSpec((1, 1, 2, W + 2, C), lambda b, t: (b, t, 0, 0, 0)),
            pl.BlockSpec((2, 2, 2, 2, C, C), lambda b, t: (0, 0, 0, 0, 0, 0)),
            pl.BlockSpec((1, 2 * C), lambda b, t: (0, 0)),
        ],
        out_specs=pl.BlockSpec((1, th, 2, W, 2 * C), lambda b, t: (b, t, 0, 0, 0)),
        out_shape=jax.ShapeDtypeStruct((B, H, 2, W, 2 * C), kernel_out_dtype),
        scratch_shapes=[pltpu.VMEM((3, (th + 2) * W, C), compute_dtype)],
        compiler_params=pltpu.CompilerParams(
            dimension_semantics=("parallel", "parallel"),
            vmem_limit_bytes=int(vmem_limit)),
        cost_estimate=pl.CostEstimate(flops=flops, transcendentals=0,
                                      bytes_accessed=int(bytes_accessed)),
    )(x_pad, x_halo, w6, bias2)

    # (B, H, 2, W, 2C) -> (B, 2H, 2W, C) is a pure row-major reshape (no transpose);
    # the f32 upcast (if requested) fuses into the final NHWC->NCHW transpose.
    y = out5.reshape(B, 2 * H, 2 * W, C)
    return jnp.transpose(y, (0, 3, 1, 2)).astype(out_dtype)


def _ref_conv_transpose(x, weight, bias, compute_dtype=jnp.float32):
    # Pure-JAX reference: transposed conv == lhs-dilated conv with the flipped kernel.
    w_t = jnp.transpose(weight, (1, 0, 2, 3))[:, :, ::-1, ::-1].astype(compute_dtype)
    y = lax.conv_general_dilated(
        x.astype(compute_dtype), w_t, window_strides=(1, 1), padding=((2, 2), (2, 2)),
        lhs_dilation=(2, 2), dimension_numbers=("NCHW", "OIHW", "NCHW"),
        preferred_element_type=jnp.float32, precision=lax.Precision.HIGHEST)
    return y + bias[None, :, None, None].astype(jnp.float32)


if __name__ == "__main__":
    B, C, H, W = 2, 4, 16, 16
    key = jax.random.PRNGKey(0)
    kx, kw, kb = jax.random.split(key, 3)

    x = jax.random.normal(kx, (B, C, H, W), jnp.float32)
    # nn.ConvTranspose2d(C, C, 4): weight (in, out, kH, kW), uniform(-1/sqrt(fan), +bound)
    fan = C * 4 * 4
    bound = 1.0 / (fan ** 0.5)
    weight = jax.random.uniform(kw, (C, C, 4, 4), jnp.float32, -bound, bound)
    bias = jax.random.uniform(kb, (C,), jnp.float32, -bound, bound)

    # Multi-tile path (2 H-tiles -> exercises halo handling across tile boundaries) ...
    out_tiled = jax.block_until_ready(upsample_conv_transpose(x, weight, bias, tile_h=8))
    assert out_tiled.shape == (B, C, 2 * H, 2 * W), out_tiled.shape
    # ... default auto-tiled path ...
    out_auto = jax.block_until_ready(upsample_conv_transpose(x, weight, bias))
    # ... and the B==1 path (auto-tiler prefers >=2 H-tiles for the two v7x TensorCores).
    out_b1 = jax.block_until_ready(upsample_conv_transpose(x[:1], weight, bias))

    ref_bf16 = _ref_conv_transpose(x, weight, bias, compute_dtype=jnp.bfloat16)
    ref_f32 = _ref_conv_transpose(x, weight, bias, compute_dtype=jnp.float32)

    checks = ((out_tiled, ref_bf16, ref_f32),
              (out_auto, ref_bf16, ref_f32),
              (out_b1, ref_bf16[:1], ref_f32[:1]))
    for o, rbf, rf in checks:
        err = float(jnp.max(jnp.abs(o - rbf)))
        assert jnp.allclose(o, rbf, atol=3e-2, rtol=3e-2), f"max abs err vs bf16 ref {err}"
        err32 = float(jnp.max(jnp.abs(o - rf)))
        assert jnp.allclose(o, rf, atol=1e-1, rtol=1e-1), f"max abs err vs f32 ref {err32}"

    print("KERNEL_OK")
</pallas_src>

<mosaic_0001>
module attributes {stable_mosaic.version = 11 : i64} {
  func.func @_upsample_kernel(%arg0: i32, %arg1: i32, %arg2: memref<1x8x18x4xbf16, #tpu.memory_space<vmem>>, %arg3: memref<1x1x2x18x4xbf16, #tpu.memory_space<vmem>>, %arg4: memref<2x2x2x2x4x4xbf16, #tpu.memory_space<vmem>>, %arg5: memref<1x8xf32, #tpu.memory_space<vmem>>, %arg6: memref<1x8x2x16x8xbf16, #tpu.memory_space<vmem>>, %arg7: memref<3x160x4xbf16, #tpu.memory_space<vmem>>) attributes {dimension_semantics = [#tpu.dimension_semantics<parallel>, #tpu.dimension_semantics<parallel>], iteration_bounds = array<i64: 2, 2>, scalar_prefetch = 0 : i64, scratch_operands = 1 : i64, tpu.core_type = #tpu.core_type<tc>, window_params = [{transform_indices = @transform_0, window_bounds = array<i64: 1, 8, 18, 4>}, {transform_indices = @transform_1, window_bounds = array<i64: 1, 1, 2, 18, 4>}, {pipeline_mode = #tpu.pipeline_mode<synchronous>, transform_indices = @transform_2, window_bounds = array<i64: 2, 2, 2, 2, 4, 4>}, {pipeline_mode = #tpu.pipeline_mode<synchronous>, transform_indices = @transform_3, window_bounds = array<i64: 1, 8>}, {transform_indices = @transform_4, window_bounds = array<i64: 1, 8, 2, 16, 8>}]} {
    %c0 = arith.constant 0 : index
    %c0_0 = arith.constant 0 : index
    %c0_1 = arith.constant 0 : index
    %c0_2 = arith.constant 0 : index
    %0 = vector.load %arg2[%c0, %c0_0, %c0_1, %c0_2] : memref<1x8x18x4xbf16, #tpu.memory_space<vmem>>, vector<1x8x16x4xbf16>
    %1 = vector.shape_cast %0 : vector<1x8x16x4xbf16> to vector<8x16x4xbf16>
    %2 = vector.shape_cast %1 : vector<8x16x4xbf16> to vector<128x4xbf16>
    %c0_3 = arith.constant 0 : index
    %c0_4 = arith.constant 0 : index
    %c0_5 = arith.constant 0 : index
    %3 = vector.load %arg7[%c0_3, %c0_4, %c0_5] : memref<3x160x4xbf16, #tpu.memory_space<vmem>>, vector<1x128x4xbf16>
    %4 = vector.shape_cast %3 : vector<1x128x4xbf16> to vector<128x4xbf16>
    %5 = vector.shape_cast %2 : vector<128x4xbf16> to vector<1x128x4xbf16>
    tpu.vector_store %arg7[%c0_3, %c0_4, %c0_5], %5 {strides = array<i32>} : memref<3x160x4xbf16, #tpu.memory_space<vmem>>, vector<1x128x4xbf16>,
    %c0_6 = arith.constant 0 : index
    %c0_7 = arith.constant 0 : index
    %c0_8 = arith.constant 0 : index
    %c0_9 = arith.constant 0 : index
    %c0_10 = arith.constant 0 : index
    %6 = vector.load %arg3[%c0_6, %c0_7, %c0_8, %c0_9, %c0_10] : memref<1x1x2x18x4xbf16, #tpu.memory_space<vmem>>, vector<1x1x2x16x4xbf16>
    %7 = vector.shape_cast %6 : vector<1x1x2x16x4xbf16> to vector<2x16x4xbf16>
    %8 = vector.shape_cast %7 : vector<2x16x4xbf16> to vector<32x4xbf16>
    %c0_11 = arith.constant 0 : index
    %c128 = arith.constant 128 : index
    %c0_12 = arith.constant 0 : index
    %9 = vector.load %arg7[%c0_11, %c128, %c0_12] : memref<3x160x4xbf16, #tpu.memory_space<vmem>>, vector<1x32x4xbf16>
    %10 = vector.shape_cast %9 : vector<1x32x4xbf16> to vector<32x4xbf16>
    %11 = vector.shape_cast %8 : vector<32x4xbf16> to vector<1x32x4xbf16>
    tpu.vector_store %arg7[%c0_11, %c128, %c0_12], %11 {strides = array<i32>} : memref<3x160x4xbf16, #tpu.memory_space<vmem>>, vector<1x32x4xbf16>,
    %c0_13 = arith.constant 0 : index
    %c0_14 = arith.constant 0 : index
    %c1 = arith.constant 1 : index
    %c0_15 = arith.constant 0 : index
    %12 = vector.load %arg2[%c0_13, %c0_14, %c1, %c0_15] : memref<1x8x18x4xbf16, #tpu.memory_space<vmem>>, vector<1x8x16x4xbf16>
    %13 = vector.shape_cast %12 : vector<1x8x16x4xbf16> to vector<8x16x4xbf16>
    %14 = vector.shape_cast %13 : vector<8x16x4xbf16> to vector<128x4xbf16>
    %c1_16 = arith.constant 1 : index
    %c0_17 = arith.constant 0 : index
    %c0_18 = arith.constant 0 : index
    %15 = vector.load %arg7[%c1_16, %c0_17, %c0_18] : memref<3x160x4xbf16, #tpu.memory_space<vmem>>, vector<1x128x4xbf16>
    %16 = vector.shape_cast %15 : vector<1x128x4xbf16> to vector<128x4xbf16>
    %17 = vector.shape_cast %14 : vector<128x4xbf16> to vector<1x128x4xbf16>
    tpu.vector_store %arg7[%c1_16, %c0_17, %c0_18], %17 {strides = array<i32>} : memref<3x160x4xbf16, #tpu.memory_space<vmem>>, vector<1x128x4xbf16>,
    %c0_19 = arith.constant 0 : index
    %c0_20 = arith.constant 0 : index
    %c0_21 = arith.constant 0 : index
    %c1_22 = arith.constant 1 : index
    %c0_23 = arith.constant 0 : index
    %18 = vector.load %arg3[%c0_19, %c0_20, %c0_21, %c1_22, %c0_23] : memref<1x1x2x18x4xbf16, #tpu.memory_space<vmem>>, vector<1x1x2x16x4xbf16>
    %19 = vector.shape_cast %18 : vector<1x1x2x16x4xbf16> to vector<2x16x4xbf16>
    %20 = vector.shape_cast %19 : vector<2x16x4xbf16> to vector<32x4xbf16>
    %c1_24 = arith.constant 1 : index
    %c128_25 = arith.constant 128 : index
    %c0_26 = arith.constant 0 : index
    %21 = vector.load %arg7[%c1_24, %c128_25, %c0_26] : memref<3x160x4xbf16, #tpu.memory_space<vmem>>, vector<1x32x4xbf16>
    %22 = vector.shape_cast %21 : vector<1x32x4xbf16> to vector<32x4xbf16>
    %23 = vector.shape_cast %20 : vector<32x4xbf16> to vector<1x32x4xbf16>
    tpu.vector_store %arg7[%c1_24, %c128_25, %c0_26], %23 {strides = array<i32>} : memref<3x160x4xbf16, #tpu.memory_space<vmem>>, vector<1x32x4xbf16>,
    %c0_27 = arith.constant 0 : index
    %c0_28 = arith.constant 0 : index
    %c2 = arith.constant 2 : index
    %c0_29 = arith.constant 0 : index
    %24 = vector.load %arg2[%c0_27, %c0_28, %c2, %c0_29] : memref<1x8x18x4xbf16, #tpu.memory_space<vmem>>, vector<1x8x16x4xbf16>
    %25 = vector.shape_cast %24 : vector<1x8x16x4xbf16> to vector<8x16x4xbf16>
    %26 = vector.shape_cast %25 : vector<8x16x4xbf16> to vector<128x4xbf16>
    %c2_30 = arith.constant 2 : index
    %c0_31 = arith.constant 0 : index
    %c0_32 = arith.constant 0 : index
    %27 = vector.load %arg7[%c2_30, %c0_31, %c0_32] : memref<3x160x4xbf16, #tpu.memory_space<vmem>>, vector<1x128x4xbf16>
    %28 = vector.shape_cast %27 : vector<1x128x4xbf16> to vector<128x4xbf16>
    %29 = vector.shape_cast %26 : vector<128x4xbf16> to vector<1x128x4xbf16>
    tpu.vector_store %arg7[%c2_30, %c0_31, %c0_32], %29 {strides = array<i32>} : memref<3x160x4xbf16, #tpu.memory_space<vmem>>, vector<1x128x4xbf16>,
    %c0_33 = arith.constant 0 : index
    %c0_34 = arith.constant 0 : index
    %c0_35 = arith.constant 0 : index
    %c2_36 = arith.constant 2 : index
    %c0_37 = arith.constant 0 : index
    %30 = vector.load %arg3[%c0_33, %c0_34, %c0_35, %c2_36, %c0_37] : memref<1x1x2x18x4xbf16, #tpu.memory_space<vmem>>, vector<1x1x2x16x4xbf16>
    %31 = vector.shape_cast %30 : vector<1x1x2x16x4xbf16> to vector<2x16x4xbf16>
    %32 = vector.shape_cast %31 : vector<2x16x4xbf16> to vector<32x4xbf16>
    %c2_38 = arith.constant 2 : index
    %c128_39 = arith.constant 128 : index
    %c0_40 = arith.constant 0 : index
    %33 = vector.load %arg7[%c2_38, %c128_39, %c0_40] : memref<3x160x4xbf16, #tpu.memory_space<vmem>>, vector<1x32x4xbf16>
    %34 = vector.shape_cast %33 : vector<1x32x4xbf16> to vector<32x4xbf16>
    %35 = vector.shape_cast %32 : vector<32x4xbf16> to vector<1x32x4xbf16>
    tpu.vector_store %arg7[%c2_38, %c128_39, %c0_40], %35 {strides = array<i32>} : memref<3x160x4xbf16, #tpu.memory_space<vmem>>, vector<1x32x4xbf16>,
    %c0_41 = arith.constant 0 : index
    %c0_42 = arith.constant 0 : index
    %36 = vector.load %arg5[%c0_41, %c0_42] : memref<1x8xf32, #tpu.memory_space<vmem>>, vector<1x8xf32>
    %cst = arith.constant 0.000000e+00 : f32
    %37 = vector.broadcast %cst : f32 to vector<128x4xf32>
    %c0_43 = arith.constant 0 : index
    %c0_44 = arith.constant 0 : index
    %c0_45 = arith.constant 0 : index
    %38 = vector.load %arg7[%c0_43, %c0_44, %c0_45] : memref<3x160x4xbf16, #tpu.memory_space<vmem>>, vector<1x128x4xbf16>
    %39 = vector.shape_cast %38 : vector<1x128x4xbf16> to vector<128x4xbf16>
    %c0_46 = arith.constant 0 : index
    %c0_47 = arith.constant 0 : index
    %c0_48 = arith.constant 0 : index
    %c0_49 = arith.constant 0 : index
    %c0_50 = arith.constant 0 : index
    %c0_51 = arith.constant 0 : index
    %40 = vector.load %arg4[%c0_46, %c0_47, %c0_48, %c0_49, %c0_50, %c0_51] : memref<2x2x2x2x4x4xbf16, #tpu.memory_space<vmem>>, vector<1x1x1x1x4x4xbf16>
    %41 = vector.shape_cast %40 : vector<1x1x1x1x4x4xbf16> to vector<4x4xbf16>
    %cst_52 = arith.constant dense<0.000000e+00> : vector<128x4xf32>
    %42 = tpu.matmul %39, %41, %cst_52 {dimension_numbers = #tpu.dot_dimension_numbers<[1], [0], [0], [1], [0, 0, 1, 1], [], []>} : vector<128x4xbf16>, vector<4x4xbf16>, vector<128x4xf32> -> vector<128x4xf32>
    %43 = arith.addf %37, %42 : vector<128x4xf32>
    %c1_53 = arith.constant 1 : index
    %c0_54 = arith.constant 0 : index
    %c0_55 = arith.constant 0 : index
    %44 = vector.load %arg7[%c1_53, %c0_54, %c0_55] : memref<3x160x4xbf16, #tpu.memory_space<vmem>>, vector<1x128x4xbf16>
    %45 = vector.shape_cast %44 : vector<1x128x4xbf16> to vector<128x4xbf16>
    %c0_56 = arith.constant 0 : index
    %c0_57 = arith.constant 0 : index
    %c0_58 = arith.constant 0 : index
    %c1_59 = arith.constant 1 : index
    %c0_60 = arith.constant 0 : index
    %c0_61 = arith.constant 0 : index
    %46 = vector.load %arg4[%c0_56, %c0_57, %c0_58, %c1_59, %c0_60, %c0_61] : memref<2x2x2x2x4x4xbf16, #tpu.memory_space<vmem>>, vector<1x1x1x1x4x4xbf16>
    %47 = vector.shape_cast %46 : vector<1x1x1x1x4x4xbf16> to vector<4x4xbf16>
    %cst_62 = arith.constant dense<0.000000e+00> : vector<128x4xf32>
    %48 = tpu.matmul %45, %47, %cst_62 {dimension_numbers = #tpu.dot_dimension_numbers<[1], [0], [0], [1], [0, 0, 1, 1], [], []>} : vector<128x4xbf16>, vector<4x4xbf16>, vector<128x4xf32> -> vector<128x4xf32>
    %49 = arith.addf %43, %48 : vector<128x4xf32>
    %c0_63 = arith.constant 0 : index
    %c16 = arith.constant 16 : index
    %c0_64 = arith.constant 0 : index
    %50 = vector.load %arg7[%c0_63, %c16, %c0_64] : memref<3x160x4xbf16, #tpu.memory_space<vmem>>, vector<1x128x4xbf16>
    %51 = vector.shape_cast %50 : vector<1x128x4xbf16> to vector<128x4xbf16>
    %c0_65 = arith.constant 0 : index
    %c0_66 = arith.constant 0 : index
    %c1_67 = arith.constant 1 : index
    %c0_68 = arith.constant 0 : index
    %c0_69 = arith.constant 0 : index
    %c0_70 = arith.constant 0 : index
    %52 = vector.load %arg4[%c0_65, %c0_66, %c1_67, %c0_68, %c0_69, %c0_70] : memref<2x2x2x2x4x4xbf16, #tpu.memory_space<vmem>>, vector<1x1x1x1x4x4xbf16>
    %53 = vector.shape_cast %52 : vector<1x1x1x1x4x4xbf16> to vector<4x4xbf16>
    %cst_71 = arith.constant dense<0.000000e+00> : vector<128x4xf32>
    %54 = tpu.matmul %51, %53, %cst_71 {dimension_numbers = #tpu.dot_dimension_numbers<[1], [0], [0], [1], [0, 0, 1, 1], [], []>} : vector<128x4xbf16>, vector<4x4xbf16>, vector<128x4xf32> -> vector<128x4xf32>
    %55 = arith.addf %49, %54 : vector<128x4xf32>
    %c1_72 = arith.constant 1 : index
    %c16_73 = arith.constant 16 : index
    %c0_74 = arith.constant 0 : index
    %56 = vector.load %arg7[%c1_72, %c16_73, %c0_74] : memref<3x160x4xbf16, #tpu.memory_space<vmem>>, vector<1x128x4xbf16>
    %57 = vector.shape_cast %56 : vector<1x128x4xbf16> to vector<128x4xbf16>
    %c0_75 = arith.constant 0 : index
    %c0_76 = arith.constant 0 : index
    %c1_77 = arith.constant 1 : index
    %c1_78 = arith.constant 1 : index
    %c0_79 = arith.constant 0 : index
    %c0_80 = arith.constant 0 : index
    %58 = vector.load %arg4[%c0_75, %c0_76, %c1_77, %c1_78, %c0_79, %c0_80] : memref<2x2x2x2x4x4xbf16, #tpu.memory_space<vmem>>, vector<1x1x1x1x4x4xbf16>
    %59 = vector.shape_cast %58 : vector<1x1x1x1x4x4xbf16> to vector<4x4xbf16>
    %cst_81 = arith.constant dense<0.000000e+00> : vector<128x4xf32>
    %60 = tpu.matmul %57, %59, %cst_81 {dimension_numbers = #tpu.dot_dimension_numbers<[1], [0], [0], [1], [0, 0, 1, 1], [], []>} : vector<128x4xbf16>, vector<4x4xbf16>, vector<128x4xf32> -> vector<128x4xf32>
    %61 = arith.addf %55, %60 : vector<128x4xf32>
    %cst_82 = arith.constant 0.000000e+00 : f32
    %62 = vector.broadcast %cst_82 : f32 to vector<128x4xf32>
    %c1_83 = arith.constant 1 : index
    %c0_84 = arith.constant 0 : index
    %c0_85 = arith.constant 0 : index
    %63 = vector.load %arg7[%c1_83, %c0_84, %c0_85] : memref<3x160x4xbf16, #tpu.memory_space<vmem>>, vector<1x128x4xbf16>
    %64 = vector.shape_cast %63 : vector<1x128x4xbf16> to vector<128x4xbf16>
    %c0_86 = arith.constant 0 : index
    %c1_87 = arith.constant 1 : index
    %c0_88 = arith.constant 0 : index
    %c0_89 = arith.constant 0 : index
    %c0_90 = arith.constant 0 : index
    %c0_91 = arith.constant 0 : index
    %65 = vector.load %arg4[%c0_86, %c1_87, %c0_88, %c0_89, %c0_90, %c0_91] : memref<2x2x2x2x4x4xbf16, #tpu.memory_space<vmem>>, vector<1x1x1x1x4x4xbf16>
    %66 = vector.shape_cast %65 : vector<1x1x1x1x4x4xbf16> to vector<4x4xbf16>
    %cst_92 = arith.constant dense<0.000000e+00> : vector<128x4xf32>
    %67 = tpu.matmul %64, %66, %cst_92 {dimension_numbers = #tpu.dot_dimension_numbers<[1], [0], [0], [1], [0, 0, 1, 1], [], []>} : vector<128x4xbf16>, vector<4x4xbf16>, vector<128x4xf32> -> vector<128x4xf32>
    %68 = arith.addf %62, %67 : vector<128x4xf32>
    %c2_93 = arith.constant 2 : index
    %c0_94 = arith.constant 0 : index
    %c0_95 = arith.constant 0 : index
    %69 = vector.load %arg7[%c2_93, %c0_94, %c0_95] : memref<3x160x4xbf16, #tpu.memory_space<vmem>>, vector<1x128x4xbf16>
    %70 = vector.shape_cast %69 : vector<1x128x4xbf16> to vector<128x4xbf16>
    %c0_96 = arith.constant 0 : index
    %c1_97 = arith.constant 1 : index
    %c0_98 = arith.constant 0 : index
    %c1_99 = arith.constant 1 : index
    %c0_100 = arith.constant 0 : index
    %c0_101 = arith.constant 0 : index
    %71 = vector.load %arg4[%c0_96, %c1_97, %c0_98, %c1_99, %c0_100, %c0_101] : memref<2x2x2x2x4x4xbf16, #tpu.memory_space<vmem>>, vector<1x1x1x1x4x4xbf16>
    %72 = vector.shape_cast %71 : vector<1x1x1x1x4x4xbf16> to vector<4x4xbf16>
    %cst_102 = arith.constant dense<0.000000e+00> : vector<128x4xf32>
    %73 = tpu.matmul %70, %72, %cst_102 {dimension_numbers = #tpu.dot_dimension_numbers<[1], [0], [0], [1], [0, 0, 1, 1], [], []>} : vector<128x4xbf16>, vector<4x4xbf16>, vector<128x4xf32> -> vector<128x4xf32>
    %74 = arith.addf %68, %73 : vector<128x4xf32>
    %c1_103 = arith.constant 1 : index
    %c16_104 = arith.constant 16 : index
    %c0_105 = arith.constant 0 : index
    %75 = vector.load %arg7[%c1_103, %c16_104, %c0_105] : memref<3x160x4xbf16, #tpu.memory_space<vmem>>, vector<1x128x4xbf16>
    %76 = vector.shape_cast %75 : vector<1x128x4xbf16> to vector<128x4xbf16>
    %c0_106 = arith.constant 0 : index
    %c1_107 = arith.constant 1 : index
    %c1_108 = arith.constant 1 : index
    %c0_109 = arith.constant 0 : index
    %c0_110 = arith.constant 0 : index
    %c0_111 = arith.constant 0 : index
    %77 = vector.load %arg4[%c0_106, %c1_107, %c1_108, %c0_109, %c0_110, %c0_111] : memref<2x2x2x2x4x4xbf16, #tpu.memory_space<vmem>>, vector<1x1x1x1x4x4xbf16>
    %78 = vector.shape_cast %77 : vector<1x1x1x1x4x4xbf16> to vector<4x4xbf16>
    %cst_112 = arith.constant dense<0.000000e+00> : vector<128x4xf32>
    %79 = tpu.matmul %76, %78, %cst_112 {dimension_numbers = #tpu.dot_dimension_numbers<[1], [0], [0], [1], [0, 0, 1, 1], [], []>} : vector<128x4xbf16>, vector<4x4xbf16>, vector<128x4xf32> -> vector<128x4xf32>
    %80 = arith.addf %74, %79 : vector<128x4xf32>
    %c2_113 = arith.constant 2 : index
    %c16_114 = arith.constant 16 : index
    %c0_115 = arith.constant 0 : index
    %81 = vector.load %arg7[%c2_113, %c16_114, %c0_115] : memref<3x160x4xbf16, #tpu.memory_space<vmem>>, vector<1x128x4xbf16>
    %82 = vector.shape_cast %81 : vector<1x128x4xbf16> to vector<128x4xbf16>
    %c0_116 = arith.constant 0 : index
    %c1_117 = arith.constant 1 : index
    %c1_118 = arith.constant 1 : index
    %c1_119 = arith.constant 1 : index
    %c0_120 = arith.constant 0 : index
    %c0_121 = arith.constant 0 : index
    %83 = vector.load %arg4[%c0_116, %c1_117, %c1_118, %c1_119, %c0_120, %c0_121] : memref<2x2x2x2x4x4xbf16, #tpu.memory_space<vmem>>, vector<1x1x1x1x4x4xbf16>
    %84 = vector.shape_cast %83 : vector<1x1x1x1x4x4xbf16> to vector<4x4xbf16>
    %cst_122 = arith.constant dense<0.000000e+00> : vector<128x4xf32>
    %85 = tpu.matmul %82, %84, %cst_122 {dimension_numbers = #tpu.dot_dimension_numbers<[1], [0], [0], [1], [0, 0, 1, 1], [], []>} : vector<128x4xbf16>, vector<4x4xbf16>, vector<128x4xf32> -> vector<128x4xf32>
    %86 = arith.addf %80, %85 : vector<128x4xf32>
    %87 = tpu.concatenate %61, %86 in 1 : vector<128x4xf32>, vector<128x4xf32> -> vector<128x8xf32>
    %88 = vector.broadcast %36 : vector<1x8xf32> to vector<128x8xf32>
    %89 = arith.addf %87, %88 : vector<128x8xf32>
    %90 = arith.truncf %89 : vector<128x8xf32> to vector<128x8xbf16>
    %91 = vector.shape_cast %90 : vector<128x8xbf16> to vector<1x8x1x16x8xbf16>
    %c0_123 = arith.constant 0 : index
    %c0_124 = arith.constant 0 : index
    %c0_125 = arith.constant 0 : index
    %c0_126 = arith.constant 0 : index
    %c0_127 = arith.constant 0 : index
    %92 = vector.load %arg6[%c0_123, %c0_124, %c0_125, %c0_126, %c0_127] : memref<1x8x2x16x8xbf16, #tpu.memory_space<vmem>>, vector<1x8x1x16x8xbf16>
    tpu.vector_store %arg6[%c0_123, %c0_124, %c0_125, %c0_126, %c0_127], %91 {strides = array<i32>} : memref<1x8x2x16x8xbf16, #tpu.memory_space<vmem>>, vector<1x8x1x16x8xbf16>,
    %cst_128 = arith.constant 0.000000e+00 : f32
    %93 = vector.broadcast %cst_128 : f32 to vector<128x4xf32>
    %c0_129 = arith.constant 0 : index
    %c16_130 = arith.constant 16 : index
    %c0_131 = arith.constant 0 : index
    %94 = vector.load %arg7[%c0_129, %c16_130, %c0_131] : memref<3x160x4xbf16, #tpu.memory_space<vmem>>, vector<1x128x4xbf16>
    %95 = vector.shape_cast %94 : vector<1x128x4xbf16> to vector<128x4xbf16>
    %c1_132 = arith.constant 1 : index
    %c0_133 = arith.constant 0 : index
    %c0_134 = arith.constant 0 : index
    %c0_135 = arith.constant 0 : index
    %c0_136 = arith.constant 0 : index
    %c0_137 = arith.constant 0 : index
    %96 = vector.load %arg4[%c1_132, %c0_133, %c0_134, %c0_135, %c0_136, %c0_137] : memref<2x2x2x2x4x4xbf16, #tpu.memory_space<vmem>>, vector<1x1x1x1x4x4xbf16>
    %97 = vector.shape_cast %96 : vector<1x1x1x1x4x4xbf16> to vector<4x4xbf16>
    %cst_138 = arith.constant dense<0.000000e+00> : vector<128x4xf32>
    %98 = tpu.matmul %95, %97, %cst_138 {dimension_numbers = #tpu.dot_dimension_numbers<[1], [0], [0], [1], [0, 0, 1, 1], [], []>} : vector<128x4xbf16>, vector<4x4xbf16>, vector<128x4xf32> -> vector<128x4xf32>
    %99 = arith.addf %93, %98 : vector<128x4xf32>
    %c1_139 = arith.constant 1 : index
    %c16_140 = arith.constant 16 : index
    %c0_141 = arith.constant 0 : index
    %100 = vector.load %arg7[%c1_139, %c16_140, %c0_141] : memref<3x160x4xbf16, #tpu.memory_space<vmem>>, vector<1x128x4xbf16>
    %101 = vector.shape_cast %100 : vector<1x128x4xbf16> to vector<128x4xbf16>
    %c1_142 = arith.constant 1 : index
    %c0_143 = arith.constant 0 : index
    %c0_144 = arith.constant 0 : index
    %c1_145 = arith.constant 1 : index
    %c0_146 = arith.constant 0 : index
    %c0_147 = arith.constant 0 : index
    %102 = vector.load %arg4[%c1_142, %c0_143, %c0_144, %c1_145, %c0_146, %c0_147] : memref<2x2x2x2x4x4xbf16, #tpu.memory_space<vmem>>, vector<1x1x1x1x4x4xbf16>
    %103 = vector.shape_cast %102 : vector<1x1x1x1x4x4xbf16> to vector<4x4xbf16>
    %cst_148 = arith.constant dense<0.000000e+00> : vector<128x4xf32>
    %104 = tpu.matmul %101, %103, %cst_148 {dimension_numbers = #tpu.dot_dimension_numbers<[1], [0], [0], [1], [0, 0, 1, 1], [], []>} : vector<128x4xbf16>, vector<4x4xbf16>, vector<128x4xf32> -> vector<128x4xf32>
    %105 = arith.addf %99, %104 : vector<128x4xf32>
    %c0_149 = arith.constant 0 : index
    %c32 = arith.constant 32 : index
    %c0_150 = arith.constant 0 : index
    %106 = vector.load %arg7[%c0_149, %c32, %c0_150] : memref<3x160x4xbf16, #tpu.memory_space<vmem>>, vector<1x128x4xbf16>
    %107 = vector.shape_cast %106 : vector<1x128x4xbf16> to vector<128x4xbf16>
    %c1_151 = arith.constant 1 : index
    %c0_152 = arith.constant 0 : index
    %c1_153 = arith.constant 1 : index
    %c0_154 = arith.constant 0 : index
    %c0_155 = arith.constant 0 : index
    %c0_156 = arith.constant 0 : index
    %108 = vector.load %arg4[%c1_151, %c0_152, %c1_153, %c0_154, %c0_155, %c0_156] : memref<2x2x2x2x4x4xbf16, #tpu.memory_space<vmem>>, vector<1x1x1x1x4x4xbf16>
    %109 = vector.shape_cast %108 : vector<1x1x1x1x4x4xbf16> to vector<4x4xbf16>
    %cst_157 = arith.constant dense<0.000000e+00> : vector<128x4xf32>
    %110 = tpu.matmul %107, %109, %cst_157 {dimension_numbers = #tpu.dot_dimension_numbers<[1], [0], [0], [1], [0, 0, 1, 1], [], []>} : vector<128x4xbf16>, vector<4x4xbf16>, vector<128x4xf32> -> vector<128x4xf32>
    %111 = arith.addf %105, %110 : vector<128x4xf32>
    %c1_158 = arith.constant 1 : index
    %c32_159 = arith.constant 32 : index
    %c0_160 = arith.constant 0 : index
    %112 = vector.load %arg7[%c1_158, %c32_159, %c0_160] : memref<3x160x4xbf16, #tpu.memory_space<vmem>>, vector<1x128x4xbf16>
    %113 = vector.shape_cast %112 : vector<1x128x4xbf16> to vector<128x4xbf16>
    %c1_161 = arith.constant 1 : index
    %c0_162 = arith.constant 0 : index
    %c1_163 = arith.constant 1 : index
    %c1_164 = arith.constant 1 : index
    %c0_165 = arith.constant 0 : index
    %c0_166 = arith.constant 0 : index
    %114 = vector.load %arg4[%c1_161, %c0_162, %c1_163, %c1_164, %c0_165, %c0_166] : memref<2x2x2x2x4x4xbf16, #tpu.memory_space<vmem>>, vector<1x1x1x1x4x4xbf16>
    %115 = vector.shape_cast %114 : vector<1x1x1x1x4x4xbf16> to vector<4x4xbf16>
    %cst_167 = arith.constant dense<0.000000e+00> : vector<128x4xf32>
    %116 = tpu.matmul %113, %115, %cst_167 {dimension_numbers = #tpu.dot_dimension_numbers<[1], [0], [0], [1], [0, 0, 1, 1], [], []>} : vector<128x4xbf16>, vector<4x4xbf16>, vector<128x4xf32> -> vector<128x4xf32>
    %117 = arith.addf %111, %116 : vector<128x4xf32>
    %cst_168 = arith.constant 0.000000e+00 : f32
    %118 = vector.broadcast %cst_168 : f32 to vector<128x4xf32>
    %c1_169 = arith.constant 1 : index
    %c16_170 = arith.constant 16 : index
    %c0_171 = arith.constant 0 : index
    %119 = vector.load %arg7[%c1_169, %c16_170, %c0_171] : memref<3x160x4xbf16, #tpu.memory_space<vmem>>, vector<1x128x4xbf16>
    %120 = vector.shape_cast %119 : vector<1x128x4xbf16> to vector<128x4xbf16>
    %c1_172 = arith.constant 1 : index
    %c1_173 = arith.constant 1 : index
    %c0_174 = arith.constant 0 : index
    %c0_175 = arith.constant 0 : index
    %c0_176 = arith.constant 0 : index
    %c0_177 = arith.constant 0 : index
    %121 = vector.load %arg4[%c1_172, %c1_173, %c0_174, %c0_175, %c0_176, %c0_177] : memref<2x2x2x2x4x4xbf16, #tpu.memory_space<vmem>>, vector<1x1x1x1x4x4xbf16>
    %122 = vector.shape_cast %121 : vector<1x1x1x1x4x4xbf16> to vector<4x4xbf16>
    %cst_178 = arith.constant dense<0.000000e+00> : vector<128x4xf32>
    %123 = tpu.matmul %120, %122, %cst_178 {dimension_numbers = #tpu.dot_dimension_numbers<[1], [0], [0], [1], [0, 0, 1, 1], [], []>} : vector<128x4xbf16>, vector<4x4xbf16>, vector<128x4xf32> -> vector<128x4xf32>
    %124 = arith.addf %118, %123 : vector<128x4xf32>
    %c2_179 = arith.constant 2 : index
    %c16_180 = arith.constant 16 : index
    %c0_181 = arith.constant 0 : index
    %125 = vector.load %arg7[%c2_179, %c16_180, %c0_181] : memref<3x160x4xbf16, #tpu.memory_space<vmem>>, vector<1x128x4xbf16>
    %126 = vector.shape_cast %125 : vector<1x128x4xbf16> to vector<128x4xbf16>
    %c1_182 = arith.constant 1 : index
    %c1_183 = arith.constant 1 : index
    %c0_184 = arith.constant 0 : index
    %c1_185 = arith.constant 1 : index
    %c0_186 = arith.constant 0 : index
    %c0_187 = arith.constant 0 : index
    %127 = vector.load %arg4[%c1_182, %c1_183, %c0_184, %c1_185, %c0_186, %c0_187] : memref<2x2x2x2x4x4xbf16, #tpu.memory_space<vmem>>, vector<1x1x1x1x4x4xbf16>
    %128 = vector.shape_cast %127 : vector<1x1x1x1x4x4xbf16> to vector<4x4xbf16>
    %cst_188 = arith.constant dense<0.000000e+00> : vector<128x4xf32>
    %129 = tpu.matmul %126, %128, %cst_188 {dimension_numbers = #tpu.dot_dimension_numbers<[1], [0], [0], [1], [0, 0, 1, 1], [], []>} : vector<128x4xbf16>, vector<4x4xbf16>, vector<128x4xf32> -> vector<128x4xf32>
    %130 = arith.addf %124, %129 : vector<128x4xf32>
    %c1_189 = arith.constant 1 : index
    %c32_190 = arith.constant 32 : index
    %c0_191 = arith.constant 0 : index
    %131 = vector.load %arg7[%c1_189, %c32_190, %c0_191] : memref<3x160x4xbf16, #tpu.memory_space<vmem>>, vector<1x128x4xbf16>
    %132 = vector.shape_cast %131 : vector<1x128x4xbf16> to vector<128x4xbf16>
    %c1_192 = arith.constant 1 : index
    %c1_193 = arith.constant 1 : index
    %c1_194 = arith.constant 1 : index
    %c0_195 = arith.constant 0 : index
    %c0_196 = arith.constant 0 : index
    %c0_197 = arith.constant 0 : index
    %133 = vector.load %arg4[%c1_192, %c1_193, %c1_194, %c0_195, %c0_196, %c0_197] : memref<2x2x2x2x4x4xbf16, #tpu.memory_space<vmem>>, vector<1x1x1x1x4x4xbf16>
    %134 = vector.shape_cast %133 : vector<1x1x1x1x4x4xbf16> to vector<4x4xbf16>
    %cst_198 = arith.constant dense<0.000000e+00> : vector<128x4xf32>
    %135 = tpu.matmul %132, %134, %cst_198 {dimension_numbers = #tpu.dot_dimension_numbers<[1], [0], [0], [1], [0, 0, 1, 1], [], []>} : vector<128x4xbf16>, vector<4x4xbf16>, vector<128x4xf32> -> vector<128x4xf32>
    %136 = arith.addf %130, %135 : vector<128x4xf32>
    %c2_199 = arith.constant 2 : index
    %c32_200 = arith.constant 32 : index
    %c0_201 = arith.constant 0 : index
    %137 = vector.load %arg7[%c2_199, %c32_200, %c0_201] : memref<3x160x4xbf16, #tpu.memory_space<vmem>>, vector<1x128x4xbf16>
    %138 = vector.shape_cast %137 : vector<1x128x4xbf16> to vector<128x4xbf16>
    %c1_202 = arith.constant 1 : index
    %c1_203 = arith.constant 1 : index
    %c1_204 = arith.constant 1 : index
    %c1_205 = arith.constant 1 : index
    %c0_206 = arith.constant 0 : index
    %c0_207 = arith.constant 0 : index
    %139 = vector.load %arg4[%c1_202, %c1_203, %c1_204, %c1_205, %c0_206, %c0_207] : memref<2x2x2x2x4x4xbf16, #tpu.memory_space<vmem>>, vector<1x1x1x1x4x4xbf16>
    %140 = vector.shape_cast %139 : vector<1x1x1x1x4x4xbf16> to vector<4x4xbf16>
    %cst_208 = arith.constant dense<0.000000e+00> : vector<128x4xf32>
    %141 = tpu.matmul %138, %140, %cst_208 {dimension_numbers = #tpu.dot_dimension_numbers<[1], [0], [0], [1], [0, 0, 1, 1], [], []>} : vector<128x4xbf16>, vector<4x4xbf16>, vector<128x4xf32> -> vector<128x4xf32>
    %142 = arith.addf %136, %141 : vector<128x4xf32>
    %143 = tpu.concatenate %117, %142 in 1 : vector<128x4xf32>, vector<128x4xf32> -> vector<128x8xf32>
    %144 = vector.broadcast %36 : vector<1x8xf32> to vector<128x8xf32>
    %145 = arith.addf %143, %144 : vector<128x8xf32>
    %146 = arith.truncf %145 : vector<128x8xf32> to vector<128x8xbf16>
    %147 = vector.shape_cast %146 : vector<128x8xbf16> to vector<1x8x1x16x8xbf16>
    %c0_209 = arith.constant 0 : index
    %c0_210 = arith.constant 0 : index
    %c1_211 = arith.constant 1 : index
    %c0_212 = arith.constant 0 : index
    %c0_213 = arith.constant 0 : index
    %148 = vector.load %arg6[%c0_209, %c0_210, %c1_211, %c0_212, %c0_213] : memref<1x8x2x16x8xbf16, #tpu.memory_space<vmem>>, vector<1x8x1x16x8xbf16>
    tpu.vector_store %arg6[%c0_209, %c0_210, %c1_211, %c0_212, %c0_213], %147 {strides = array<i32>} : memref<1x8x2x16x8xbf16, #tpu.memory_space<vmem>>, vector<1x8x1x16x8xbf16>,
    return
  }
  func.func @transform_0(%arg0: i32, %arg1: i32) -> (i32, i32, i32, i32) {
    %c0_i32 = arith.constant 0 : i32
    %c0_i32_0 = arith.constant 0 : i32
    %c0_i32_1 = arith.constant 0 : i32
    return %arg0, %arg1, %c0_i32, %c0_i32_0 : i32, i32, i32, i32
  }
  func.func @transform_1(%arg0: i32, %arg1: i32) -> (i32, i32, i32, i32, i32) {
    %c0_i32 = arith.constant 0 : i32
    %c0_i32_0 = arith.constant 0 : i32
    %c0_i32_1 = arith.constant 0 : i32
    %c0_i32_2 = arith.constant 0 : i32
    return %arg0, %arg1, %c0_i32, %c0_i32_0, %c0_i32_1 : i32, i32, i32, i32, i32
  }
  func.func @transform_2(%arg0: i32, %arg1: i32) -> (i32, i32, i32, i32, i32, i32) {
    %c0_i32 = arith.constant 0 : i32
    %c0_i32_0 = arith.constant 0 : i32
    %c0_i32_1 = arith.constant 0 : i32
    %c0_i32_2 = arith.constant 0 : i32
    %c0_i32_3 = arith.constant 0 : i32
    %c0_i32_4 = arith.constant 0 : i32
    %c0_i32_5 = arith.constant 0 : i32
    return %c0_i32, %c0_i32_0, %c0_i32_1, %c0_i32_2, %c0_i32_3, %c0_i32_4 : i32, i32, i32, i32, i32, i32
  }
  func.func @transform_3(%arg0: i32, %arg1: i32) -> (i32, i32) {
    %c0_i32 = arith.constant 0 : i32
    %c0_i32_0 = arith.constant 0 : i32
    %c0_i32_1 = arith.constant 0 : i32
    return %c0_i32, %c0_i32_0 : i32, i32
  }
  func.func @transform_4(%arg0: i32, %arg1: i32) -> (i32, i32, i32, i32, i32) {
    %c0_i32 = arith.constant 0 : i32
    %c0_i32_0 = arith.constant 0 : i32
    %c0_i32_1 = arith.constant 0 : i32
    %c0_i32_2 = arith.constant 0 : i32
    return %arg0, %arg1, %c0_i32, %c0_i32_0, %c0_i32_1 : i32, i32, i32, i32, i32
  }
}

</mosaic_0001>

<llo_original>
// kernel: tpu_custom_call.1
$region0: #{tpu_custom_call.1}
  #allocation0 [shape = 'u32[]', space=smem, size = 0x4, offset = 0x4, fixed_abs, tag = 'smem constant byte address 0x4 - core index']
  #allocation1 [shape = 'u32[144,128]{1,0:T(1,128)}', space=vmem, size = 0x12000, scoped, tag = 'internal scratch']
  #allocation2 [shape = 'bf16[3,160,4]{2,1,0:T(16,128)(2,1)}', space=vmem, size = 0x1e000, scoped, tag = 'scratch operand']
  %s0 = inlined_call_operand.vmem [shape: bf16[2,18,18,4], index: 0, kind: input, shape index: {}]
  %s1 = inlined_call_operand.vmem [shape: bf16[2,2,2,18,4], index: 1, kind: input, shape index: {}]
  %s2 = inlined_call_operand.vmem [shape: bf16[2,2,2,2,4,4], index: 2, kind: input, shape index: {}]
  %s3 = inlined_call_operand.vmem [shape: f32[1,8], index: 3, kind: input, shape index: {}]
  %s4 = inlined_call_operand.vmem [shape: bf16[2,16,2,16,8], index: 4, kind: output, shape index: {}]
  %s5 = sld [smem:[#allocation0]]
  $region49: #{tpu_custom_call.1} parent=0
    _
  %s7 = ssub.s32 1, %s5
  %s8 = scalar_select 0, %s7, %s5
  loop: start=0, step=1, limit=6
  $region2: #{tpu_custom_call.1} parent=0 // loop_pre_header
    _
  $region3: #{tpu_custom_call.1} parent=0 // loop_header
    %s10 = sphi 0, %s14
    %p11 = scmp.ge.s32.totalorder %s10, 6
    %s17 = sphi 0, %s29
    %s18 = sphi 0, %s25
    %s19 = sphi 0, %s17
    %s20 = sphi 0, %s18
    %s21 = sphi 0, %s19
    %s22 = sphi 0, %s20
    %s34 = sphi 0, %s36
    %s37 = sphi 0, %s34
    %s38 = sphi 0, %s37
    %s54 = sphi 0, %s38
    %s62 = sphi 0, %s64
    %s65 = sphi 0, %s62
    %s66 = sphi 0, %s65
    %s82 = sphi 0, %s66
    %s86 = sphi 0, %s86
    %s88 = sphi 0, %s86
    %s89 = sphi 0, %s88
    %s103 = sphi 0, %s89
    %s107 = sphi 0, %s107
    %s109 = sphi 0, %s107
    %s110 = sphi 0, %s109
    %s124 = sphi 0, %s110
    %s132 = sphi 0, %s134
    %s135 = sphi 0, %s132
    %s136 = sphi 0, %s135
    %s152 = sphi 0, %s136
  $region4: #{tpu_custom_call.1} parent=0 // loop_header_branch
    %13 = sbr.rel (%p11) target = $region8
  $region5: #{tpu_custom_call.1} parent=0 // loop_body
    %s15 = ssub.s32 %s10, 1
    %s16 = ssub.s32 %s10, 2
    %s23 = sadd.s32 1, %s18
    %p24 = scmp.ge.s32.totalorder %s23, 2
    %s25 = scalar_select %p24, 0, %s23
    %s26 = sadd.s32 1, %s17
    %s27 = scalar_select %p24, %s26, %s17
    %p28 = scmp.ge.s32.totalorder %s27, 2
    %s29 = scalar_select %p28, 0, %s27
    %s30 = ssub.s32 %s17, %s29
    %s31 = ssub.s32 %s18, %s25
    %s32 = sor.u32 %s30, %s31
    %p33 = scmp.eq.s32.totalorder %s32, 0
    %s35 = sadd.s32 %s34, 1
    %s36 = scalar_select %p33, %s34, %s35
    %p39 = pneg %p33
    %p40 = scmp.eq.s32.totalorder %s10, 3
    %p41 = por %p39, %p40
    %p42 = scmp.ne.s32.totalorder %s34, %s37
    %p43 = scmp.eq.s32.totalorder %s10, 0
    %p44 = por %p42, %p43
    %p45 = scmp.ne.s32.totalorder %s34, %s37
    %p46 = scmp.eq.s32.totalorder %s15, 3
    %p47 = por %p45, %p46
    %p48 = scmp.ne.s32.totalorder %s37, %s38
    %p49 = scmp.eq.s32.totalorder %s15, 0
    %p50 = por %p48, %p49
    %p51 = scmp.ne.s32.totalorder %s37, %s38
    %p52 = scmp.eq.s32.totalorder %s16, 3
    %p53 = por %p51, %p52
    %p55 = scmp.ne.s32.totalorder %s38, %s54
    %p56 = scmp.eq.s32.totalorder %s16, 0
    %p57 = por %p55, %p56
    %s58 = ssub.s32 %s17, %s29
    %s59 = ssub.s32 %s18, %s25
    %s60 = sor.u32 %s58, %s59
    %p61 = scmp.eq.s32.totalorder %s60, 0
    %s63 = sadd.s32 %s62, 1
    %s64 = scalar_select %p61, %s62, %s63
    %p67 = pneg %p61
    %p68 = scmp.eq.s32.totalorder %s10, 3
    %p69 = por %p67, %p68
    %p70 = scmp.ne.s32.totalorder %s62, %s65
    %p71 = scmp.eq.s32.totalorder %s10, 0
    %p72 = por %p70, %p71
    %p73 = scmp.ne.s32.totalorder %s62, %s65
    %p74 = scmp.eq.s32.totalorder %s15, 3
    %p75 = por %p73, %p74
    %p76 = scmp.ne.s32.totalorder %s65, %s66
    %p77 = scmp.eq.s32.totalorder %s15, 0
    %p78 = por %p76, %p77
    %p79 = scmp.ne.s32.totalorder %s65, %s66
    %p80 = scmp.eq.s32.totalorder %s16, 3
    %p81 = por %p79, %p80
    %p83 = scmp.ne.s32.totalorder %s66, %s82
    %p84 = scmp.eq.s32.totalorder %s16, 0
    %p85 = por %p83, %p84
    %s87 = sadd.s32 %s86, 1
    %p90 = scmp.eq.s32.totalorder %s10, 3
    %p91 = scmp.ne.s32.totalorder %s86, %s88
    %p92 = scmp.eq.s32.totalorder %s10, 0
    %p93 = por %p91, %p92
    %p94 = scmp.ne.s32.totalorder %s86, %s88
    %p95 = scmp.eq.s32.totalorder %s15, 3
    %p96 = por %p94, %p95
    %p97 = scmp.ne.s32.totalorder %s88, %s89
    %p98 = scmp.eq.s32.totalorder %s15, 0
    %p99 = por %p97, %p98
    %p100 = scmp.ne.s32.totalorder %s88, %s89
    %p101 = scmp.eq.s32.totalorder %s16, 3
    %p102 = por %p100, %p101
    %p104 = scmp.ne.s32.totalorder %s89, %s103
    %p105 = scmp.eq.s32.totalorder %s16, 0
    %p106 = por %p104, %p105
    %s108 = sadd.s32 %s107, 1
    %p111 = scmp.eq.s32.totalorder %s10, 3
    %p112 = scmp.ne.s32.totalorder %s107, %s109
    %p113 = scmp.eq.s32.totalorder %s10, 0
    %p114 = por %p112, %p113
    %p115 = scmp.ne.s32.totalorder %s107, %s109
    %p116 = scmp.eq.s32.totalorder %s15, 3
    %p117 = por %p115, %p116
    %p118 = scmp.ne.s32.totalorder %s109, %s110
    %p119 = scmp.eq.s32.totalorder %s15, 0
    %p120 = por %p118, %p119
    %p121 = scmp.ne.s32.totalorder %s109, %s110
    %p122 = scmp.eq.s32.totalorder %s16, 3
    %p123 = por %p121, %p122
    %p125 = scmp.ne.s32.totalorder %s110, %s124
    %p126 = scmp.eq.s32.totalorder %s16, 0
    %p127 = por %p125, %p126
    %s128 = ssub.s32 %s17, %s29
    %s129 = ssub.s32 %s18, %s25
    %s130 = sor.u32 %s128, %s129
    %p131 = scmp.eq.s32.totalorder %s130, 0
    %s133 = sadd.s32 %s132, 1
    %s134 = scalar_select %p131, %s132, %s133
    %p137 = pneg %p131
    %p138 = scmp.eq.s32.totalorder %s10, 3
    %p139 = por %p137, %p138
    %p140 = scmp.ne.s32.totalorder %s132, %s135
    %p141 = scmp.eq.s32.totalorder %s10, 0
    %p142 = por %p140, %p141
    %p143 = scmp.ne.s32.totalorder %s132, %s135
    %p144 = scmp.eq.s32.totalorder %s15, 3
    %p145 = por %p143, %p144
    %p146 = scmp.ne.s32.totalorder %s135, %s136
    %p147 = scmp.eq.s32.totalorder %s15, 0
    %p148 = por %p146, %p147
    %p149 = scmp.ne.s32.totalorder %s135, %s136
    %p150 = scmp.eq.s32.totalorder %s16, 3
    %p151 = por %p149, %p150
    %p153 = scmp.ne.s32.totalorder %s136, %s152
    %p154 = scmp.eq.s32.totalorder %s16, 0
    %p155 = por %p153, %p154
    %p156 = scmp.le.s32.totalorder 1, %s10
    %p157 = scmp.lt.s32.totalorder %s10, 5
    %p158 = pnand %p156, %p157
    %p159 = pneg %p158
    // Predicated region
    $region9: #{tpu_custom_call.1} parent=5 // pred_check
      _
    $region10: #{tpu_custom_call.1} parent=5 // pred_check_branch
      %161 = sbr.rel (%p158) target = $region12
    $region11: #{tpu_custom_call.1} parent=5 // pred_region
      %s162 = ssub.s32 %s10, 1
      // Predicated region
      $region13: #{tpu_custom_call.1} parent=11 // pred_check
        %p163 = pneg %p99
      $region14: #{tpu_custom_call.1} parent=11 // pred_check_branch
        %165 = sbr.rel (%p163) target = $region16
      $region15: #{tpu_custom_call.1} parent=11 // pred_region
        _
      $region16: #{tpu_custom_call.1} parent=11 // pred_fallthru
        _
      // Predicated region
      $region17: #{tpu_custom_call.1} parent=11 // pred_check
        %p166 = pneg %p120
      $region18: #{tpu_custom_call.1} parent=11 // pred_check_branch
        %168 = sbr.rel (%p166) target = $region20
      $region19: #{tpu_custom_call.1} parent=11 // pred_region
        _
      $region20: #{tpu_custom_call.1} parent=11 // pred_fallthru
        _
    $region12: #{tpu_custom_call.1} parent=5 // pred_fallthru
      _
    %p169 = scmp.lt.s32.totalorder %s10, 4
    // Predicated region
    $region21: #{tpu_custom_call.1} parent=5 // pred_check
      %p170 = pneg %p169
    $region22: #{tpu_custom_call.1} parent=5 // pred_check_branch
      %172 = sbr.rel (%p170) target = $region24
    $region23: #{tpu_custom_call.1} parent=5 // pred_region
      // Predicated region
      $region25: #{tpu_custom_call.1} parent=23 // pred_check
        %p173 = pneg %p44
      $region26: #{tpu_custom_call.1} parent=23 // pred_check_branch
        %175 = sbr.rel (%p173) target = $region28
      $region27: #{tpu_custom_call.1} parent=23 // pred_region
        %s176 = smul.u32 8, %s18
        %s177 = ssub.s32 18, %s176
        %p178 = scmp.lt.s32.totalorder %s177, 8
        %s179 = scalar_select %p178, %s177, 8
        %s180 = smul.u32 64, %s179
        %s181 = smul.u32 %s180, 3
        %p182 = scmp.lt.s32.totalorder %s17, 1
        %s183 = scalar_select %p182, %s17, 1
        %p184 = scmp.lt.s32.totalorder %s176, 17
        %s185 = scalar_select %p184, %s176, 17
        %s186 = smul.addr %s185, 3
        %s187 = smul.addr %s183, 54
        %s188 = sadd.s32 %s186, %s187
        %s189 = smul.addr %s188, 4
        %s190 = scalar_lea.vmem %s0, %s189
        %s191 = smul.u32 8, %s18
        %s192 = ssub.s32 18, %s191
        %p193 = scmp.lt.s32.totalorder %s192, 8
        %s194 = scalar_select %p193, %s192, 8
        %s195 = smul.u32 64, %s194
        %s196 = smul.u32 %s195, 3
      $region28: #{tpu_custom_call.1} parent=23 // pred_fallthru
        _
      // Predicated region
      $region29: #{tpu_custom_call.1} parent=23 // pred_check
        %p197 = pneg %p72
      $region30: #{tpu_custom_call.1} parent=23 // pred_check_branch
        %199 = sbr.rel (%p197) target = $region32
      $region31: #{tpu_custom_call.1} parent=23 // pred_region
        %p200 = scmp.lt.s32.totalorder %s17, 1
        %s201 = scalar_select %p200, %s17, 1
        %p202 = scmp.lt.s32.totalorder %s18, 1
        %s203 = scalar_select %p202, %s18, 1
        %s204 = smul.addr %s203, 6
        %s205 = smul.addr %s201, 12
        %s206 = sadd.s32 %s204, %s205
        %s207 = smul.addr %s206, 4
        %s208 = scalar_lea.vmem %s1, %s207
      $region32: #{tpu_custom_call.1} parent=23 // pred_fallthru
        _
    $region24: #{tpu_custom_call.1} parent=5 // pred_fallthru
      _
    %p209 = scmp.le.s32.totalorder 1, %s10
    %p210 = scmp.lt.s32.totalorder %s10, 5
    %p211 = pnand %p209, %p210
    %p212 = pneg %p211
    // Predicated region
    $region33: #{tpu_custom_call.1} parent=5 // pred_check
      _
    $region34: #{tpu_custom_call.1} parent=5 // pred_check_branch
      %214 = sbr.rel (%p211) target = $region36
    $region35: #{tpu_custom_call.1} parent=5 // pred_region
      %s215 = ssub.s32 %s10, 1
      %s216 = smul.u32 8, %s20
      %s217 = ssub.s32 18, %s216
      %p218 = scmp.lt.s32.totalorder %s217, 8
      %s219 = scalar_select %p218, %s217, 8
      %s220 = smul.u32 64, %s219
      %s221 = smul.u32 %s220, 3
      %p222 = scmp.lt.s32.totalorder %s19, 1
      %s223 = scalar_select %p222, %s19, 1
      %p224 = scmp.lt.s32.totalorder %s216, 17
      %s225 = scalar_select %p224, %s216, 17
      %s226 = smul.addr %s225, 3
      %s227 = smul.addr %s223, 54
      %s228 = sadd.s32 %s226, %s227
      %s229 = smul.addr %s228, 4
      %s230 = scalar_lea.vmem %s0, %s229
      %p231 = pneg %p50
      %p232 = pneg %p47
      %p233 = scmp.lt.s32.totalorder %s19, 1
      %s234 = scalar_select %p233, %s19, 1
      %p235 = scmp.lt.s32.totalorder %s20, 1
      %s236 = scalar_select %p235, %s20, 1
      %s237 = smul.addr %s236, 6
      %s238 = smul.addr %s234, 12
      %s239 = sadd.s32 %s237, %s238
      %s240 = smul.addr %s239, 4
      %s241 = scalar_lea.vmem %s1, %s240
      %p242 = pneg %p78
      %p243 = pneg %p75
      %p244 = pneg %p99
      %p245 = pneg %p96
      %p246 = pneg %p120
      %p247 = pneg %p117
      %p248 = pneg %p148
      %p249 = pneg %p145
      %s250 = smul.u32 8, %s20
      %p251 = scmp.lt.s32.totalorder %s19, 1
      %s252 = scalar_select %p251, %s19, 1
      %p253 = scmp.lt.s32.totalorder %s250, 15
      %s254 = scalar_select %p253, %s250, 15
      %s255 = smul.addr %s254, 4
      %s256 = smul.addr %s252, 64
      %s257 = sadd.s32 %s255, %s256
      %s258 = smul.addr %s257, 4
      %s259 = scalar_lea.vmem %s4, %s258
      %s260 = smul.u32 8, %s20
      %s261 = ssub.s32 18, %s260
      %p262 = scmp.lt.s32.totalorder %s261, 8
      %s263 = scalar_select %p262, %s261, 8
      %s264 = smul.u32 64, %s263
      %s265 = smul.u32 %s264, 3
      %p266 = scmp.lt.s32.totalorder %s19, 1
      %s267 = scalar_select %p266, %s19, 1
      %p268 = scmp.lt.s32.totalorder %s260, 17
      %s269 = scalar_select %p268, %s260, 17
      %s270 = smul.addr %s269, 3
      %s271 = smul.addr %s267, 54
      %s272 = sadd.s32 %s270, %s271
      %s273 = smul.addr %s272, 4
      %s274 = scalar_lea.vmem %s0, %s273
      %s275 = smul.u32 8, %s20
      %s276 = ssub.s32 18, %s275
      %p277 = scmp.lt.s32.totalorder %s276, 8
      %s278 = scalar_select %p277, %s276, 8
      %s279 = smul.u32 64, %s278
      %s280 = smul.u32 %s279, 3
      %p281 = scmp.lt.s32.totalorder %s19, 1
      %s282 = scalar_select %p281, %s19, 1
      %p283 = scmp.lt.s32.totalorder %s20, 1
      %s284 = scalar_select %p283, %s20, 1
      %s285 = smul.addr %s284, 6
      %s286 = smul.addr %s282, 12
      %s287 = sadd.s32 %s285, %s286
      %s288 = smul.addr %s287, 4
      %s289 = scalar_lea.vmem %s1, %s288
      %s290 = smul.u32 8, %s20
      %p291 = scmp.lt.s32.totalorder %s19, 1
      %s292 = scalar_select %p291, %s19, 1
      %p293 = scmp.lt.s32.totalorder %s290, 15
      %s294 = scalar_select %p293, %s290, 15
      %s295 = smul.addr %s294, 4
      %s296 = smul.addr %s292, 64
      %s297 = sadd.s32 %s295, %s296
      %s298 = smul.addr %s297, 4
      %s299 = scalar_lea.vmem %s4, %s298
      %s300 = smul.u32 8, %s20
      %v302 = vld [vmem:[%s274] sm:$0xf]
      %v303 = vld [vmem:[%s274 + $0x4] sm:$0xf]
      %v304 = vld [vmem:[%s274 + $0xc] sm:$0xf]
      %v305 = vld [vmem:[%s274 + $0x10] sm:$0xf]
      %v306 = vld [vmem:[%s274 + $0x18] sm:$0xf]
      %v307 = vld [vmem:[%s274 + $0x1c] sm:$0xf]
      %v308 = vld [vmem:[%s274 + $0x24] sm:$0xf]
      %v309 = vld [vmem:[%s274 + $0x28] sm:$0xf]
      %v310 = vld [vmem:[%s274 + $0x30] sm:$0xf]
      %v311 = vld [vmem:[%s274 + $0x34] sm:$0xf]
      %v312 = vld [vmem:[%s274 + $0x3c] sm:$0xf]
      %v313 = vld [vmem:[%s274 + $0x40] sm:$0xf]
      %v314 = vld [vmem:[%s274 + $0x48] sm:$0xf]
      %v315 = vld [vmem:[%s274 + $0x4c] sm:$0xf]
      %v316 = vld [vmem:[%s274 + $0x54] sm:$0xf]
      %v317 = vld [vmem:[%s274 + $0x58] sm:$0xf]
      %v334 = vunpack.c.l.b16 %v302
      %v335 = vunpack.c.l.b16 %v303
      %v336 = vunpack.c.l.b16 %v304
      %v337 = vunpack.c.l.b16 %v305
      %v338 = vunpack.c.l.b16 %v306
      %v339 = vunpack.c.l.b16 %v307
      %v340 = vunpack.c.l.b16 %v308
      %v341 = vunpack.c.l.b16 %v309
      %v342 = vunpack.c.l.b16 %v310
      %v343 = vunpack.c.l.b16 %v311
      %v344 = vunpack.c.l.b16 %v312
      %v345 = vunpack.c.l.b16 %v313
      %v346 = vunpack.c.l.b16 %v314
      %v347 = vunpack.c.l.b16 %v315
      %v348 = vunpack.c.l.b16 %v316
      %v349 = vunpack.c.l.b16 %v317
      %v350 = vpack.c.b16 %v335, %v334
      %v351 = vpack.c.b16 %v337, %v336
      %v352 = vpack.c.b16 %v339, %v338
      %v353 = vpack.c.b16 %v341, %v340
      %v354 = vpack.c.b16 %v343, %v342
      %v355 = vpack.c.b16 %v345, %v344
      %v356 = vpack.c.b16 %v347, %v346
      %v357 = vpack.c.b16 %v349, %v348
      %vm366 = vcmask 31744
      %367 = vst.msk [vmem:[#allocation2] sm:$0xff] %vm366, %v350
      %368 = vst.msk [vmem:[#allocation2 + $0x8] sm:$0xff] %vm366, %v351
      %369 = vst.msk [vmem:[#allocation2 + $0x10] sm:$0xff] %vm366, %v352
      %370 = vst.msk [vmem:[#allocation2 + $0x18] sm:$0xff] %vm366, %v353
      %371 = vst.msk [vmem:[#allocation2 + $0x20] sm:$0xff] %vm366, %v354
      %372 = vst.msk [vmem:[#allocation2 + $0x28] sm:$0xff] %vm366, %v355
      %373 = vst.msk [vmem:[#allocation2 + $0x30] sm:$0xff] %vm366, %v356
      %374 = vst.msk [vmem:[#allocation2 + $0x38] sm:$0xff] %vm366, %v357
      %v375 = vld [vmem:[%s289] sm:$0xf]
      %v376 = vld [vmem:[%s289 + $0x4] sm:$0xf]
      %v377 = vld [vmem:[%s289 + $0xc] sm:$0xf]
      %v378 = vld [vmem:[%s289 + $0x10] sm:$0xf]
      %v383 = vunpack.c.l.b16 %v375
      %v384 = vunpack.c.l.b16 %v376
      %v385 = vunpack.c.l.b16 %v377
      %v386 = vunpack.c.l.b16 %v378
      %v387 = vpack.c.b16 %v384, %v383
      %v388 = vpack.c.b16 %v386, %v385
      %391 = vst.msk [vmem:[#allocation2 + $0x40] sm:$0xff] %vm366, %v387
      %392 = vst.msk [vmem:[#allocation2 + $0x48] sm:$0xff] %vm366, %v388
      %v393 = vld [vmem:[%s274] sm:$0xf]
      %v394 = vld [vmem:[%s274 + $0x4] sm:$0xf]
      %v395 = vld [vmem:[%s274 + $0x8] sm:$0x1]
      %v396 = vld [vmem:[%s274 + $0xc] sm:$0xf]
      %v397 = vld [vmem:[%s274 + $0x10] sm:$0xf]
      %v398 = vld [vmem:[%s274 + $0x14] sm:$0x1]
      %v399 = vld [vmem:[%s274 + $0x18] sm:$0xf]
      %v400 = vld [vmem:[%s274 + $0x1c] sm:$0xf]
      %v401 = vld [vmem:[%s274 + $0x20] sm:$0x1]
      %v402 = vld [vmem:[%s274 + $0x24] sm:$0xf]
      %v403 = vld [vmem:[%s274 + $0x28] sm:$0xf]
      %v404 = vld [vmem:[%s274 + $0x2c] sm:$0x1]
      %v405 = vld [vmem:[%s274 + $0x30] sm:$0xf]
      %v406 = vld [vmem:[%s274 + $0x34] sm:$0xf]
      %v407 = vld [vmem:[%s274 + $0x38] sm:$0x1]
      %v408 = vld [vmem:[%s274 + $0x3c] sm:$0xf]
      %v409 = vld [vmem:[%s274 + $0x40] sm:$0xf]
      %v410 = vld [vmem:[%s274 + $0x44] sm:$0x1]
      %v411 = vld [vmem:[%s274 + $0x48] sm:$0xf]
      %v412 = vld [vmem:[%s274 + $0x4c] sm:$0xf]
      %v413 = vld [vmem:[%s274 + $0x50] sm:$0x1]
      %v414 = vld [vmem:[%s274 + $0x54] sm:$0xf]
      %v415 = vld [vmem:[%s274 + $0x58] sm:$0xf]
      %v416 = vld [vmem:[%s274 + $0x5c] sm:$0x1]
      %vm417 = vsmask.f32 3328
      %vm418 = vsmask.f32 7440
      %vm419 = vmor %vm417, %vm418
      %v421 = vshrl.u32 %v393, 16
      %v423 = vrot.slane %v421, 4
      %v424 = vshll.u32 %v393, 16
      %v426 = vrot.slane %v424, 5
      %v427 = vor.u32 %v423, %v426
      %v428 = vrot.slane %v427, 4
      %v430 = vshll.u32 %v394, 16
      %v432 = vrot.slane %v430, 5
      %v433 = vsel %vm419, %v428, %v432
      %v434 = vshrl.u32 %v394, 16
      %v436 = vrot.slane %v434, 4
      %v437 = vor.u32 %v436, %v432
      %v438 = vrot.slane %v437, 4
      %v440 = vshll.u32 %v395, 16
      %v442 = vrot.slane %v440, 5
      %v443 = vsel %vm419, %v438, %v442
      %v445 = vshrl.u32 %v396, 16
      %v447 = vrot.slane %v445, 4
      %v448 = vshll.u32 %v396, 16
      %v450 = vrot.slane %v448, 5
      %v451 = vor.u32 %v447, %v450
      %v452 = vrot.slane %v451, 4
      %v454 = vshll.u32 %v397, 16
      %v456 = vrot.slane %v454, 5
      %v457 = vsel %vm419, %v452, %v456
      %v458 = vshrl.u32 %v397, 16
      %v460 = vrot.slane %v458, 4
      %v461 = vor.u32 %v460, %v456
      %v462 = vrot.slane %v461, 4
      %v464 = vshll.u32 %v398, 16
      %v466 = vrot.slane %v464, 5
      %v467 = vsel %vm419, %v462, %v466
      %v469 = vshrl.u32 %v399, 16
      %v471 = vrot.slane %v469, 4
      %v472 = vshll.u32 %v399, 16
      %v474 = vrot.slane %v472, 5
      %v475 = vor.u32 %v471, %v474
      %v476 = vrot.slane %v475, 4
      %v478 = vshll.u32 %v400, 16
      %v480 = vrot.slane %v478, 5
      %v481 = vsel %vm419, %v476, %v480
      %v482 = vshrl.u32 %v400, 16
      %v484 = vrot.slane %v482, 4
      %v485 = vor.u32 %v484, %v480
      %v486 = vrot.slane %v485, 4
      %v488 = vshll.u32 %v401, 16
      %v490 = vrot.slane %v488, 5
      %v491 = vsel %vm419, %v486, %v490
      %v493 = vshrl.u32 %v402, 16
      %v495 = vrot.slane %v493, 4
      %v496 = vshll.u32 %v402, 16
      %v498 = vrot.slane %v496, 5
      %v499 = vor.u32 %v495, %v498
      %v500 = vrot.slane %v499, 4
      %v502 = vshll.u32 %v403, 16
      %v504 = vrot.slane %v502, 5
      %v505 = vsel %vm419, %v500, %v504
      %v506 = vshrl.u32 %v403, 16
      %v508 = vrot.slane %v506, 4
      %v509 = vor.u32 %v508, %v504
      %v510 = vrot.slane %v509, 4
      %v512 = vshll.u32 %v404, 16
      %v514 = vrot.slane %v512, 5
      %v515 = vsel %vm419, %v510, %v514
      %v517 = vshrl.u32 %v405, 16
      %v519 = vrot.slane %v517, 4
      %v520 = vshll.u32 %v405, 16
      %v522 = vrot.slane %v520, 5
      %v523 = vor.u32 %v519, %v522
      %v524 = vrot.slane %v523, 4
      %v526 = vshll.u32 %v406, 16
      %v528 = vrot.slane %v526, 5
      %v529 = vsel %vm419, %v524, %v528
      %v530 = vshrl.u32 %v406, 16
      %v532 = vrot.slane %v530, 4
      %v533 = vor.u32 %v532, %v528
      %v534 = vrot.slane %v533, 4
      %v536 = vshll.u32 %v407, 16
      %v538 = vrot.slane %v536, 5
      %v539 = vsel %vm419, %v534, %v538
      %v541 = vshrl.u32 %v408, 16
      %v543 = vrot.slane %v541, 4
      %v544 = vshll.u32 %v408, 16
      %v546 = vrot.slane %v544, 5
      %v547 = vor.u32 %v543, %v546
      %v548 = vrot.slane %v547, 4
      %v550 = vshll.u32 %v409, 16
      %v552 = vrot.slane %v550, 5
      %v553 = vsel %vm419, %v548, %v552
      %v554 = vshrl.u32 %v409, 16
      %v556 = vrot.slane %v554, 4
      %v557 = vor.u32 %v556, %v552
      %v558 = vrot.slane %v557, 4
      %v560 = vshll.u32 %v410, 16
      %v562 = vrot.slane %v560, 5
      %v563 = vsel %vm419, %v558, %v562
      %v565 = vshrl.u32 %v411, 16
      %v567 = vrot.slane %v565, 4
      %v568 = vshll.u32 %v411, 16
      %v570 = vrot.slane %v568, 5
      %v571 = vor.u32 %v567, %v570
      %v572 = vrot.slane %v571, 4
      %v574 = vshll.u32 %v412, 16
      %v576 = vrot.slane %v574, 5
      %v577 = vsel %vm419, %v572, %v576
      %v578 = vshrl.u32 %v412, 16
      %v580 = vrot.slane %v578, 4
      %v581 = vor.u32 %v580, %v576
      %v582 = vrot.slane %v581, 4
      %v584 = vshll.u32 %v413, 16
      %v586 = vrot.slane %v584, 5
      %v587 = vsel %vm419, %v582, %v586
      %v589 = vshrl.u32 %v414, 16
      %v591 = vrot.slane %v589, 4
      %v592 = vshll.u32 %v414, 16
      %v594 = vrot.slane %v592, 5
      %v595 = vor.u32 %v591, %v594
      %v596 = vrot.slane %v595, 4
      %v598 = vshll.u32 %v415, 16
      %v600 = vrot.slane %v598, 5
      %v601 = vsel %vm419, %v596, %v600
      %v602 = vshrl.u32 %v415, 16
      %v604 = vrot.slane %v602, 4
      %v605 = vor.u32 %v604, %v600
      %v606 = vrot.slane %v605, 4
      %v608 = vshll.u32 %v416, 16
      %v610 = vrot.slane %v608, 5
      %v611 = vsel %vm419, %v606, %v610
      %v612 = vunpack.c.l.b16 %v433
      %v613 = vunpack.c.l.b16 %v443
      %v614 = vunpack.c.l.b16 %v457
      %v615 = vunpack.c.l.b16 %v467
      %v616 = vunpack.c.l.b16 %v481
      %v617 = vunpack.c.l.b16 %v491
      %v618 = vunpack.c.l.b16 %v505
      %v619 = vunpack.c.l.b16 %v515
      %v620 = vunpack.c.l.b16 %v529
      %v621 = vunpack.c.l.b16 %v539
      %v622 = vunpack.c.l.b16 %v553
      %v623 = vunpack.c.l.b16 %v563
      %v624 = vunpack.c.l.b16 %v577
      %v625 = vunpack.c.l.b16 %v587
      %v626 = vunpack.c.l.b16 %v601
      %v627 = vunpack.c.l.b16 %v611
      %v628 = vpack.c.b16 %v613, %v612
      %v629 = vpack.c.b16 %v615, %v614
      %v630 = vpack.c.b16 %v617, %v616
      %v631 = vpack.c.b16 %v619, %v618
      %v632 = vpack.c.b16 %v621, %v620
      %v633 = vpack.c.b16 %v623, %v622
      %v634 = vpack.c.b16 %v625, %v624
      %v635 = vpack.c.b16 %v627, %v626
      %s644 = scalar_lea.vmem [#allocation2], 80
      %645 = vst.msk [vmem:[%s644] sm:$0xff] %vm366, %v628
      %646 = vst.msk [vmem:[%s644 + $0x8] sm:$0xff] %vm366, %v629
      %647 = vst.msk [vmem:[%s644 + $0x10] sm:$0xff] %vm366, %v630
      %648 = vst.msk [vmem:[%s644 + $0x18] sm:$0xff] %vm366, %v631
      %649 = vst.msk [vmem:[%s644 + $0x20] sm:$0xff] %vm366, %v632
      %650 = vst.msk [vmem:[%s644 + $0x28] sm:$0xff] %vm366, %v633
      %651 = vst.msk [vmem:[%s644 + $0x30] sm:$0xff] %vm366, %v634
      %652 = vst.msk [vmem:[%s644 + $0x38] sm:$0xff] %vm366, %v635
      %v653 = vld [vmem:[%s289] sm:$0xf]
      %v654 = vld [vmem:[%s289 + $0x4] sm:$0xf]
      %v655 = vld [vmem:[%s289 + $0x8] sm:$0x1]
      %v656 = vld [vmem:[%s289 + $0xc] sm:$0xf]
      %v657 = vld [vmem:[%s289 + $0x10] sm:$0xf]
      %v658 = vld [vmem:[%s289 + $0x14] sm:$0x1]
      %v660 = vshrl.u32 %v653, 16
      %v662 = vrot.slane %v660, 4
      %v663 = vshll.u32 %v653, 16
      %v665 = vrot.slane %v663, 5
      %v666 = vor.u32 %v662, %v665
      %v667 = vrot.slane %v666, 4
      %v669 = vshll.u32 %v654, 16
      %v671 = vrot.slane %v669, 5
      %v672 = vsel %vm419, %v667, %v671
      %v673 = vshrl.u32 %v654, 16
      %v675 = vrot.slane %v673, 4
      %v676 = vor.u32 %v675, %v671
      %v677 = vrot.slane %v676, 4
      %v679 = vshll.u32 %v655, 16
      %v681 = vrot.slane %v679, 5
      %v682 = vsel %vm419, %v677, %v681
      %v684 = vshrl.u32 %v656, 16
      %v686 = vrot.slane %v684, 4
      %v687 = vshll.u32 %v656, 16
      %v689 = vrot.slane %v687, 5
      %v690 = vor.u32 %v686, %v689
      %v691 = vrot.slane %v690, 4
      %v693 = vshll.u32 %v657, 16
      %v695 = vrot.slane %v693, 5
      %v696 = vsel %vm419, %v691, %v695
      %v697 = vshrl.u32 %v657, 16
      %v699 = vrot.slane %v697, 4
      %v700 = vor.u32 %v699, %v695
      %v701 = vrot.slane %v700, 4
      %v703 = vshll.u32 %v658, 16
      %v705 = vrot.slane %v703, 5
      %v706 = vsel %vm419, %v701, %v705
      %v707 = vunpack.c.l.b16 %v672
      %v708 = vunpack.c.l.b16 %v682
      %v709 = vunpack.c.l.b16 %v696
      %v710 = vunpack.c.l.b16 %v706
      %v711 = vpack.c.b16 %v708, %v707
      %v712 = vpack.c.b16 %v710, %v709
      %715 = vst.msk [vmem:[%s644 + $0x40] sm:$0xff] %vm366, %v711
      %716 = vst.msk [vmem:[%s644 + $0x48] sm:$0xff] %vm366, %v712
      %v717 = vld [vmem:[%s274] sm:$0xe]
      %v718 = vld [vmem:[%s274 + $0x4] sm:$0xf]
      %v719 = vld [vmem:[%s274 + $0x8] sm:$0x1]
      %v720 = vld [vmem:[%s274 + $0xc] sm:$0xe]
      %v721 = vld [vmem:[%s274 + $0x10] sm:$0xf]
      %v722 = vld [vmem:[%s274 + $0x14] sm:$0x1]
      %v723 = vld [vmem:[%s274 + $0x18] sm:$0xe]
      %v724 = vld [vmem:[%s274 + $0x1c] sm:$0xf]
      %v725 = vld [vmem:[%s274 + $0x20] sm:$0x1]
      %v726 = vld [vmem:[%s274 + $0x24] sm:$0xe]
      %v727 = vld [vmem:[%s274 + $0x28] sm:$0xf]
      %v728 = vld [vmem:[%s274 + $0x2c] sm:$0x1]
      %v729 = vld [vmem:[%s274 + $0x30] sm:$0xe]
      %v730 = vld [vmem:[%s274 + $0x34] sm:$0xf]
      %v731 = vld [vmem:[%s274 + $0x38] sm:$0x1]
      %v732 = vld [vmem:[%s274 + $0x3c] sm:$0xe]
      %v733 = vld [vmem:[%s274 + $0x40] sm:$0xf]
      %v734 = vld [vmem:[%s274 + $0x44] sm:$0x1]
      %v735 = vld [vmem:[%s274 + $0x48] sm:$0xe]
      %v736 = vld [vmem:[%s274 + $0x4c] sm:$0xf]
      %v737 = vld [vmem:[%s274 + $0x50] sm:$0x1]
      %v738 = vld [vmem:[%s274 + $0x54] sm:$0xe]
      %v739 = vld [vmem:[%s274 + $0x58] sm:$0xf]
      %v740 = vld [vmem:[%s274 + $0x5c] sm:$0x1]
      %vm765 = vcmask 1042432
      %vm766 = vcmask 1046532
      %vm767 = vmor %vm765, %vm766
      %v768 = vrot.slane %v717, 5
      %v769 = vrot.slane %v768, 4
      %v770 = vrot.slane %v718, 5
      %v771 = vsel %vm767, %v769, %v770
      %v772 = vrot.slane %v770, 4
      %v773 = vrot.slane %v719, 5
      %v774 = vsel %vm767, %v772, %v773
      %v775 = vrot.slane %v720, 5
      %v776 = vrot.slane %v775, 4
      %v777 = vrot.slane %v721, 5
      %v778 = vsel %vm767, %v776, %v777
      %v779 = vrot.slane %v777, 4
      %v780 = vrot.slane %v722, 5
      %v781 = vsel %vm767, %v779, %v780
      %v782 = vrot.slane %v723, 5
      %v783 = vrot.slane %v782, 4
      %v784 = vrot.slane %v724, 5
      %v785 = vsel %vm767, %v783, %v784
      %v786 = vrot.slane %v784, 4
      %v787 = vrot.slane %v725, 5
      %v788 = vsel %vm767, %v786, %v787
      %v789 = vrot.slane %v726, 5
      %v790 = vrot.slane %v789, 4
      %v791 = vrot.slane %v727, 5
      %v792 = vsel %vm767, %v790, %v791
      %v793 = vrot.slane %v791, 4
      %v794 = vrot.slane %v728, 5
      %v795 = vsel %vm767, %v793, %v794
      %v796 = vrot.slane %v729, 5
      %v797 = vrot.slane %v796, 4
      %v798 = vrot.slane %v730, 5
      %v799 = vsel %vm767, %v797, %v798
      %v800 = vrot.slane %v798, 4
      %v801 = vrot.slane %v731, 5
      %v802 = vsel %vm767, %v800, %v801
      %v803 = vrot.slane %v732, 5
      %v804 = vrot.slane %v803, 4
      %v805 = vrot.slane %v733, 5
      %v806 = vsel %vm767, %v804, %v805
      %v807 = vrot.slane %v805, 4
      %v808 = vrot.slane %v734, 5
      %v809 = vsel %vm767, %v807, %v808
      %v810 = vrot.slane %v735, 5
      %v811 = vrot.slane %v810, 4
      %v812 = vrot.slane %v736, 5
      %v813 = vsel %vm767, %v811, %v812
      %v814 = vrot.slane %v812, 4
      %v815 = vrot.slane %v737, 5
      %v816 = vsel %vm767, %v814, %v815
      %v817 = vrot.slane %v738, 5
      %v818 = vrot.slane %v817, 4
      %v819 = vrot.slane %v739, 5
      %v820 = vsel %vm767, %v818, %v819
      %v821 = vrot.slane %v819, 4
      %v822 = vrot.slane %v740, 5
      %v823 = vsel %vm767, %v821, %v822
      %v824 = vunpack.c.l.b16 %v771
      %v825 = vunpack.c.l.b16 %v774
      %v826 = vunpack.c.l.b16 %v778
      %v827 = vunpack.c.l.b16 %v781
      %v828 = vunpack.c.l.b16 %v785
      %v829 = vunpack.c.l.b16 %v788
      %v830 = vunpack.c.l.b16 %v792
      %v831 = vunpack.c.l.b16 %v795
      %v832 = vunpack.c.l.b16 %v799
      %v833 = vunpack.c.l.b16 %v802
      %v834 = vunpack.c.l.b16 %v806
      %v835 = vunpack.c.l.b16 %v809
      %v836 = vunpack.c.l.b16 %v813
      %v837 = vunpack.c.l.b16 %v816
      %v838 = vunpack.c.l.b16 %v820
      %v839 = vunpack.c.l.b16 %v823
      %v840 = vpack.c.b16 %v825, %v824
      %v841 = vpack.c.b16 %v827, %v826
      %v842 = vpack.c.b16 %v829, %v828
      %v843 = vpack.c.b16 %v831, %v830
      %v844 = vpack.c.b16 %v833, %v832
      %v845 = vpack.c.b16 %v835, %v834
      %v846 = vpack.c.b16 %v837, %v836
      %v847 = vpack.c.b16 %v839, %v838
      %s856 = scalar_lea.vmem [#allocation2], 160
      %857 = vst.msk [vmem:[%s856] sm:$0xff] %vm366, %v840
      %858 = vst.msk [vmem:[%s856 + $0x8] sm:$0xff] %vm366, %v841
      %859 = vst.msk [vmem:[%s856 + $0x10] sm:$0xff] %vm366, %v842
      %860 = vst.msk [vmem:[%s856 + $0x18] sm:$0xff] %vm366, %v843
      %861 = vst.msk [vmem:[%s856 + $0x20] sm:$0xff] %vm366, %v844
      %862 = vst.msk [vmem:[%s856 + $0x28] sm:$0xff] %vm366, %v845
      %863 = vst.msk [vmem:[%s856 + $0x30] sm:$0xff] %vm366, %v846
      %864 = vst.msk [vmem:[%s856 + $0x38] sm:$0xff] %vm366, %v847
      %v865 = vld [vmem:[%s289] sm:$0xe]
      %v866 = vld [vmem:[%s289 + $0x4] sm:$0xf]
      %v867 = vld [vmem:[%s289 + $0x8] sm:$0x1]
      %v868 = vld [vmem:[%s289 + $0xc] sm:$0xe]
      %v869 = vld [vmem:[%s289 + $0x10] sm:$0xf]
      %v870 = vld [vmem:[%s289 + $0x14] sm:$0x1]
      %v877 = vrot.slane %v865, 5
      %v878 = vrot.slane %v877, 4
      %v879 = vrot.slane %v866, 5
      %v880 = vsel %vm767, %v878, %v879
      %v881 = vrot.slane %v879, 4
      %v882 = vrot.slane %v867, 5
      %v883 = vsel %vm767, %v881, %v882
      %v884 = vrot.slane %v868, 5
      %v885 = vrot.slane %v884, 4
      %v886 = vrot.slane %v869, 5
      %v887 = vsel %vm767, %v885, %v886
      %v888 = vrot.slane %v886, 4
      %v889 = vrot.slane %v870, 5
      %v890 = vsel %vm767, %v888, %v889
      %v891 = vunpack.c.l.b16 %v880
      %v892 = vunpack.c.l.b16 %v883
      %v893 = vunpack.c.l.b16 %v887
      %v894 = vunpack.c.l.b16 %v890
      %v895 = vpack.c.b16 %v892, %v891
      %v896 = vpack.c.b16 %v894, %v893
      %899 = vst.msk [vmem:[%s856 + $0x40] sm:$0xff] %vm366, %v895
      %900 = vst.msk [vmem:[%s856 + $0x48] sm:$0xff] %vm366, %v896
      %v901 = vld [vmem:[%s3] sm:$0x1]
      %v902 = vld [vmem:[#allocation2] sm:$0xff]
      %v903 = vld [vmem:[#allocation2 + $0x8] sm:$0xff]
      %v904 = vld [vmem:[#allocation2 + $0x10] sm:$0xff]
      %v905 = vld [vmem:[#allocation2 + $0x18] sm:$0xff]
      %v906 = vld [vmem:[#allocation2 + $0x20] sm:$0xff]
      %v907 = vld [vmem:[#allocation2 + $0x28] sm:$0xff]
      %v908 = vld [vmem:[#allocation2 + $0x30] sm:$0xff]
      %v909 = vld [vmem:[#allocation2 + $0x38] sm:$0xff]
      %v910 = vld [vmem:[%s2] sm:$0x3]
      %v911 = vld [vmem:[%s644] sm:$0xff]
      %v912 = vld [vmem:[%s644 + $0x8] sm:$0xff]
      %v913 = vld [vmem:[%s644 + $0x10] sm:$0xff]
      %v914 = vld [vmem:[%s644 + $0x18] sm:$0xff]
      %v915 = vld [vmem:[%s644 + $0x20] sm:$0xff]
      %v916 = vld [vmem:[%s644 + $0x28] sm:$0xff]
      %v917 = vld [vmem:[%s644 + $0x30] sm:$0xff]
      %v918 = vld [vmem:[%s644 + $0x38] sm:$0xff]
      %s919 = scalar_lea.vmem %s2, 2
      %v920 = vld [vmem:[%s919] sm:$0x3]
      %v922 = vsel %vm366, %v911, 0
      %v925 = vsel %vm366, %v912, 0
      %v928 = vsel %vm366, %v913, 0
      %v931 = vsel %vm366, %v914, 0
      %v934 = vsel %vm366, %v915, 0
      %v937 = vsel %vm366, %v916, 0
      %v940 = vsel %vm366, %v917, 0
      %v943 = vsel %vm366, %v918, 0
      %vm945 = vcmask 1041408
      %v947 = vsel %vm945, %v920, 0
      %949 = vmatprep.subr.bf16.mxu0 0
      %950 = vmatpush1.bf16.msra.mxu0 %v947
      %951 = vmatprep.subr.bf16.mxu0 0
      %952 = vmatpush1.bf16.msra.mxu0 0
      %953 = vmatprep.subr.bf16.mxu0 0
      %954 = vmatpush1.bf16.msra.mxu0 0
      %955 = vmatprep.subr.bf16.mxu0 0
      %956 = vmatpush1.bf16.msra.mxu0 0
      %957 = vmatprep.subr.bf16.mxu0 0
      %958 = vmatpush1.bf16.msra.mxu0 0
      %959 = vmatprep.subr.bf16.mxu0 0
      %960 = vmatpush1.bf16.msra.mxu0 0
      %961 = vmatprep.subr.bf16.mxu0 0
      %962 = vmatpush1.bf16.msra.mxu0 0
      %963 = vmatprep.subr.bf16.mxu0 0
      %964 = vmatpush1.bf16.msra.mxu0 0
      %965 = vmatprep.subr.bf16.mxu0 0
      %966 = vmatpush1.bf16.msra.mxu0 0
      %967 = vmatprep.subr.bf16.mxu0 0
      %968 = vmatpush1.bf16.msra.mxu0 0
      %969 = vmatprep.subr.bf16.mxu0 0
      %970 = vmatpush1.bf16.msra.mxu0 0
      %971 = vmatprep.subr.bf16.mxu0 0
      %972 = vmatpush1.bf16.msra.mxu0 0
      %973 = vmatprep.subr.bf16.mxu0 0
      %974 = vmatpush1.bf16.msra.mxu0 0
      %975 = vmatprep.subr.bf16.mxu0 0
      %976 = vmatpush1.bf16.msra.mxu0 0
      %977 = vmatprep.subr.bf16.mxu0 0
      %978 = vmatpush1.bf16.msra.mxu0 0
      %979 = vmatprep.subr.bf16.mxu0 0
      %980 = vmatpush1.bf16.msra.mxu0 0
      %981 = vmatprep.mubr.bf16.mxu0 0
      %982 = vmatmul.mubr.bf16.gmra.mrb[0].mxu0 %v922
      %v983 = vpop.f32.mrb[0].mxu0
      %v984 = vadd.f32 0.0, %v983
      %v985 = vpop.f32.mrb[0].mxu0
      %v986 = vpop.f32.mrb[0].mxu0
      %v987 = vadd.f32 0.0, %v986
      %v988 = vpop.f32.mrb[0].mxu0
      %989 = vmatprep.mubr.bf16.mxu0 0
      %990 = vmatmul.mubr.bf16.gmra.mrb[0].mxu0 %v925
      %v991 = vpop.f32.mrb[0].mxu0
      %v992 = vadd.f32 0.0, %v991
      %v993 = vpop.f32.mrb[0].mxu0
      %v994 = vpop.f32.mrb[0].mxu0
      %v995 = vadd.f32 0.0, %v994
      %v996 = vpop.f32.mrb[0].mxu0
      %997 = vmatprep.mubr.bf16.mxu0 0
      %998 = vmatmul.mubr.bf16.gmra.mrb[0].mxu0 %v928
      %v999 = vpop.f32.mrb[0].mxu0
      %v1000 = vadd.f32 0.0, %v999
      %v1001 = vpop.f32.mrb[0].mxu0
      %v1002 = vpop.f32.mrb[0].mxu0
      %v1003 = vadd.f32 0.0, %v1002
      %v1004 = vpop.f32.mrb[0].mxu0
      %1005 = vmatprep.mubr.bf16.mxu0 0
      %1006 = vmatmul.mubr.bf16.gmra.mrb[0].mxu0 %v931
      %v1007 = vpop.f32.mrb[0].mxu0
      %v1008 = vadd.f32 0.0, %v1007
      %v1009 = vpop.f32.mrb[0].mxu0
      %v1010 = vpop.f32.mrb[0].mxu0
      %v1011 = vadd.f32 0.0, %v1010
      %v1012 = vpop.f32.mrb[0].mxu0
      %1013 = vmatprep.mubr.bf16.mxu0 0
      %1014 = vmatmul.mubr.bf16.gmra.mrb[0].mxu0 %v934
      %v1015 = vpop.f32.mrb[0].mxu0
      %v1016 = vadd.f32 0.0, %v1015
      %v1017 = vpop.f32.mrb[0].mxu0
      %v1018 = vpop.f32.mrb[0].mxu0
      %v1019 = vadd.f32 0.0, %v1018
      %v1020 = vpop.f32.mrb[0].mxu0
      %1021 = vmatprep.mubr.bf16.mxu0 0
      %1022 = vmatmul.mubr.bf16.gmra.mrb[0].mxu0 %v937
      %v1023 = vpop.f32.mrb[0].mxu0
      %v1024 = vadd.f32 0.0, %v1023
      %v1025 = vpop.f32.mrb[0].mxu0
      %v1026 = vpop.f32.mrb[0].mxu0
      %v1027 = vadd.f32 0.0, %v1026
      %v1028 = vpop.f32.mrb[0].mxu0
      %1029 = vmatprep.mubr.bf16.mxu0 0
      %1030 = vmatmul.mubr.bf16.gmra.mrb[0].mxu0 %v940
      %v1031 = vpop.f32.mrb[0].mxu0
      %v1032 = vadd.f32 0.0, %v1031
      %v1033 = vpop.f32.mrb[0].mxu0
      %v1034 = vpop.f32.mrb[0].mxu0
      %v1035 = vadd.f32 0.0, %v1034
      %v1036 = vpop.f32.mrb[0].mxu0
      %1037 = vmatprep.mubr.bf16.mxu0 0
      %1038 = vmatmul.mubr.bf16.gmra.mrb[0].mxu0 %v943
      %v1039 = vpop.f32.mrb[0].mxu0
      %v1040 = vadd.f32 0.0, %v1039
      %v1041 = vpop.f32.mrb[0].mxu0
      %v1042 = vpop.f32.mrb[0].mxu0
      %v1043 = vadd.f32 0.0, %v1042
      %v1044 = vpop.f32.mrb[0].mxu0
      %1045 = vdwg.mxu0
      %v1047 = vsel %vm366, %v902, 0
      %v1050 = vsel %vm366, %v903, 0
      %v1053 = vsel %vm366, %v904, 0
      %v1056 = vsel %vm366, %v905, 0
      %v1059 = vsel %vm366, %v906, 0
      %v1062 = vsel %vm366, %v907, 0
      %v1065 = vsel %vm366, %v908, 0
      %v1068 = vsel %vm366, %v909, 0
      %v1071 = vsel %vm945, %v910, 0
      %1073 = vmatprep.subr.bf16.mxu0 0
      %1074 = vmatpush1.bf16.msra.mxu0 %v1071
      %1075 = vmatprep.subr.bf16.mxu0 0
      %1076 = vmatpush1.bf16.msra.mxu0 0
      %1077 = vmatprep.subr.bf16.mxu0 0
      %1078 = vmatpush1.bf16.msra.mxu0 0
      %1079 = vmatprep.subr.bf16.mxu0 0
      %1080 = vmatpush1.bf16.msra.mxu0 0
      %1081 = vmatprep.subr.bf16.mxu0 0
      %1082 = vmatpush1.bf16.msra.mxu0 0
      %1083 = vmatprep.subr.bf16.mxu0 0
      %1084 = vmatpush1.bf16.msra.mxu0 0
      %1085 = vmatprep.subr.bf16.mxu0 0
      %1086 = vmatpush1.bf16.msra.mxu0 0
      %1087 = vmatprep.subr.bf16.mxu0 0
      %1088 = vmatpush1.bf16.msra.mxu0 0
      %1089 = vmatprep.subr.bf16.mxu0 0
      %1090 = vmatpush1.bf16.msra.mxu0 0
      %1091 = vmatprep.subr.bf16.mxu0 0
      %1092 = vmatpush1.bf16.msra.mxu0 0
      %1093 = vmatprep.subr.bf16.mxu0 0
      %1094 = vmatpush1.bf16.msra.mxu0 0
      %1095 = vmatprep.subr.bf16.mxu0 0
      %1096 = vmatpush1.bf16.msra.mxu0 0
      %1097 = vmatprep.subr.bf16.mxu0 0
      %1098 = vmatpush1.bf16.msra.mxu0 0
      %1099 = vmatprep.subr.bf16.mxu0 0
      %1100 = vmatpush1.bf16.msra.mxu0 0
      %1101 = vmatprep.subr.bf16.mxu0 0
      %1102 = vmatpush1.bf16.msra.mxu0 0
      %1103 = vmatprep.subr.bf16.mxu0 0
      %1104 = vmatpush1.bf16.msra.mxu0 0
      %1105 = vmatprep.mubr.bf16.mxu0 0
      %1106 = vmatmul.mubr.bf16.gmra.mrb[0].mxu0 %v1047
      %v1107 = vpop.f32.mrb[0].mxu0
      %v1108 = vadd.f32 %v984, %v1107
      %v1109 = vpop.f32.mrb[0].mxu0
      %v1110 = vpop.f32.mrb[0].mxu0
      %v1111 = vadd.f32 %v987, %v1110
      %v1112 = vpop.f32.mrb[0].mxu0
      %1113 = vmatprep.mubr.bf16.mxu0 0
      %1114 = vmatmul.mubr.bf16.gmra.mrb[0].mxu0 %v1050
      %v1115 = vpop.f32.mrb[0].mxu0
      %v1116 = vadd.f32 %v992, %v1115
      %v1117 = vpop.f32.mrb[0].mxu0
      %v1118 = vpop.f32.mrb[0].mxu0
      %v1119 = vadd.f32 %v995, %v1118
      %v1120 = vpop.f32.mrb[0].mxu0
      %1121 = vmatprep.mubr.bf16.mxu0 0
      %1122 = vmatmul.mubr.bf16.gmra.mrb[0].mxu0 %v1053
      %v1123 = vpop.f32.mrb[0].mxu0
      %v1124 = vadd.f32 %v1000, %v1123
      %v1125 = vpop.f32.mrb[0].mxu0
      %v1126 = vpop.f32.mrb[0].mxu0
      %v1127 = vadd.f32 %v1003, %v1126
      %v1128 = vpop.f32.mrb[0].mxu0
      %1129 = vmatprep.mubr.bf16.mxu0 0
      %1130 = vmatmul.mubr.bf16.gmra.mrb[0].mxu0 %v1056
      %v1131 = vpop.f32.mrb[0].mxu0
      %v1132 = vadd.f32 %v1008, %v1131
      %v1133 = vpop.f32.mrb[0].mxu0
      %v1134 = vpop.f32.mrb[0].mxu0
      %v1135 = vadd.f32 %v1011, %v1134
      %v1136 = vpop.f32.mrb[0].mxu0
      %1137 = vmatprep.mubr.bf16.mxu0 0
      %1138 = vmatmul.mubr.bf16.gmra.mrb[0].mxu0 %v1059
      %v1139 = vpop.f32.mrb[0].mxu0
      %v1140 = vadd.f32 %v1016, %v1139
      %v1141 = vpop.f32.mrb[0].mxu0
      %v1142 = vpop.f32.mrb[0].mxu0
      %v1143 = vadd.f32 %v1019, %v1142
      %v1144 = vpop.f32.mrb[0].mxu0
      %1145 = vmatprep.mubr.bf16.mxu0 0
      %1146 = vmatmul.mubr.bf16.gmra.mrb[0].mxu0 %v1062
      %v1147 = vpop.f32.mrb[0].mxu0
      %v1148 = vadd.f32 %v1024, %v1147
      %v1149 = vpop.f32.mrb[0].mxu0
      %v1150 = vpop.f32.mrb[0].mxu0
      %v1151 = vadd.f32 %v1027, %v1150
      %v1152 = vpop.f32.mrb[0].mxu0
      %1153 = vmatprep.mubr.bf16.mxu0 0
      %1154 = vmatmul.mubr.bf16.gmra.mrb[0].mxu0 %v1065
      %v1155 = vpop.f32.mrb[0].mxu0
      %v1156 = vadd.f32 %v1032, %v1155
      %v1157 = vpop.f32.mrb[0].mxu0
      %v1158 = vpop.f32.mrb[0].mxu0
      %v1159 = vadd.f32 %v1035, %v1158
      %v1160 = vpop.f32.mrb[0].mxu0
      %1161 = vmatprep.mubr.bf16.mxu0 0
      %1162 = vmatmul.mubr.bf16.gmra.mrb[0].mxu0 %v1068
      %v1163 = vpop.f32.mrb[0].mxu0
      %v1164 = vadd.f32 %v1040, %v1163
      %v1165 = vpop.f32.mrb[0].mxu0
      %v1166 = vpop.f32.mrb[0].mxu0
      %v1167 = vadd.f32 %v1043, %v1166
      %v1168 = vpop.f32.mrb[0].mxu0
      %1169 = vdwg.mxu0
      %v1170 = vld [vmem:[#allocation2 + $0x8] sm:$0xff]
      %v1171 = vld [vmem:[#allocation2 + $0x10] sm:$0xff]
      %v1172 = vld [vmem:[#allocation2 + $0x18] sm:$0xff]
      %v1173 = vld [vmem:[#allocation2 + $0x20] sm:$0xff]
      %v1174 = vld [vmem:[#allocation2 + $0x28] sm:$0xff]
      %v1175 = vld [vmem:[#allocation2 + $0x30] sm:$0xff]
      %v1176 = vld [vmem:[#allocation2 + $0x38] sm:$0xff]
      %v1177 = vld [vmem:[#allocation2 + $0x40] sm:$0xff]
      %s1178 = scalar_lea.vmem %s2, 4
      %v1179 = vld [vmem:[%s1178] sm:$0x3]
      %v1181 = vsel %vm366, %v1170, 0
      %v1184 = vsel %vm366, %v1171, 0
      %v1187 = vsel %vm366, %v1172, 0
      %v1190 = vsel %vm366, %v1173, 0
      %v1193 = vsel %vm366, %v1174, 0
      %v1196 = vsel %vm366, %v1175, 0
      %v1199 = vsel %vm366, %v1176, 0
      %v1202 = vsel %vm366, %v1177, 0
      %v1205 = vsel %vm945, %v1179, 0
      %1207 = vmatprep.subr.bf16.mxu0 0
      %1208 = vmatpush1.bf16.msra.mxu0 %v1205
      %1209 = vmatprep.subr.bf16.mxu0 0
      %1210 = vmatpush1.bf16.msra.mxu0 0
      %1211 = vmatprep.subr.bf16.mxu0 0
      %1212 = vmatpush1.bf16.msra.mxu0 0
      %1213 = vmatprep.subr.bf16.mxu0 0
      %1214 = vmatpush1.bf16.msra.mxu0 0
      %1215 = vmatprep.subr.bf16.mxu0 0
      %1216 = vmatpush1.bf16.msra.mxu0 0
      %1217 = vmatprep.subr.bf16.mxu0 0
      %1218 = vmatpush1.bf16.msra.mxu0 0
      %1219 = vmatprep.subr.bf16.mxu0 0
      %1220 = vmatpush1.bf16.msra.mxu0 0
      %1221 = vmatprep.subr.bf16.mxu0 0
      %1222 = vmatpush1.bf16.msra.mxu0 0
      %1223 = vmatprep.subr.bf16.mxu0 0
      %1224 = vmatpush1.bf16.msra.mxu0 0
      %1225 = vmatprep.subr.bf16.mxu0 0
      %1226 = vmatpush1.bf16.msra.mxu0 0
      %1227 = vmatprep.subr.bf16.mxu0 0
      %1228 = vmatpush1.bf16.msra.mxu0 0
      %1229 = vmatprep.subr.bf16.mxu0 0
      %1230 = vmatpush1.bf16.msra.mxu0 0
      %1231 = vmatprep.subr.bf16.mxu0 0
      %1232 = vmatpush1.bf16.msra.mxu0 0
      %1233 = vmatprep.subr.bf16.mxu0 0
      %1234 = vmatpush1.bf16.msra.mxu0 0
      %1235 = vmatprep.subr.bf16.mxu0 0
      %1236 = vmatpush1.bf16.msra.mxu0 0
      %1237 = vmatprep.subr.bf16.mxu0 0
      %1238 = vmatpush1.bf16.msra.mxu0 0
      %1239 = vmatprep.mubr.bf16.mxu0 0
      %1240 = vmatmul.mubr.bf16.gmra.mrb[0].mxu0 %v1181
      %v1241 = vpop.f32.mrb[0].mxu0
      %v1242 = vadd.f32 0.0, %v1241
      %v1243 = vpop.f32.mrb[0].mxu0
      %v1244 = vpop.f32.mrb[0].mxu0
      %v1245 = vadd.f32 0.0, %v1244
      %v1246 = vpop.f32.mrb[0].mxu0
      %1247 = vmatprep.mubr.bf16.mxu0 0
      %1248 = vmatmul.mubr.bf16.gmra.mrb[0].mxu0 %v1184
      %v1249 = vpop.f32.mrb[0].mxu0
      %v1250 = vadd.f32 0.0, %v1249
      %v1251 = vpop.f32.mrb[0].mxu0
      %v1252 = vpop.f32.mrb[0].mxu0
      %v1253 = vadd.f32 0.0, %v1252
      %v1254 = vpop.f32.mrb[0].mxu0
      %1255 = vmatprep.mubr.bf16.mxu0 0
      %1256 = vmatmul.mubr.bf16.gmra.mrb[0].mxu0 %v1187
      %v1257 = vpop.f32.mrb[0].mxu0
      %v1258 = vadd.f32 0.0, %v1257
      %v1259 = vpop.f32.mrb[0].mxu0
      %v1260 = vpop.f32.mrb[0].mxu0
      %v1261 = vadd.f32 0.0, %v1260
      %v1262 = vpop.f32.mrb[0].mxu0
      %1263 = vmatprep.mubr.bf16.mxu0 0
      %1264 = vmatmul.mubr.bf16.gmra.mrb[0].mxu0 %v1190
      %v1265 = vpop.f32.mrb[0].mxu0
      %v1266 = vadd.f32 0.0, %v1265
      %v1267 = vpop.f32.mrb[0].mxu0
      %v1268 = vpop.f32.mrb[0].mxu0
      %v1269 = vadd.f32 0.0, %v1268
      %v1270 = vpop.f32.mrb[0].mxu0
      %1271 = vmatprep.mubr.bf16.mxu0 0
      %1272 = vmatmul.mubr.bf16.gmra.mrb[0].mxu0 %v1193
      %v1273 = vpop.f32.mrb[0].mxu0
      %v1274 = vadd.f32 0.0, %v1273
      %v1275 = vpop.f32.mrb[0].mxu0
      %v1276 = vpop.f32.mrb[0].mxu0
      %v1277 = vadd.f32 0.0, %v1276
      %v1278 = vpop.f32.mrb[0].mxu0
      %1279 = vmatprep.mubr.bf16.mxu0 0
      %1280 = vmatmul.mubr.bf16.gmra.mrb[0].mxu0 %v1196
      %v1281 = vpop.f32.mrb[0].mxu0
      %v1282 = vadd.f32 0.0, %v1281
      %v1283 = vpop.f32.mrb[0].mxu0
      %v1284 = vpop.f32.mrb[0].mxu0
      %v1285 = vadd.f32 0.0, %v1284
      %v1286 = vpop.f32.mrb[0].mxu0
      %1287 = vmatprep.mubr.bf16.mxu0 0
      %1288 = vmatmul.mubr.bf16.gmra.mrb[0].mxu0 %v1199
      %v1289 = vpop.f32.mrb[0].mxu0
      %v1290 = vadd.f32 0.0, %v1289
      %v1291 = vpop.f32.mrb[0].mxu0
      %v1292 = vpop.f32.mrb[0].mxu0
      %v1293 = vadd.f32 0.0, %v1292
      %v1294 = vpop.f32.mrb[0].mxu0
      %1295 = vmatprep.mubr.bf16.mxu0 0
      %1296 = vmatmul.mubr.bf16.gmra.mrb[0].mxu0 %v1202
      %v1297 = vpop.f32.mrb[0].mxu0
      %v1298 = vadd.f32 0.0, %v1297
      %v1299 = vpop.f32.mrb[0].mxu0
      %v1300 = vpop.f32.mrb[0].mxu0
      %v1301 = vadd.f32 0.0, %v1300
      %v1302 = vpop.f32.mrb[0].mxu0
      %1303 = vdwg.mxu0
      %v1304 = vadd.f32 %v1108, %v1242
      %v1305 = vadd.f32 %v1111, %v1245
      %v1306 = vadd.f32 %v1116, %v1250
      %v1307 = vadd.f32 %v1119, %v1253
      %v1308 = vadd.f32 %v1124, %v1258
      %v1309 = vadd.f32 %v1127, %v1261
      %v1310 = vadd.f32 %v1132, %v1266
      %v1311 = vadd.f32 %v1135, %v1269
      %v1312 = vadd.f32 %v1140, %v1274
      %v1313 = vadd.f32 %v1143, %v1277
      %v1314 = vadd.f32 %v1148, %v1282
      %v1315 = vadd.f32 %v1151, %v1285
      %v1316 = vadd.f32 %v1156, %v1290
      %v1317 = vadd.f32 %v1159, %v1293
      %v1318 = vadd.f32 %v1164, %v1298
      %v1319 = vadd.f32 %v1167, %v1301
      %v1320 = vld [vmem:[%s644 + $0x8] sm:$0xff]
      %v1321 = vld [vmem:[%s644 + $0x10] sm:$0xff]
      %v1322 = vld [vmem:[%s644 + $0x18] sm:$0xff]
      %v1323 = vld [vmem:[%s644 + $0x20] sm:$0xff]
      %v1324 = vld [vmem:[%s644 + $0x28] sm:$0xff]
      %v1325 = vld [vmem:[%s644 + $0x30] sm:$0xff]
      %v1326 = vld [vmem:[%s644 + $0x38] sm:$0xff]
      %v1327 = vld [vmem:[%s644 + $0x40] sm:$0xff]
      %s1328 = scalar_lea.vmem %s2, 6
      %v1329 = vld [vmem:[%s1328] sm:$0x3]
      %v1331 = vsel %vm366, %v1320, 0
      %v1334 = vsel %vm366, %v1321, 0
      %v1337 = vsel %vm366, %v1322, 0
      %v1340 = vsel %vm366, %v1323, 0
      %v1343 = vsel %vm366, %v1324, 0
      %v1346 = vsel %vm366, %v1325, 0
      %v1349 = vsel %vm366, %v1326, 0
      %v1352 = vsel %vm366, %v1327, 0
      %v1355 = vsel %vm945, %v1329, 0
      %1357 = vmatprep.subr.bf16.mxu0 0
      %1358 = vmatpush1.bf16.msra.mxu0 %v1355
      %1359 = vmatprep.subr.bf16.mxu0 0
      %1360 = vmatpush1.bf16.msra.mxu0 0
      %1361 = vmatprep.subr.bf16.mxu0 0
      %1362 = vmatpush1.bf16.msra.mxu0 0
      %1363 = vmatprep.subr.bf16.mxu0 0
      %1364 = vmatpush1.bf16.msra.mxu0 0
      %1365 = vmatprep.subr.bf16.mxu0 0
      %1366 = vmatpush1.bf16.msra.mxu0 0
      %1367 = vmatprep.subr.bf16.mxu0 0
      %1368 = vmatpush1.bf16.msra.mxu0 0
      %1369 = vmatprep.subr.bf16.mxu0 0
      %1370 = vmatpush1.bf16.msra.mxu0 0
      %1371 = vmatprep.subr.bf16.mxu0 0
      %1372 = vmatpush1.bf16.msra.mxu0 0
      %1373 = vmatprep.subr.bf16.mxu0 0
      %1374 = vmatpush1.bf16.msra.mxu0 0
      %1375 = vmatprep.subr.bf16.mxu0 0
      %1376 = vmatpush1.bf16.msra.mxu0 0
      %1377 = vmatprep.subr.bf16.mxu0 0
      %1378 = vmatpush1.bf16.msra.mxu0 0
      %1379 = vmatprep.subr.bf16.mxu0 0
      %1380 = vmatpush1.bf16.msra.mxu0 0
      %1381 = vmatprep.subr.bf16.mxu0 0
      %1382 = vmatpush1.bf16.msra.mxu0 0
      %1383 = vmatprep.subr.bf16.mxu0 0
      %1384 = vmatpush1.bf16.msra.mxu0 0
      %1385 = vmatprep.subr.bf16.mxu0 0
      %1386 = vmatpush1.bf16.msra.mxu0 0
      %1387 = vmatprep.subr.bf16.mxu0 0
      %1388 = vmatpush1.bf16.msra.mxu0 0
      %1389 = vmatprep.mubr.bf16.mxu0 0
      %1390 = vmatmul.mubr.bf16.gmra.mrb[0].mxu0 %v1331
      %v1391 = vpop.f32.mrb[0].mxu0
      %v1392 = vadd.f32 0.0, %v1391
      %v1393 = vpop.f32.mrb[0].mxu0
      %v1394 = vpop.f32.mrb[0].mxu0
      %v1395 = vadd.f32 0.0, %v1394
      %v1396 = vpop.f32.mrb[0].mxu0
      %1397 = vmatprep.mubr.bf16.mxu0 0
      %1398 = vmatmul.mubr.bf16.gmra.mrb[0].mxu0 %v1334
      %v1399 = vpop.f32.mrb[0].mxu0
      %v1400 = vadd.f32 0.0, %v1399
      %v1401 = vpop.f32.mrb[0].mxu0
      %v1402 = vpop.f32.mrb[0].mxu0
      %v1403 = vadd.f32 0.0, %v1402
      %v1404 = vpop.f32.mrb[0].mxu0
      %1405 = vmatprep.mubr.bf16.mxu0 0
      %1406 = vmatmul.mubr.bf16.gmra.mrb[0].mxu0 %v1337
      %v1407 = vpop.f32.mrb[0].mxu0
      %v1408 = vadd.f32 0.0, %v1407
      %v1409 = vpop.f32.mrb[0].mxu0
      %v1410 = vpop.f32.mrb[0].mxu0
      %v1411 = vadd.f32 0.0, %v1410
      %v1412 = vpop.f32.mrb[0].mxu0
      %1413 = vmatprep.mubr.bf16.mxu0 0
      %1414 = vmatmul.mubr.bf16.gmra.mrb[0].mxu0 %v1340
      %v1415 = vpop.f32.mrb[0].mxu0
      %v1416 = vadd.f32 0.0, %v1415
      %v1417 = vpop.f32.mrb[0].mxu0
      %v1418 = vpop.f32.mrb[0].mxu0
      %v1419 = vadd.f32 0.0, %v1418
      %v1420 = vpop.f32.mrb[0].mxu0
      %1421 = vmatprep.mubr.bf16.mxu0 0
      %1422 = vmatmul.mubr.bf16.gmra.mrb[0].mxu0 %v1343
      %v1423 = vpop.f32.mrb[0].mxu0
      %v1424 = vadd.f32 0.0, %v1423
      %v1425 = vpop.f32.mrb[0].mxu0
      %v1426 = vpop.f32.mrb[0].mxu0
      %v1427 = vadd.f32 0.0, %v1426
      %v1428 = vpop.f32.mrb[0].mxu0
      %1429 = vmatprep.mubr.bf16.mxu0 0
      %1430 = vmatmul.mubr.bf16.gmra.mrb[0].mxu0 %v1346
      %v1431 = vpop.f32.mrb[0].mxu0
      %v1432 = vadd.f32 0.0, %v1431
      %v1433 = vpop.f32.mrb[0].mxu0
      %v1434 = vpop.f32.mrb[0].mxu0
      %v1435 = vadd.f32 0.0, %v1434
      %v1436 = vpop.f32.mrb[0].mxu0
      %1437 = vmatprep.mubr.bf16.mxu0 0
      %1438 = vmatmul.mubr.bf16.gmra.mrb[0].mxu0 %v1349
      %v1439 = vpop.f32.mrb[0].mxu0
      %v1440 = vadd.f32 0.0, %v1439
      %v1441 = vpop.f32.mrb[0].mxu0
      %v1442 = vpop.f32.mrb[0].mxu0
      %v1443 = vadd.f32 0.0, %v1442
      %v1444 = vpop.f32.mrb[0].mxu0
      %1445 = vmatprep.mubr.bf16.mxu0 0
      %1446 = vmatmul.mubr.bf16.gmra.mrb[0].mxu0 %v1352
      %v1447 = vpop.f32.mrb[0].mxu0
      %v1448 = vadd.f32 0.0, %v1447
      %v1449 = vpop.f32.mrb[0].mxu0
      %v1450 = vpop.f32.mrb[0].mxu0
      %v1451 = vadd.f32 0.0, %v1450
      %v1452 = vpop.f32.mrb[0].mxu0
      %1453 = vdwg.mxu0
      %v1454 = vadd.f32 %v1304, %v1392
      %v1455 = vadd.f32 %v1305, %v1395
      %v1456 = vadd.f32 %v1306, %v1400
      %v1457 = vadd.f32 %v1307, %v1403
      %v1458 = vadd.f32 %v1308, %v1408
      %v1459 = vadd.f32 %v1309, %v1411
      %v1460 = vadd.f32 %v1310, %v1416
      %v1461 = vadd.f32 %v1311, %v1419
      %v1462 = vadd.f32 %v1312, %v1424
      %v1463 = vadd.f32 %v1313, %v1427
      %v1464 = vadd.f32 %v1314, %v1432
      %v1465 = vadd.f32 %v1315, %v1435
      %v1466 = vadd.f32 %v1316, %v1440
      %v1467 = vadd.f32 %v1317, %v1443
      %v1468 = vadd.f32 %v1318, %v1448
      %v1469 = vadd.f32 %v1319, %v1451
      %s1470 = scalar_lea.vmem %s2, 8
      %v1471 = vld [vmem:[%s1470] sm:$0x3]
      %v1472 = vld [vmem:[%s856] sm:$0xff]
      %v1473 = vld [vmem:[%s856 + $0x8] sm:$0xff]
      %v1474 = vld [vmem:[%s856 + $0x10] sm:$0xff]
      %v1475 = vld [vmem:[%s856 + $0x18] sm:$0xff]
      %v1476 = vld [vmem:[%s856 + $0x20] sm:$0xff]
      %v1477 = vld [vmem:[%s856 + $0x28] sm:$0xff]
      %v1478 = vld [vmem:[%s856 + $0x30] sm:$0xff]
      %v1479 = vld [vmem:[%s856 + $0x38] sm:$0xff]
      %s1480 = scalar_lea.vmem %s2, 10
      %v1481 = vld [vmem:[%s1480] sm:$0x3]
      %v1483 = vsel %vm366, %v1472, 0
      %v1486 = vsel %vm366, %v1473, 0
      %v1489 = vsel %vm366, %v1474, 0
      %v1492 = vsel %vm366, %v1475, 0
      %v1495 = vsel %vm366, %v1476, 0
      %v1498 = vsel %vm366, %v1477, 0
      %v1501 = vsel %vm366, %v1478, 0
      %v1504 = vsel %vm366, %v1479, 0
      %v1507 = vsel %vm945, %v1481, 0
      %1509 = vmatprep.subr.bf16.mxu0 0
      %1510 = vmatpush1.bf16.msra.mxu0 %v1507
      %1511 = vmatprep.subr.bf16.mxu0 0
      %1512 = vmatpush1.bf16.msra.mxu0 0
      %1513 = vmatprep.subr.bf16.mxu0 0
      %1514 = vmatpush1.bf16.msra.mxu0 0
      %1515 = vmatprep.subr.bf16.mxu0 0
      %1516 = vmatpush1.bf16.msra.mxu0 0
      %1517 = vmatprep.subr.bf16.mxu0 0
      %1518 = vmatpush1.bf16.msra.mxu0 0
      %1519 = vmatprep.subr.bf16.mxu0 0
      %1520 = vmatpush1.bf16.msra.mxu0 0
      %1521 = vmatprep.subr.bf16.mxu0 0
      %1522 = vmatpush1.bf16.msra.mxu0 0
      %1523 = vmatprep.subr.bf16.mxu0 0
      %1524 = vmatpush1.bf16.msra.mxu0 0
      %1525 = vmatprep.subr.bf16.mxu0 0
      %1526 = vmatpush1.bf16.msra.mxu0 0
      %1527 = vmatprep.subr.bf16.mxu0 0
      %1528 = vmatpush1.bf16.msra.mxu0 0
      %1529 = vmatprep.subr.bf16.mxu0 0
      %1530 = vmatpush1.bf16.msra.mxu0 0
      %1531 = vmatprep.subr.bf16.mxu0 0
      %1532 = vmatpush1.bf16.msra.mxu0 0
      %1533 = vmatprep.subr.bf16.mxu0 0
      %1534 = vmatpush1.bf16.msra.mxu0 0
      %1535 = vmatprep.subr.bf16.mxu0 0
      %1536 = vmatpush1.bf16.msra.mxu0 0
      %1537 = vmatprep.subr.bf16.mxu0 0
      %1538 = vmatpush1.bf16.msra.mxu0 0
      %1539 = vmatprep.subr.bf16.mxu0 0
      %1540 = vmatpush1.bf16.msra.mxu0 0
      %1541 = vmatprep.mubr.bf16.mxu0 0
      %1542 = vmatmul.mubr.bf16.gmra.mrb[0].mxu0 %v1483
      %v1543 = vpop.f32.mrb[0].mxu0
      %v1544 = vadd.f32 0.0, %v1543
      %v1545 = vpop.f32.mrb[0].mxu0
      %v1546 = vpop.f32.mrb[0].mxu0
      %v1547 = vadd.f32 0.0, %v1546
      %v1548 = vpop.f32.mrb[0].mxu0
      %1549 = vmatprep.mubr.bf16.mxu0 0
      %1550 = vmatmul.mubr.bf16.gmra.mrb[0].mxu0 %v1486
      %v1551 = vpop.f32.mrb[0].mxu0
      %v1552 = vadd.f32 0.0, %v1551
      %v1553 = vpop.f32.mrb[0].mxu0
      %v1554 = vpop.f32.mrb[0].mxu0
      %v1555 = vadd.f32 0.0, %v1554
      %v1556 = vpop.f32.mrb[0].mxu0
      %1557 = vmatprep.mubr.bf16.mxu0 0
      %1558 = vmatmul.mubr.bf16.gmra.mrb[0].mxu0 %v1489
      %v1559 = vpop.f32.mrb[0].mxu0
      %v1560 = vadd.f32 0.0, %v1559
      %v1561 = vpop.f32.mrb[0].mxu0
      %v1562 = vpop.f32.mrb[0].mxu0
      %v1563 = vadd.f32 0.0, %v1562
      %v1564 = vpop.f32.mrb[0].mxu0
      %1565 = vmatprep.mubr.bf16.mxu0 0
      %1566 = vmatmul.mubr.bf16.gmra.mrb[0].mxu0 %v1492
      %v1567 = vpop.f32.mrb[0].mxu0
      %v1568 = vadd.f32 0.0, %v1567
      %v1569 = vpop.f32.mrb[0].mxu0
      %v1570 = vpop.f32.mrb[0].mxu0
      %v1571 = vadd.f32 0.0, %v1570
      %v1572 = vpop.f32.mrb[0].mxu0
      %1573 = vmatprep.mubr.bf16.mxu0 0
      %1574 = vmatmul.mubr.bf16.gmra.mrb[0].mxu0 %v1495
      %v1575 = vpop.f32.mrb[0].mxu0
      %v1576 = vadd.f32 0.0, %v1575
      %v1577 = vpop.f32.mrb[0].mxu0
      %v1578 = vpop.f32.mrb[0].mxu0
      %v1579 = vadd.f32 0.0, %v1578
      %v1580 = vpop.f32.mrb[0].mxu0
      %1581 = vmatprep.mubr.bf16.mxu0 0
      %1582 = vmatmul.mubr.bf16.gmra.mrb[0].mxu0 %v1498
      %v1583 = vpop.f32.mrb[0].mxu0
      %v1584 = vadd.f32 0.0, %v1583
      %v1585 = vpop.f32.mrb[0].mxu0
      %v1586 = vpop.f32.mrb[0].mxu0
      %v1587 = vadd.f32 0.0, %v1586
      %v1588 = vpop.f32.mrb[0].mxu0
      %1589 = vmatprep.mubr.bf16.mxu0 0
      %1590 = vmatmul.mubr.bf16.gmra.mrb[0].mxu0 %v1501
      %v1591 = vpop.f32.mrb[0].mxu0
      %v1592 = vadd.f32 0.0, %v1591
      %v1593 = vpop.f32.mrb[0].mxu0
      %v1594 = vpop.f32.mrb[0].mxu0
      %v1595 = vadd.f32 0.0, %v1594
      %v1596 = vpop.f32.mrb[0].mxu0
      %1597 = vmatprep.mubr.bf16.mxu0 0
      %1598 = vmatmul.mubr.bf16.gmra.mrb[0].mxu0 %v1504
      %v1599 = vpop.f32.mrb[0].mxu0
      %v1600 = vadd.f32 0.0, %v1599
      %v1601 = vpop.f32.mrb[0].mxu0
      %v1602 = vpop.f32.mrb[0].mxu0
      %v1603 = vadd.f32 0.0, %v1602
      %v1604 = vpop.f32.mrb[0].mxu0
      %1605 = vdwg.mxu0
      %v1607 = vsel %vm945, %v1471, 0
      %1609 = vmatprep.subr.bf16.mxu0 0
      %1610 = vmatpush1.bf16.msra.mxu0 %v1607
      %1611 = vmatprep.subr.bf16.mxu0 0
      %1612 = vmatpush1.bf16.msra.mxu0 0
      %1613 = vmatprep.subr.bf16.mxu0 0
      %1614 = vmatpush1.bf16.msra.mxu0 0
      %1615 = vmatprep.subr.bf16.mxu0 0
      %1616 = vmatpush1.bf16.msra.mxu0 0
      %1617 = vmatprep.subr.bf16.mxu0 0
      %1618 = vmatpush1.bf16.msra.mxu0 0
      %1619 = vmatprep.subr.bf16.mxu0 0
      %1620 = vmatpush1.bf16.msra.mxu0 0
      %1621 = vmatprep.subr.bf16.mxu0 0
      %1622 = vmatpush1.bf16.msra.mxu0 0
      %1623 = vmatprep.subr.bf16.mxu0 0
      %1624 = vmatpush1.bf16.msra.mxu0 0
      %1625 = vmatprep.subr.bf16.mxu0 0
      %1626 = vmatpush1.bf16.msra.mxu0 0
      %1627 = vmatprep.subr.bf16.mxu0 0
      %1628 = vmatpush1.bf16.msra.mxu0 0
      %1629 = vmatprep.subr.bf16.mxu0 0
      %1630 = vmatpush1.bf16.msra.mxu0 0
      %1631 = vmatprep.subr.bf16.mxu0 0
      %1632 = vmatpush1.bf16.msra.mxu0 0
      %1633 = vmatprep.subr.bf16.mxu0 0
      %1634 = vmatpush1.bf16.msra.mxu0 0
      %1635 = vmatprep.subr.bf16.mxu0 0
      %1636 = vmatpush1.bf16.msra.mxu0 0
      %1637 = vmatprep.subr.bf16.mxu0 0
      %1638 = vmatpush1.bf16.msra.mxu0 0
      %1639 = vmatprep.subr.bf16.mxu0 0
      %1640 = vmatpush1.bf16.msra.mxu0 0
      %1641 = vmatprep.mubr.bf16.mxu0 0
      %1642 = vmatmul.mubr.bf16.gmra.mrb[0].mxu0 %v922
      %v1643 = vpop.f32.mrb[0].mxu0
      %v1644 = vadd.f32 %v1544, %v1643
      %v1645 = vpop.f32.mrb[0].mxu0
      %v1646 = vpop.f32.mrb[0].mxu0
      %v1647 = vadd.f32 %v1547, %v1646
      %v1648 = vpop.f32.mrb[0].mxu0
      %1649 = vmatprep.mubr.bf16.mxu0 0
      %1650 = vmatmul.mubr.bf16.gmra.mrb[0].mxu0 %v925
      %v1651 = vpop.f32.mrb[0].mxu0
      %v1652 = vadd.f32 %v1552, %v1651
      %v1653 = vpop.f32.mrb[0].mxu0
      %v1654 = vpop.f32.mrb[0].mxu0
      %v1655 = vadd.f32 %v1555, %v1654
      %v1656 = vpop.f32.mrb[0].mxu0
      %1657 = vmatprep.mubr.bf16.mxu0 0
      %1658 = vmatmul.mubr.bf16.gmra.mrb[0].mxu0 %v928
      %v1659 = vpop.f32.mrb[0].mxu0
      %v1660 = vadd.f32 %v1560, %v1659
      %v1661 = vpop.f32.mrb[0].mxu0
      %v1662 = vpop.f32.mrb[0].mxu0
      %v1663 = vadd.f32 %v1563, %v1662
      %v1664 = vpop.f32.mrb[0].mxu0
      %1665 = vmatprep.mubr.bf16.mxu0 0
      %1666 = vmatmul.mubr.bf16.gmra.mrb[0].mxu0 %v931
      %v1667 = vpop.f32.mrb[0].mxu0
      %v1668 = vadd.f32 %v1568, %v1667
      %v1669 = vpop.f32.mrb[0].mxu0
      %v1670 = vpop.f32.mrb[0].mxu0
      %v1671 = vadd.f32 %v1571, %v1670
      %v1672 = vpop.f32.mrb[0].mxu0
      %1673 = vmatprep.mubr.bf16.mxu0 0
      %1674 = vmatmul.mubr.bf16.gmra.mrb[0].mxu0 %v934
      %v1675 = vpop.f32.mrb[0].mxu0
      %v1676 = vadd.f32 %v1576, %v1675
      %v1677 = vpop.f32.mrb[0].mxu0
      %v1678 = vpop.f32.mrb[0].mxu0
      %v1679 = vadd.f32 %v1579, %v1678
      %v1680 = vpop.f32.mrb[0].mxu0
      %1681 = vmatprep.mubr.bf16.mxu0 0
      %1682 = vmatmul.mubr.bf16.gmra.mrb[0].mxu0 %v937
      %v1683 = vpop.f32.mrb[0].mxu0
      %v1684 = vadd.f32 %v1584, %v1683
      %v1685 = vpop.f32.mrb[0].mxu0
      %v1686 = vpop.f32.mrb[0].mxu0
      %v1687 = vadd.f32 %v1587, %v1686
      %v1688 = vpop.f32.mrb[0].mxu0
      %1689 = vmatprep.mubr.bf16.mxu0 0
      %1690 = vmatmul.mubr.bf16.gmra.mrb[0].mxu0 %v940
      %v1691 = vpop.f32.mrb[0].mxu0
      %v1692 = vadd.f32 %v1592, %v1691
      %v1693 = vpop.f32.mrb[0].mxu0
      %v1694 = vpop.f32.mrb[0].mxu0
      %v1695 = vadd.f32 %v1595, %v1694
      %v1696 = vpop.f32.mrb[0].mxu0
      %1697 = vmatprep.mubr.bf16.mxu0 0
      %1698 = vmatmul.mubr.bf16.gmra.mrb[0].mxu0 %v943
      %v1699 = vpop.f32.mrb[0].mxu0
      %v1700 = vadd.f32 %v1600, %v1699
      %v1701 = vpop.f32.mrb[0].mxu0
      %v1702 = vpop.f32.mrb[0].mxu0
      %v1703 = vadd.f32 %v1603, %v1702
      %v1704 = vpop.f32.mrb[0].mxu0
      %1705 = vdwg.mxu0
      %s1706 = scalar_lea.vmem %s2, 12
      %v1707 = vld [vmem:[%s1706] sm:$0x3]
      %v1709 = vsel %vm945, %v1707, 0
      %1711 = vmatprep.subr.bf16.mxu0 0
      %1712 = vmatpush1.bf16.msra.mxu0 %v1709
      %1713 = vmatprep.subr.bf16.mxu0 0
      %1714 = vmatpush1.bf16.msra.mxu0 0
      %1715 = vmatprep.subr.bf16.mxu0 0
      %1716 = vmatpush1.bf16.msra.mxu0 0
      %1717 = vmatprep.subr.bf16.mxu0 0
      %1718 = vmatpush1.bf16.msra.mxu0 0
      %1719 = vmatprep.subr.bf16.mxu0 0
      %1720 = vmatpush1.bf16.msra.mxu0 0
      %1721 = vmatprep.subr.bf16.mxu0 0
      %1722 = vmatpush1.bf16.msra.mxu0 0
      %1723 = vmatprep.subr.bf16.mxu0 0
      %1724 = vmatpush1.bf16.msra.mxu0 0
      %1725 = vmatprep.subr.bf16.mxu0 0
      %1726 = vmatpush1.bf16.msra.mxu0 0
      %1727 = vmatprep.subr.bf16.mxu0 0
      %1728 = vmatpush1.bf16.msra.mxu0 0
      %1729 = vmatprep.subr.bf16.mxu0 0
      %1730 = vmatpush1.bf16.msra.mxu0 0
      %1731 = vmatprep.subr.bf16.mxu0 0
      %1732 = vmatpush1.bf16.msra.mxu0 0
      %1733 = vmatprep.subr.bf16.mxu0 0
      %1734 = vmatpush1.bf16.msra.mxu0 0
      %1735 = vmatprep.subr.bf16.mxu0 0
      %1736 = vmatpush1.bf16.msra.mxu0 0
      %1737 = vmatprep.subr.bf16.mxu0 0
      %1738 = vmatpush1.bf16.msra.mxu0 0
      %1739 = vmatprep.subr.bf16.mxu0 0
      %1740 = vmatpush1.bf16.msra.mxu0 0
      %1741 = vmatprep.subr.bf16.mxu0 0
      %1742 = vmatpush1.bf16.msra.mxu0 0
      %1743 = vmatprep.mubr.bf16.mxu0 0
      %1744 = vmatmul.mubr.bf16.gmra.mrb[0].mxu0 %v1331
      %v1745 = vpop.f32.mrb[0].mxu0
      %v1746 = vadd.f32 0.0, %v1745
      %v1747 = vpop.f32.mrb[0].mxu0
      %v1748 = vpop.f32.mrb[0].mxu0
      %v1749 = vadd.f32 0.0, %v1748
      %v1750 = vpop.f32.mrb[0].mxu0
      %1751 = vmatprep.mubr.bf16.mxu0 0
      %1752 = vmatmul.mubr.bf16.gmra.mrb[0].mxu0 %v1334
      %v1753 = vpop.f32.mrb[0].mxu0
      %v1754 = vadd.f32 0.0, %v1753
      %v1755 = vpop.f32.mrb[0].mxu0
      %v1756 = vpop.f32.mrb[0].mxu0
      %v1757 = vadd.f32 0.0, %v1756
      %v1758 = vpop.f32.mrb[0].mxu0
      %1759 = vmatprep.mubr.bf16.mxu0 0
      %1760 = vmatmul.mubr.bf16.gmra.mrb[0].mxu0 %v1337
      %v1761 = vpop.f32.mrb[0].mxu0
      %v1762 = vadd.f32 0.0, %v1761
      %v1763 = vpop.f32.mrb[0].mxu0
      %v1764 = vpop.f32.mrb[0].mxu0
      %v1765 = vadd.f32 0.0, %v1764
      %v1766 = vpop.f32.mrb[0].mxu0
      %1767 = vmatprep.mubr.bf16.mxu0 0
      %1768 = vmatmul.mubr.bf16.gmra.mrb[0].mxu0 %v1340
      %v1769 = vpop.f32.mrb[0].mxu0
      %v1770 = vadd.f32 0.0, %v1769
      %v1771 = vpop.f32.mrb[0].mxu0
      %v1772 = vpop.f32.mrb[0].mxu0
      %v1773 = vadd.f32 0.0, %v1772
      %v1774 = vpop.f32.mrb[0].mxu0
      %1775 = vmatprep.mubr.bf16.mxu0 0
      %1776 = vmatmul.mubr.bf16.gmra.mrb[0].mxu0 %v1343
      %v1777 = vpop.f32.mrb[0].mxu0
      %v1778 = vadd.f32 0.0, %v1777
      %v1779 = vpop.f32.mrb[0].mxu0
      %v1780 = vpop.f32.mrb[0].mxu0
      %v1781 = vadd.f32 0.0, %v1780
      %v1782 = vpop.f32.mrb[0].mxu0
      %1783 = vmatprep.mubr.bf16.mxu0 0
      %1784 = vmatmul.mubr.bf16.gmra.mrb[0].mxu0 %v1346
      %v1785 = vpop.f32.mrb[0].mxu0
      %v1786 = vadd.f32 0.0, %v1785
      %v1787 = vpop.f32.mrb[0].mxu0
      %v1788 = vpop.f32.mrb[0].mxu0
      %v1789 = vadd.f32 0.0, %v1788
      %v1790 = vpop.f32.mrb[0].mxu0
      %1791 = vmatprep.mubr.bf16.mxu0 0
      %1792 = vmatmul.mubr.bf16.gmra.mrb[0].mxu0 %v1349
      %v1793 = vpop.f32.mrb[0].mxu0
      %v1794 = vadd.f32 0.0, %v1793
      %v1795 = vpop.f32.mrb[0].mxu0
      %v1796 = vpop.f32.mrb[0].mxu0
      %v1797 = vadd.f32 0.0, %v1796
      %v1798 = vpop.f32.mrb[0].mxu0
      %1799 = vmatprep.mubr.bf16.mxu0 0
      %1800 = vmatmul.mubr.bf16.gmra.mrb[0].mxu0 %v1352
      %v1801 = vpop.f32.mrb[0].mxu0
      %v1802 = vadd.f32 0.0, %v1801
      %v1803 = vpop.f32.mrb[0].mxu0
      %v1804 = vpop.f32.mrb[0].mxu0
      %v1805 = vadd.f32 0.0, %v1804
      %v1806 = vpop.f32.mrb[0].mxu0
      %1807 = vdwg.mxu0
      %v1808 = vadd.f32 %v1644, %v1746
      %v1809 = vadd.f32 %v1647, %v1749
      %v1810 = vadd.f32 %v1652, %v1754
      %v1811 = vadd.f32 %v1655, %v1757
      %v1812 = vadd.f32 %v1660, %v1762
      %v1813 = vadd.f32 %v1663, %v1765
      %v1814 = vadd.f32 %v1668, %v1770
      %v1815 = vadd.f32 %v1671, %v1773
      %v1816 = vadd.f32 %v1676, %v1778
      %v1817 = vadd.f32 %v1679, %v1781
      %v1818 = vadd.f32 %v1684, %v1786
      %v1819 = vadd.f32 %v1687, %v1789
      %v1820 = vadd.f32 %v1692, %v1794
      %v1821 = vadd.f32 %v1695, %v1797
      %v1822 = vadd.f32 %v1700, %v1802
      %v1823 = vadd.f32 %v1703, %v1805
      %v1824 = vld [vmem:[%s856 + $0x8] sm:$0xff]
      %v1825 = vld [vmem:[%s856 + $0x10] sm:$0xff]
      %v1826 = vld [vmem:[%s856 + $0x18] sm:$0xff]
      %v1827 = vld [vmem:[%s856 + $0x20] sm:$0xff]
      %v1828 = vld [vmem:[%s856 + $0x28] sm:$0xff]
      %v1829 = vld [vmem:[%s856 + $0x30] sm:$0xff]
      %v1830 = vld [vmem:[%s856 + $0x38] sm:$0xff]
      %v1831 = vld [vmem:[%s856 + $0x40] sm:$0xff]
      %s1832 = scalar_lea.vmem %s2, 14
      %v1833 = vld [vmem:[%s1832] sm:$0x3]
      %v1835 = vsel %vm366, %v1824, 0
      %v1838 = vsel %vm366, %v1825, 0
      %v1841 = vsel %vm366, %v1826, 0
      %v1844 = vsel %vm366, %v1827, 0
      %v1847 = vsel %vm366, %v1828, 0
      %v1850 = vsel %vm366, %v1829, 0
      %v1853 = vsel %vm366, %v1830, 0
      %v1856 = vsel %vm366, %v1831, 0
      %v1859 = vsel %vm945, %v1833, 0
      %1861 = vmatprep.subr.bf16.mxu0 0
      %1862 = vmatpush1.bf16.msra.mxu0 %v1859
      %1863 = vmatprep.subr.bf16.mxu0 0
      %1864 = vmatpush1.bf16.msra.mxu0 0
      %1865 = vmatprep.subr.bf16.mxu0 0
      %1866 = vmatpush1.bf16.msra.mxu0 0
      %1867 = vmatprep.subr.bf16.mxu0 0
      %1868 = vmatpush1.bf16.msra.mxu0 0
      %1869 = vmatprep.subr.bf16.mxu0 0
      %1870 = vmatpush1.bf16.msra.mxu0 0
      %1871 = vmatprep.subr.bf16.mxu0 0
      %1872 = vmatpush1.bf16.msra.mxu0 0
      %1873 = vmatprep.subr.bf16.mxu0 0
      %1874 = vmatpush1.bf16.msra.mxu0 0
      %1875 = vmatprep.subr.bf16.mxu0 0
      %1876 = vmatpush1.bf16.msra.mxu0 0
      %1877 = vmatprep.subr.bf16.mxu0 0
      %1878 = vmatpush1.bf16.msra.mxu0 0
      %1879 = vmatprep.subr.bf16.mxu0 0
      %1880 = vmatpush1.bf16.msra.mxu0 0
      %1881 = vmatprep.subr.bf16.mxu0 0
      %1882 = vmatpush1.bf16.msra.mxu0 0
      %1883 = vmatprep.subr.bf16.mxu0 0
      %1884 = vmatpush1.bf16.msra.mxu0 0
      %1885 = vmatprep.subr.bf16.mxu0 0
      %1886 = vmatpush1.bf16.msra.mxu0 0
      %1887 = vmatprep.subr.bf16.mxu0 0
      %1888 = vmatpush1.bf16.msra.mxu0 0
      %1889 = vmatprep.subr.bf16.mxu0 0
      %1890 = vmatpush1.bf16.msra.mxu0 0
      %1891 = vmatprep.subr.bf16.mxu0 0
      %1892 = vmatpush1.bf16.msra.mxu0 0
      %1893 = vmatprep.mubr.bf16.mxu0 0
      %1894 = vmatmul.mubr.bf16.gmra.mrb[0].mxu0 %v1835
      %v1895 = vpop.f32.mrb[0].mxu0
      %v1896 = vadd.f32 0.0, %v1895
      %v1897 = vpop.f32.mrb[0].mxu0
      %v1898 = vpop.f32.mrb[0].mxu0
      %v1899 = vadd.f32 0.0, %v1898
      %v1900 = vpop.f32.mrb[0].mxu0
      %1901 = vmatprep.mubr.bf16.mxu0 0
      %1902 = vmatmul.mubr.bf16.gmra.mrb[0].mxu0 %v1838
      %v1903 = vpop.f32.mrb[0].mxu0
      %v1904 = vadd.f32 0.0, %v1903
      %v1905 = vpop.f32.mrb[0].mxu0
      %v1906 = vpop.f32.mrb[0].mxu0
      %v1907 = vadd.f32 0.0, %v1906
      %v1908 = vpop.f32.mrb[0].mxu0
      %1909 = vmatprep.mubr.bf16.mxu0 0
      %1910 = vmatmul.mubr.bf16.gmra.mrb[0].mxu0 %v1841
      %v1911 = vpop.f32.mrb[0].mxu0
      %v1912 = vadd.f32 0.0, %v1911
      %v1913 = vpop.f32.mrb[0].mxu0
      %v1914 = vpop.f32.mrb[0].mxu0
      %v1915 = vadd.f32 0.0, %v1914
      %v1916 = vpop.f32.mrb[0].mxu0
      %1917 = vmatprep.mubr.bf16.mxu0 0
      %1918 = vmatmul.mubr.bf16.gmra.mrb[0].mxu0 %v1844
      %v1919 = vpop.f32.mrb[0].mxu0
      %v1920 = vadd.f32 0.0, %v1919
      %v1921 = vpop.f32.mrb[0].mxu0
      %v1922 = vpop.f32.mrb[0].mxu0
      %v1923 = vadd.f32 0.0, %v1922
      %v1924 = vpop.f32.mrb[0].mxu0
      %1925 = vmatprep.mubr.bf16.mxu0 0
      %1926 = vmatmul.mubr.bf16.gmra.mrb[0].mxu0 %v1847
      %v1927 = vpop.f32.mrb[0].mxu0
      %v1928 = vadd.f32 0.0, %v1927
      %v1929 = vpop.f32.mrb[0].mxu0
      %v1930 = vpop.f32.mrb[0].mxu0
      %v1931 = vadd.f32 0.0, %v1930
      %v1932 = vpop.f32.mrb[0].mxu0
      %1933 = vmatprep.mubr.bf16.mxu0 0
      %1934 = vmatmul.mubr.bf16.gmra.mrb[0].mxu0 %v1850
      %v1935 = vpop.f32.mrb[0].mxu0
      %v1936 = vadd.f32 0.0, %v1935
      %v1937 = vpop.f32.mrb[0].mxu0
      %v1938 = vpop.f32.mrb[0].mxu0
      %v1939 = vadd.f32 0.0, %v1938
      %v1940 = vpop.f32.mrb[0].mxu0
      %1941 = vmatprep.mubr.bf16.mxu0 0
      %1942 = vmatmul.mubr.bf16.gmra.mrb[0].mxu0 %v1853
      %v1943 = vpop.f32.mrb[0].mxu0
      %v1944 = vadd.f32 0.0, %v1943
      %v1945 = vpop.f32.mrb[0].mxu0
      %v1946 = vpop.f32.mrb[0].mxu0
      %v1947 = vadd.f32 0.0, %v1946
      %v1948 = vpop.f32.mrb[0].mxu0
      %1949 = vmatprep.mubr.bf16.mxu0 0
      %1950 = vmatmul.mubr.bf16.gmra.mrb[0].mxu0 %v1856
      %v1951 = vpop.f32.mrb[0].mxu0
      %v1952 = vadd.f32 0.0, %v1951
      %v1953 = vpop.f32.mrb[0].mxu0
      %v1954 = vpop.f32.mrb[0].mxu0
      %v1955 = vadd.f32 0.0, %v1954
      %v1956 = vpop.f32.mrb[0].mxu0
      %1957 = vdwg.mxu0
      %v1958 = vadd.f32 %v1808, %v1896
      %v1959 = vadd.f32 %v1809, %v1899
      %v1960 = vadd.f32 %v1810, %v1904
      %v1961 = vadd.f32 %v1811, %v1907
      %v1962 = vadd.f32 %v1812, %v1912
      %v1963 = vadd.f32 %v1813, %v1915
      %v1964 = vadd.f32 %v1814, %v1920
      %v1965 = vadd.f32 %v1815, %v1923
      %v1966 = vadd.f32 %v1816, %v1928
      %v1967 = vadd.f32 %v1817, %v1931
      %v1968 = vadd.f32 %v1818, %v1936
      %v1969 = vadd.f32 %v1819, %v1939
      %v1970 = vadd.f32 %v1820, %v1944
      %v1971 = vadd.f32 %v1821, %v1947
      %v1972 = vadd.f32 %v1822, %v1952
      %v1973 = vadd.f32 %v1823, %v1955
      %1990 = vrot.lane.b32.xlu0 %v1958, 4
      %v1991 = vpop.permute.xlu0 %1990
      %1992 = vrot.lane.b32.xlu0 %v1959, 4
      %v1993 = vpop.permute.xlu0 %1992
      %1994 = vrot.lane.b32.xlu0 %v1960, 4
      %v1995 = vpop.permute.xlu0 %1994
      %1996 = vrot.lane.b32.xlu0 %v1961, 4
      %v1997 = vpop.permute.xlu0 %1996
      %1998 = vrot.lane.b32.xlu0 %v1962, 4
      %v1999 = vpop.permute.xlu0 %1998
      %2000 = vrot.lane.b32.xlu0 %v1963, 4
      %v2001 = vpop.permute.xlu0 %2000
      %2002 = vrot.lane.b32.xlu0 %v1964, 4
      %v2003 = vpop.permute.xlu0 %2002
      %2004 = vrot.lane.b32.xlu0 %v1965, 4
      %v2005 = vpop.permute.xlu0 %2004
      %2006 = vrot.lane.b32.xlu0 %v1966, 4
      %v2007 = vpop.permute.xlu0 %2006
      %2008 = vrot.lane.b32.xlu0 %v1967, 4
      %v2009 = vpop.permute.xlu0 %2008
      %2010 = vrot.lane.b32.xlu0 %v1968, 4
      %v2011 = vpop.permute.xlu0 %2010
      %2012 = vrot.lane.b32.xlu0 %v1969, 4
      %v2013 = vpop.permute.xlu0 %2012
      %2014 = vrot.lane.b32.xlu0 %v1970, 4
      %v2015 = vpop.permute.xlu0 %2014
      %2016 = vrot.lane.b32.xlu0 %v1971, 4
      %v2017 = vpop.permute.xlu0 %2016
      %2018 = vrot.lane.b32.xlu0 %v1972, 4
      %v2019 = vpop.permute.xlu0 %2018
      %2020 = vrot.lane.b32.xlu0 %v1973, 4
      %v2021 = vpop.permute.xlu0 %2020
      %v2038 = vsel %vm366, %v1454, %v1991
      %v2039 = vsel %vm366, %v1455, %v1993
      %v2040 = vsel %vm366, %v1456, %v1995
      %v2041 = vsel %vm366, %v1457, %v1997
      %v2042 = vsel %vm366, %v1458, %v1999
      %v2043 = vsel %vm366, %v1459, %v2001
      %v2044 = vsel %vm366, %v1460, %v2003
      %v2045 = vsel %vm366, %v1461, %v2005
      %v2046 = vsel %vm366, %v1462, %v2007
      %v2047 = vsel %vm366, %v1463, %v2009
      %v2048 = vsel %vm366, %v1464, %v2011
      %v2049 = vsel %vm366, %v1465, %v2013
      %v2050 = vsel %vm366, %v1466, %v2015
      %v2051 = vsel %vm366, %v1467, %v2017
      %v2052 = vsel %vm366, %v1468, %v2019
      %v2053 = vsel %vm366, %v1469, %v2021
      %v2055 = vlaneseq
      %v2056 = vshrl.u32 %v2055, 7
      %v2057 = vsub.s32 0, %v2056
      %v2058 = vrot.slane %v901, %v2057
      %v2060 = vadd.f32 %v2038, %v2058
      %v2061 = vadd.f32 %v2039, %v2058
      %v2062 = vadd.f32 %v2040, %v2058
      %v2063 = vadd.f32 %v2041, %v2058
      %v2064 = vadd.f32 %v2042, %v2058
      %v2065 = vadd.f32 %v2043, %v2058
      %v2066 = vadd.f32 %v2044, %v2058
      %v2067 = vadd.f32 %v2045, %v2058
      %v2068 = vadd.f32 %v2046, %v2058
      %v2069 = vadd.f32 %v2047, %v2058
      %v2070 = vadd.f32 %v2048, %v2058
      %v2071 = vadd.f32 %v2049, %v2058
      %v2072 = vadd.f32 %v2050, %v2058
      %v2073 = vadd.f32 %v2051, %v2058
      %v2074 = vadd.f32 %v2052, %v2058
      %v2075 = vadd.f32 %v2053, %v2058
      %v2076 = vpack.c.bf16 %v2061, %v2060
      %v2077 = vpack.c.bf16 %v2063, %v2062
      %v2078 = vpack.c.bf16 %v2065, %v2064
      %v2079 = vpack.c.bf16 %v2067, %v2066
      %v2080 = vpack.c.bf16 %v2069, %v2068
      %v2081 = vpack.c.bf16 %v2071, %v2070
      %v2082 = vpack.c.bf16 %v2073, %v2072
      %v2083 = vpack.c.bf16 %v2075, %v2074
      %v2092 = vunpack.c.l.b16 %v2076
      %v2093 = vunpack.c.h.b16 %v2076
      %v2094 = vunpack.c.l.b16 %v2077
      %v2095 = vunpack.c.h.b16 %v2077
      %v2096 = vunpack.c.l.b16 %v2078
      %v2097 = vunpack.c.h.b16 %v2078
      %v2098 = vunpack.c.l.b16 %v2079
      %v2099 = vunpack.c.h.b16 %v2079
      %v2100 = vunpack.c.l.b16 %v2080
      %v2101 = vunpack.c.h.b16 %v2080
      %v2102 = vunpack.c.l.b16 %v2081
      %v2103 = vunpack.c.h.b16 %v2081
      %v2104 = vunpack.c.l.b16 %v2082
      %v2105 = vunpack.c.h.b16 %v2082
      %v2106 = vunpack.c.l.b16 %v2083
      %v2107 = vunpack.c.h.b16 %v2083
      %v2108 = vpack.c.b16 %v2092, %v2092
      %v2109 = vpack.c.b16 %v2093, %v2093
      %v2110 = vpack.c.b16 %v2094, %v2094
      %v2111 = vpack.c.b16 %v2095, %v2095
      %v2112 = vpack.c.b16 %v2096, %v2096
      %v2113 = vpack.c.b16 %v2097, %v2097
      %v2114 = vpack.c.b16 %v2098, %v2098
      %v2115 = vpack.c.b16 %v2099, %v2099
      %v2116 = vpack.c.b16 %v2100, %v2100
      %v2117 = vpack.c.b16 %v2101, %v2101
      %v2118 = vpack.c.b16 %v2102, %v2102
      %v2119 = vpack.c.b16 %v2103, %v2103
      %v2120 = vpack.c.b16 %v2104, %v2104
      %v2121 = vpack.c.b16 %v2105, %v2105
      %v2122 = vpack.c.b16 %v2106, %v2106
      %v2123 = vpack.c.b16 %v2107, %v2107
      %vm2140 = vcmask 60416
      %2141 = vst.msk [vmem:[%s299] sm:$0xf] %vm2140, %v2108
      %2142 = vst.msk [vmem:[%s299 + $0x4] sm:$0xf] %vm2140, %v2109
      %2143 = vst.msk [vmem:[%s299 + $0x10] sm:$0xf] %vm2140, %v2110
      %2144 = vst.msk [vmem:[%s299 + $0x14] sm:$0xf] %vm2140, %v2111
      %2145 = vst.msk [vmem:[%s299 + $0x20] sm:$0xf] %vm2140, %v2112
      %2146 = vst.msk [vmem:[%s299 + $0x24] sm:$0xf] %vm2140, %v2113
      %2147 = vst.msk [vmem:[%s299 + $0x30] sm:$0xf] %vm2140, %v2114
      %2148 = vst.msk [vmem:[%s299 + $0x34] sm:$0xf] %vm2140, %v2115
      %2149 = vst.msk [vmem:[%s299 + $0x40] sm:$0xf] %vm2140, %v2116
      %2150 = vst.msk [vmem:[%s299 + $0x44] sm:$0xf] %vm2140, %v2117
      %2151 = vst.msk [vmem:[%s299 + $0x50] sm:$0xf] %vm2140, %v2118
      %2152 = vst.msk [vmem:[%s299 + $0x54] sm:$0xf] %vm2140, %v2119
      %2153 = vst.msk [vmem:[%s299 + $0x60] sm:$0xf] %vm2140, %v2120
      %2154 = vst.msk [vmem:[%s299 + $0x64] sm:$0xf] %vm2140, %v2121
      %2155 = vst.msk [vmem:[%s299 + $0x70] sm:$0xf] %vm2140, %v2122
      %2156 = vst.msk [vmem:[%s299 + $0x74] sm:$0xf] %vm2140, %v2123
      %v2157 = vld [vmem:[#allocation2 + $0x8] sm:$0xff]
      %v2158 = vld [vmem:[#allocation2 + $0x10] sm:$0xff]
      %v2159 = vld [vmem:[#allocation2 + $0x18] sm:$0xff]
      %v2160 = vld [vmem:[#allocation2 + $0x20] sm:$0xff]
      %v2161 = vld [vmem:[#allocation2 + $0x28] sm:$0xff]
      %v2162 = vld [vmem:[#allocation2 + $0x30] sm:$0xff]
      %v2163 = vld [vmem:[#allocation2 + $0x38] sm:$0xff]
      %v2164 = vld [vmem:[#allocation2 + $0x40] sm:$0xff]
      %s2165 = scalar_lea.vmem %s2, 16
      %v2166 = vld [vmem:[%s2165] sm:$0x3]
      %v2167 = vld [vmem:[%s644 + $0x8] sm:$0xff]
      %v2168 = vld [vmem:[%s644 + $0x10] sm:$0xff]
      %v2169 = vld [vmem:[%s644 + $0x18] sm:$0xff]
      %v2170 = vld [vmem:[%s644 + $0x20] sm:$0xff]
      %v2171 = vld [vmem:[%s644 + $0x28] sm:$0xff]
      %v2172 = vld [vmem:[%s644 + $0x30] sm:$0xff]
      %v2173 = vld [vmem:[%s644 + $0x38] sm:$0xff]
      %v2174 = vld [vmem:[%s644 + $0x40] sm:$0xff]
      %s2175 = scalar_lea.vmem %s2, 18
      %v2176 = vld [vmem:[%s2175] sm:$0x3]
      %v2178 = vsel %vm366, %v2167, 0
      %v2181 = vsel %vm366, %v2168, 0
      %v2184 = vsel %vm366, %v2169, 0
      %v2187 = vsel %vm366, %v2170, 0
      %v2190 = vsel %vm366, %v2171, 0
      %v2193 = vsel %vm366, %v2172, 0
      %v2196 = vsel %vm366, %v2173, 0
      %v2199 = vsel %vm366, %v2174, 0
      %v2202 = vsel %vm945, %v2176, 0
      %2204 = vmatprep.subr.bf16.mxu0 0
      %2205 = vmatpush1.bf16.msra.mxu0 %v2202
      %2206 = vmatprep.subr.bf16.mxu0 0
      %2207 = vmatpush1.bf16.msra.mxu0 0
      %2208 = vmatprep.subr.bf16.mxu0 0
      %2209 = vmatpush1.bf16.msra.mxu0 0
      %2210 = vmatprep.subr.bf16.mxu0 0
      %2211 = vmatpush1.bf16.msra.mxu0 0
      %2212 = vmatprep.subr.bf16.mxu0 0
      %2213 = vmatpush1.bf16.msra.mxu0 0
      %2214 = vmatprep.subr.bf16.mxu0 0
      %2215 = vmatpush1.bf16.msra.mxu0 0
      %2216 = vmatprep.subr.bf16.mxu0 0
      %2217 = vmatpush1.bf16.msra.mxu0 0
      %2218 = vmatprep.subr.bf16.mxu0 0
      %2219 = vmatpush1.bf16.msra.mxu0 0
      %2220 = vmatprep.subr.bf16.mxu0 0
      %2221 = vmatpush1.bf16.msra.mxu0 0
      %2222 = vmatprep.subr.bf16.mxu0 0
      %2223 = vmatpush1.bf16.msra.mxu0 0
      %2224 = vmatprep.subr.bf16.mxu0 0
      %2225 = vmatpush1.bf16.msra.mxu0 0
      %2226 = vmatprep.subr.bf16.mxu0 0
      %2227 = vmatpush1.bf16.msra.mxu0 0
      %2228 = vmatprep.subr.bf16.mxu0 0
      %2229 = vmatpush1.bf16.msra.mxu0 0
      %2230 = vmatprep.subr.bf16.mxu0 0
      %2231 = vmatpush1.bf16.msra.mxu0 0
      %2232 = vmatprep.subr.bf16.mxu0 0
      %2233 = vmatpush1.bf16.msra.mxu0 0
      %2234 = vmatprep.subr.bf16.mxu0 0
      %2235 = vmatpush1.bf16.msra.mxu0 0
      %2236 = vmatprep.mubr.bf16.mxu0 0
      %2237 = vmatmul.mubr.bf16.gmra.mrb[0].mxu0 %v2178
      %v2238 = vpop.f32.mrb[0].mxu0
      %v2239 = vadd.f32 0.0, %v2238
      %v2240 = vpop.f32.mrb[0].mxu0
      %v2241 = vpop.f32.mrb[0].mxu0
      %v2242 = vadd.f32 0.0, %v2241
      %v2243 = vpop.f32.mrb[0].mxu0
      %2244 = vmatprep.mubr.bf16.mxu0 0
      %2245 = vmatmul.mubr.bf16.gmra.mrb[0].mxu0 %v2181
      %v2246 = vpop.f32.mrb[0].mxu0
      %v2247 = vadd.f32 0.0, %v2246
      %v2248 = vpop.f32.mrb[0].mxu0
      %v2249 = vpop.f32.mrb[0].mxu0
      %v2250 = vadd.f32 0.0, %v2249
      %v2251 = vpop.f32.mrb[0].mxu0
      %2252 = vmatprep.mubr.bf16.mxu0 0
      %2253 = vmatmul.mubr.bf16.gmra.mrb[0].mxu0 %v2184
      %v2254 = vpop.f32.mrb[0].mxu0
      %v2255 = vadd.f32 0.0, %v2254
      %v2256 = vpop.f32.mrb[0].mxu0
      %v2257 = vpop.f32.mrb[0].mxu0
      %v2258 = vadd.f32 0.0, %v2257
      %v2259 = vpop.f32.mrb[0].mxu0
      %2260 = vmatprep.mubr.bf16.mxu0 0
      %2261 = vmatmul.mubr.bf16.gmra.mrb[0].mxu0 %v2187
      %v2262 = vpop.f32.mrb[0].mxu0
      %v2263 = vadd.f32 0.0, %v2262
      %v2264 = vpop.f32.mrb[0].mxu0
      %v2265 = vpop.f32.mrb[0].mxu0
      %v2266 = vadd.f32 0.0, %v2265
      %v2267 = vpop.f32.mrb[0].mxu0
      %2268 = vmatprep.mubr.bf16.mxu0 0
      %2269 = vmatmul.mubr.bf16.gmra.mrb[0].mxu0 %v2190
      %v2270 = vpop.f32.mrb[0].mxu0
      %v2271 = vadd.f32 0.0, %v2270
      %v2272 = vpop.f32.mrb[0].mxu0
      %v2273 = vpop.f32.mrb[0].mxu0
      %v2274 = vadd.f32 0.0, %v2273
      %v2275 = vpop.f32.mrb[0].mxu0
      %2276 = vmatprep.mubr.bf16.mxu0 0
      %2277 = vmatmul.mubr.bf16.gmra.mrb[0].mxu0 %v2193
      %v2278 = vpop.f32.mrb[0].mxu0
      %v2279 = vadd.f32 0.0, %v2278
      %v2280 = vpop.f32.mrb[0].mxu0
      %v2281 = vpop.f32.mrb[0].mxu0
      %v2282 = vadd.f32 0.0, %v2281
      %v2283 = vpop.f32.mrb[0].mxu0
      %2284 = vmatprep.mubr.bf16.mxu0 0
      %2285 = vmatmul.mubr.bf16.gmra.mrb[0].mxu0 %v2196
      %v2286 = vpop.f32.mrb[0].mxu0
      %v2287 = vadd.f32 0.0, %v2286
      %v2288 = vpop.f32.mrb[0].mxu0
      %v2289 = vpop.f32.mrb[0].mxu0
      %v2290 = vadd.f32 0.0, %v2289
      %v2291 = vpop.f32.mrb[0].mxu0
      %2292 = vmatprep.mubr.bf16.mxu0 0
      %2293 = vmatmul.mubr.bf16.gmra.mrb[0].mxu0 %v2199
      %v2294 = vpop.f32.mrb[0].mxu0
      %v2295 = vadd.f32 0.0, %v2294
      %v2296 = vpop.f32.mrb[0].mxu0
      %v2297 = vpop.f32.mrb[0].mxu0
      %v2298 = vadd.f32 0.0, %v2297
      %v2299 = vpop.f32.mrb[0].mxu0
      %2300 = vdwg.mxu0
      %v2302 = vsel %vm366, %v2157, 0
      %v2305 = vsel %vm366, %v2158, 0
      %v2308 = vsel %vm366, %v2159, 0
      %v2311 = vsel %vm366, %v2160, 0
      %v2314 = vsel %vm366, %v2161, 0
      %v2317 = vsel %vm366, %v2162, 0
      %v2320 = vsel %vm366, %v2163, 0
      %v2323 = vsel %vm366, %v2164, 0
      %v2326 = vsel %vm945, %v2166, 0
      %2328 = vmatprep.subr.bf16.mxu0 0
      %2329 = vmatpush1.bf16.msra.mxu0 %v2326
      %2330 = vmatprep.subr.bf16.mxu0 0
      %2331 = vmatpush1.bf16.msra.mxu0 0
      %2332 = vmatprep.subr.bf16.mxu0 0
      %2333 = vmatpush1.bf16.msra.mxu0 0
      %2334 = vmatprep.subr.bf16.mxu0 0
      %2335 = vmatpush1.bf16.msra.mxu0 0
      %2336 = vmatprep.subr.bf16.mxu0 0
      %2337 = vmatpush1.bf16.msra.mxu0 0
      %2338 = vmatprep.subr.bf16.mxu0 0
      %2339 = vmatpush1.bf16.msra.mxu0 0
      %2340 = vmatprep.subr.bf16.mxu0 0
      %2341 = vmatpush1.bf16.msra.mxu0 0
      %2342 = vmatprep.subr.bf16.mxu0 0
      %2343 = vmatpush1.bf16.msra.mxu0 0
      %2344 = vmatprep.subr.bf16.mxu0 0
      %2345 = vmatpush1.bf16.msra.mxu0 0
      %2346 = vmatprep.subr.bf16.mxu0 0
      %2347 = vmatpush1.bf16.msra.mxu0 0
      %2348 = vmatprep.subr.bf16.mxu0 0
      %2349 = vmatpush1.bf16.msra.mxu0 0
      %2350 = vmatprep.subr.bf16.mxu0 0
      %2351 = vmatpush1.bf16.msra.mxu0 0
      %2352 = vmatprep.subr.bf16.mxu0 0
      %2353 = vmatpush1.bf16.msra.mxu0 0
      %2354 = vmatprep.subr.bf16.mxu0 0
      %2355 = vmatpush1.bf16.msra.mxu0 0
      %2356 = vmatprep.subr.bf16.mxu0 0
      %2357 = vmatpush1.bf16.msra.mxu0 0
      %2358 = vmatprep.subr.bf16.mxu0 0
      %2359 = vmatpush1.bf16.msra.mxu0 0
      %2360 = vmatprep.mubr.bf16.mxu0 0
      %2361 = vmatmul.mubr.bf16.gmra.mrb[0].mxu0 %v2302
      %v2362 = vpop.f32.mrb[0].mxu0
      %v2363 = vadd.f32 %v2239, %v2362
      %v2364 = vpop.f32.mrb[0].mxu0
      %v2365 = vpop.f32.mrb[0].mxu0
      %v2366 = vadd.f32 %v2242, %v2365
      %v2367 = vpop.f32.mrb[0].mxu0
      %2368 = vmatprep.mubr.bf16.mxu0 0
      %2369 = vmatmul.mubr.bf16.gmra.mrb[0].mxu0 %v2305
      %v2370 = vpop.f32.mrb[0].mxu0
      %v2371 = vadd.f32 %v2247, %v2370
      %v2372 = vpop.f32.mrb[0].mxu0
      %v2373 = vpop.f32.mrb[0].mxu0
      %v2374 = vadd.f32 %v2250, %v2373
      %v2375 = vpop.f32.mrb[0].mxu0
      %2376 = vmatprep.mubr.bf16.mxu0 0
      %2377 = vmatmul.mubr.bf16.gmra.mrb[0].mxu0 %v2308
      %v2378 = vpop.f32.mrb[0].mxu0
      %v2379 = vadd.f32 %v2255, %v2378
      %v2380 = vpop.f32.mrb[0].mxu0
      %v2381 = vpop.f32.mrb[0].mxu0
      %v2382 = vadd.f32 %v2258, %v2381
      %v2383 = vpop.f32.mrb[0].mxu0
      %2384 = vmatprep.mubr.bf16.mxu0 0
      %2385 = vmatmul.mubr.bf16.gmra.mrb[0].mxu0 %v2311
      %v2386 = vpop.f32.mrb[0].mxu0
      %v2387 = vadd.f32 %v2263, %v2386
      %v2388 = vpop.f32.mrb[0].mxu0
      %v2389 = vpop.f32.mrb[0].mxu0
      %v2390 = vadd.f32 %v2266, %v2389
      %v2391 = vpop.f32.mrb[0].mxu0
      %2392 = vmatprep.mubr.bf16.mxu0 0
      %2393 = vmatmul.mubr.bf16.gmra.mrb[0].mxu0 %v2314
      %v2394 = vpop.f32.mrb[0].mxu0
      %v2395 = vadd.f32 %v2271, %v2394
      %v2396 = vpop.f32.mrb[0].mxu0
      %v2397 = vpop.f32.mrb[0].mxu0
      %v2398 = vadd.f32 %v2274, %v2397
      %v2399 = vpop.f32.mrb[0].mxu0
      %2400 = vmatprep.mubr.bf16.mxu0 0
      %2401 = vmatmul.mubr.bf16.gmra.mrb[0].mxu0 %v2317
      %v2402 = vpop.f32.mrb[0].mxu0
      %v2403 = vadd.f32 %v2279, %v2402
      %v2404 = vpop.f32.mrb[0].mxu0
      %v2405 = vpop.f32.mrb[0].mxu0
      %v2406 = vadd.f32 %v2282, %v2405
      %v2407 = vpop.f32.mrb[0].mxu0
      %2408 = vmatprep.mubr.bf16.mxu0 0
      %2409 = vmatmul.mubr.bf16.gmra.mrb[0].mxu0 %v2320
      %v2410 = vpop.f32.mrb[0].mxu0
      %v2411 = vadd.f32 %v2287, %v2410
      %v2412 = vpop.f32.mrb[0].mxu0
      %v2413 = vpop.f32.mrb[0].mxu0
      %v2414 = vadd.f32 %v2290, %v2413
      %v2415 = vpop.f32.mrb[0].mxu0
      %2416 = vmatprep.mubr.bf16.mxu0 0
      %2417 = vmatmul.mubr.bf16.gmra.mrb[0].mxu0 %v2323
      %v2418 = vpop.f32.mrb[0].mxu0
      %v2419 = vadd.f32 %v2295, %v2418
      %v2420 = vpop.f32.mrb[0].mxu0
      %v2421 = vpop.f32.mrb[0].mxu0
      %v2422 = vadd.f32 %v2298, %v2421
      %v2423 = vpop.f32.mrb[0].mxu0
      %2424 = vdwg.mxu0
      %v2425 = vld [vmem:[#allocation2 + $0x10] sm:$0xff]
      %v2426 = vld [vmem:[#allocation2 + $0x18] sm:$0xff]
      %v2427 = vld [vmem:[#allocation2 + $0x20] sm:$0xff]
      %v2428 = vld [vmem:[#allocation2 + $0x28] sm:$0xff]
      %v2429 = vld [vmem:[#allocation2 + $0x30] sm:$0xff]
      %v2430 = vld [vmem:[#allocation2 + $0x38] sm:$0xff]
      %v2431 = vld [vmem:[#allocation2 + $0x40] sm:$0xff]
      %v2432 = vld [vmem:[#allocation2 + $0x48] sm:$0xff]
      %s2433 = scalar_lea.vmem %s2, 20
      %v2434 = vld [vmem:[%s2433] sm:$0x3]
      %v2436 = vsel %vm366, %v2425, 0
      %v2439 = vsel %vm366, %v2426, 0
      %v2442 = vsel %vm366, %v2427, 0
      %v2445 = vsel %vm366, %v2428, 0
      %v2448 = vsel %vm366, %v2429, 0
      %v2451 = vsel %vm366, %v2430, 0
      %v2454 = vsel %vm366, %v2431, 0
      %v2457 = vsel %vm366, %v2432, 0
      %v2460 = vsel %vm945, %v2434, 0
      %2462 = vmatprep.subr.bf16.mxu0 0
      %2463 = vmatpush1.bf16.msra.mxu0 %v2460
      %2464 = vmatprep.subr.bf16.mxu0 0
      %2465 = vmatpush1.bf16.msra.mxu0 0
      %2466 = vmatprep.subr.bf16.mxu0 0
      %2467 = vmatpush1.bf16.msra.mxu0 0
      %2468 = vmatprep.subr.bf16.mxu0 0
      %2469 = vmatpush1.bf16.msra.mxu0 0
      %2470 = vmatprep.subr.bf16.mxu0 0
      %2471 = vmatpush1.bf16.msra.mxu0 0
      %2472 = vmatprep.subr.bf16.mxu0 0
      %2473 = vmatpush1.bf16.msra.mxu0 0
      %2474 = vmatprep.subr.bf16.mxu0 0
      %2475 = vmatpush1.bf16.msra.mxu0 0
      %2476 = vmatprep.subr.bf16.mxu0 0
      %2477 = vmatpush1.bf16.msra.mxu0 0
      %2478 = vmatprep.subr.bf16.mxu0 0
      %2479 = vmatpush1.bf16.msra.mxu0 0
      %2480 = vmatprep.subr.bf16.mxu0 0
      %2481 = vmatpush1.bf16.msra.mxu0 0
      %2482 = vmatprep.subr.bf16.mxu0 0
      %2483 = vmatpush1.bf16.msra.mxu0 0
      %2484 = vmatprep.subr.bf16.mxu0 0
      %2485 = vmatpush1.bf16.msra.mxu0 0
      %2486 = vmatprep.subr.bf16.mxu0 0
      %2487 = vmatpush1.bf16.msra.mxu0 0
      %2488 = vmatprep.subr.bf16.mxu0 0
      %2489 = vmatpush1.bf16.msra.mxu0 0
      %2490 = vmatprep.subr.bf16.mxu0 0
      %2491 = vmatpush1.bf16.msra.mxu0 0
      %2492 = vmatprep.subr.bf16.mxu0 0
      %2493 = vmatpush1.bf16.msra.mxu0 0
      %2494 = vmatprep.mubr.bf16.mxu0 0
      %2495 = vmatmul.mubr.bf16.gmra.mrb[0].mxu0 %v2436
      %v2496 = vpop.f32.mrb[0].mxu0
      %v2497 = vadd.f32 0.0, %v2496
      %v2498 = vpop.f32.mrb[0].mxu0
      %v2499 = vpop.f32.mrb[0].mxu0
      %v2500 = vadd.f32 0.0, %v2499
      %v2501 = vpop.f32.mrb[0].mxu0
      %2502 = vmatprep.mubr.bf16.mxu0 0
      %2503 = vmatmul.mubr.bf16.gmra.mrb[0].mxu0 %v2439
      %v2504 = vpop.f32.mrb[0].mxu0
      %v2505 = vadd.f32 0.0, %v2504
      %v2506 = vpop.f32.mrb[0].mxu0
      %v2507 = vpop.f32.mrb[0].mxu0
      %v2508 = vadd.f32 0.0, %v2507
      %v2509 = vpop.f32.mrb[0].mxu0
      %2510 = vmatprep.mubr.bf16.mxu0 0
      %2511 = vmatmul.mubr.bf16.gmra.mrb[0].mxu0 %v2442
      %v2512 = vpop.f32.mrb[0].mxu0
      %v2513 = vadd.f32 0.0, %v2512
      %v2514 = vpop.f32.mrb[0].mxu0
      %v2515 = vpop.f32.mrb[0].mxu0
      %v2516 = vadd.f32 0.0, %v2515
      %v2517 = vpop.f32.mrb[0].mxu0
      %2518 = vmatprep.mubr.bf16.mxu0 0
      %2519 = vmatmul.mubr.bf16.gmra.mrb[0].mxu0 %v2445
      %v2520 = vpop.f32.mrb[0].mxu0
      %v2521 = vadd.f32 0.0, %v2520
      %v2522 = vpop.f32.mrb[0].mxu0
      %v2523 = vpop.f32.mrb[0].mxu0
      %v2524 = vadd.f32 0.0, %v2523
      %v2525 = vpop.f32.mrb[0].mxu0
      %2526 = vmatprep.mubr.bf16.mxu0 0
      %2527 = vmatmul.mubr.bf16.gmra.mrb[0].mxu0 %v2448
      %v2528 = vpop.f32.mrb[0].mxu0
      %v2529 = vadd.f32 0.0, %v2528
      %v2530 = vpop.f32.mrb[0].mxu0
      %v2531 = vpop.f32.mrb[0].mxu0
      %v2532 = vadd.f32 0.0, %v2531
      %v2533 = vpop.f32.mrb[0].mxu0
      %2534 = vmatprep.mubr.bf16.mxu0 0
      %2535 = vmatmul.mubr.bf16.gmra.mrb[0].mxu0 %v2451
      %v2536 = vpop.f32.mrb[0].mxu0
      %v2537 = vadd.f32 0.0, %v2536
      %v2538 = vpop.f32.mrb[0].mxu0
      %v2539 = vpop.f32.mrb[0].mxu0
      %v2540 = vadd.f32 0.0, %v2539
      %v2541 = vpop.f32.mrb[0].mxu0
      %2542 = vmatprep.mubr.bf16.mxu0 0
      %2543 = vmatmul.mubr.bf16.gmra.mrb[0].mxu0 %v2454
      %v2544 = vpop.f32.mrb[0].mxu0
      %v2545 = vadd.f32 0.0, %v2544
      %v2546 = vpop.f32.mrb[0].mxu0
      %v2547 = vpop.f32.mrb[0].mxu0
      %v2548 = vadd.f32 0.0, %v2547
      %v2549 = vpop.f32.mrb[0].mxu0
      %2550 = vmatprep.mubr.bf16.mxu0 0
      %2551 = vmatmul.mubr.bf16.gmra.mrb[0].mxu0 %v2457
      %v2552 = vpop.f32.mrb[0].mxu0
      %v2553 = vadd.f32 0.0, %v2552
      %v2554 = vpop.f32.mrb[0].mxu0
      %v2555 = vpop.f32.mrb[0].mxu0
      %v2556 = vadd.f32 0.0, %v2555
      %v2557 = vpop.f32.mrb[0].mxu0
      %2558 = vdwg.mxu0
      %v2559 = vadd.f32 %v2363, %v2497
      %v2560 = vadd.f32 %v2366, %v2500
      %v2561 = vadd.f32 %v2371, %v2505
      %v2562 = vadd.f32 %v2374, %v2508
      %v2563 = vadd.f32 %v2379, %v2513
      %v2564 = vadd.f32 %v2382, %v2516
      %v2565 = vadd.f32 %v2387, %v2521
      %v2566 = vadd.f32 %v2390, %v2524
      %v2567 = vadd.f32 %v2395, %v2529
      %v2568 = vadd.f32 %v2398, %v2532
      %v2569 = vadd.f32 %v2403, %v2537
      %v2570 = vadd.f32 %v2406, %v2540
      %v2571 = vadd.f32 %v2411, %v2545
      %v2572 = vadd.f32 %v2414, %v2548
      %v2573 = vadd.f32 %v2419, %v2553
      %v2574 = vadd.f32 %v2422, %v2556
      %v2575 = vld [vmem:[%s644 + $0x10] sm:$0xff]
      %v2576 = vld [vmem:[%s644 + $0x18] sm:$0xff]
      %v2577 = vld [vmem:[%s644 + $0x20] sm:$0xff]
      %v2578 = vld [vmem:[%s644 + $0x28] sm:$0xff]
      %v2579 = vld [vmem:[%s644 + $0x30] sm:$0xff]
      %v2580 = vld [vmem:[%s644 + $0x38] sm:$0xff]
      %v2581 = vld [vmem:[%s644 + $0x40] sm:$0xff]
      %v2582 = vld [vmem:[%s644 + $0x48] sm:$0xff]
      %s2583 = scalar_lea.vmem %s2, 22
      %v2584 = vld [vmem:[%s2583] sm:$0x3]
      %v2586 = vsel %vm366, %v2575, 0
      %v2589 = vsel %vm366, %v2576, 0
      %v2592 = vsel %vm366, %v2577, 0
      %v2595 = vsel %vm366, %v2578, 0
      %v2598 = vsel %vm366, %v2579, 0
      %v2601 = vsel %vm366, %v2580, 0
      %v2604 = vsel %vm366, %v2581, 0
      %v2607 = vsel %vm366, %v2582, 0
      %v2610 = vsel %vm945, %v2584, 0
      %2612 = vmatprep.subr.bf16.mxu0 0
      %2613 = vmatpush1.bf16.msra.mxu0 %v2610
      %2614 = vmatprep.subr.bf16.mxu0 0
      %2615 = vmatpush1.bf16.msra.mxu0 0
      %2616 = vmatprep.subr.bf16.mxu0 0
      %2617 = vmatpush1.bf16.msra.mxu0 0
      %2618 = vmatprep.subr.bf16.mxu0 0
      %2619 = vmatpush1.bf16.msra.mxu0 0
      %2620 = vmatprep.subr.bf16.mxu0 0
      %2621 = vmatpush1.bf16.msra.mxu0 0
      %2622 = vmatprep.subr.bf16.mxu0 0
      %2623 = vmatpush1.bf16.msra.mxu0 0
      %2624 = vmatprep.subr.bf16.mxu0 0
      %2625 = vmatpush1.bf16.msra.mxu0 0
      %2626 = vmatprep.subr.bf16.mxu0 0
      %2627 = vmatpush1.bf16.msra.mxu0 0
      %2628 = vmatprep.subr.bf16.mxu0 0
      %2629 = vmatpush1.bf16.msra.mxu0 0
      %2630 = vmatprep.subr.bf16.mxu0 0
      %2631 = vmatpush1.bf16.msra.mxu0 0
      %2632 = vmatprep.subr.bf16.mxu0 0
      %2633 = vmatpush1.bf16.msra.mxu0 0
      %2634 = vmatprep.subr.bf16.mxu0 0
      %2635 = vmatpush1.bf16.msra.mxu0 0
      %2636 = vmatprep.subr.bf16.mxu0 0
      %2637 = vmatpush1.bf16.msra.mxu0 0
      %2638 = vmatprep.subr.bf16.mxu0 0
      %2639 = vmatpush1.bf16.msra.mxu0 0
      %2640 = vmatprep.subr.bf16.mxu0 0
      %2641 = vmatpush1.bf16.msra.mxu0 0
      %2642 = vmatprep.subr.bf16.mxu0 0
      %2643 = vmatpush1.bf16.msra.mxu0 0
      %2644 = vmatprep.mubr.bf16.mxu0 0
      %2645 = vmatmul.mubr.bf16.gmra.mrb[0].mxu0 %v2586
      %v2646 = vpop.f32.mrb[0].mxu0
      %v2647 = vadd.f32 0.0, %v2646
      %v2648 = vpop.f32.mrb[0].mxu0
      %v2649 = vpop.f32.mrb[0].mxu0
      %v2650 = vadd.f32 0.0, %v2649
      %v2651 = vpop.f32.mrb[0].mxu0
      %2652 = vmatprep.mubr.bf16.mxu0 0
      %2653 = vmatmul.mubr.bf16.gmra.mrb[0].mxu0 %v2589
      %v2654 = vpop.f32.mrb[0].mxu0
      %v2655 = vadd.f32 0.0, %v2654
      %v2656 = vpop.f32.mrb[0].mxu0
      %v2657 = vpop.f32.mrb[0].mxu0
      %v2658 = vadd.f32 0.0, %v2657
      %v2659 = vpop.f32.mrb[0].mxu0
      %2660 = vmatprep.mubr.bf16.mxu0 0
      %2661 = vmatmul.mubr.bf16.gmra.mrb[0].mxu0 %v2592
      %v2662 = vpop.f32.mrb[0].mxu0
      %v2663 = vadd.f32 0.0, %v2662
      %v2664 = vpop.f32.mrb[0].mxu0
      %v2665 = vpop.f32.mrb[0].mxu0
      %v2666 = vadd.f32 0.0, %v2665
      %v2667 = vpop.f32.mrb[0].mxu0
      %2668 = vmatprep.mubr.bf16.mxu0 0
      %2669 = vmatmul.mubr.bf16.gmra.mrb[0].mxu0 %v2595
      %v2670 = vpop.f32.mrb[0].mxu0
      %v2671 = vadd.f32 0.0, %v2670
      %v2672 = vpop.f32.mrb[0].mxu0
      %v2673 = vpop.f32.mrb[0].mxu0
      %v2674 = vadd.f32 0.0, %v2673
      %v2675 = vpop.f32.mrb[0].mxu0
      %2676 = vmatprep.mubr.bf16.mxu0 0
      %2677 = vmatmul.mubr.bf16.gmra.mrb[0].mxu0 %v2598
      %v2678 = vpop.f32.mrb[0].mxu0
      %v2679 = vadd.f32 0.0, %v2678
      %v2680 = vpop.f32.mrb[0].mxu0
      %v2681 = vpop.f32.mrb[0].mxu0
      %v2682 = vadd.f32 0.0, %v2681
      %v2683 = vpop.f32.mrb[0].mxu0
      %2684 = vmatprep.mubr.bf16.mxu0 0
      %2685 = vmatmul.mubr.bf16.gmra.mrb[0].mxu0 %v2601
      %v2686 = vpop.f32.mrb[0].mxu0
      %v2687 = vadd.f32 0.0, %v2686
      %v2688 = vpop.f32.mrb[0].mxu0
      %v2689 = vpop.f32.mrb[0].mxu0
      %v2690 = vadd.f32 0.0, %v2689
      %v2691 = vpop.f32.mrb[0].mxu0
      %2692 = vmatprep.mubr.bf16.mxu0 0
      %2693 = vmatmul.mubr.bf16.gmra.mrb[0].mxu0 %v2604
      %v2694 = vpop.f32.mrb[0].mxu0
      %v2695 = vadd.f32 0.0, %v2694
      %v2696 = vpop.f32.mrb[0].mxu0
      %v2697 = vpop.f32.mrb[0].mxu0
      %v2698 = vadd.f32 0.0, %v2697
      %v2699 = vpop.f32.mrb[0].mxu0
      %2700 = vmatprep.mubr.bf16.mxu0 0
      %2701 = vmatmul.mubr.bf16.gmra.mrb[0].mxu0 %v2607
      %v2702 = vpop.f32.mrb[0].mxu0
      %v2703 = vadd.f32 0.0, %v2702
      %v2704 = vpop.f32.mrb[0].mxu0
      %v2705 = vpop.f32.mrb[0].mxu0
      %v2706 = vadd.f32 0.0, %v2705
      %v2707 = vpop.f32.mrb[0].mxu0
      %2708 = vdwg.mxu0
      %v2709 = vadd.f32 %v2559, %v2647
      %v2710 = vadd.f32 %v2560, %v2650
      %v2711 = vadd.f32 %v2561, %v2655
      %v2712 = vadd.f32 %v2562, %v2658
      %v2713 = vadd.f32 %v2563, %v2663
      %v2714 = vadd.f32 %v2564, %v2666
      %v2715 = vadd.f32 %v2565, %v2671
      %v2716 = vadd.f32 %v2566, %v2674
      %v2717 = vadd.f32 %v2567, %v2679
      %v2718 = vadd.f32 %v2568, %v2682
      %v2719 = vadd.f32 %v2569, %v2687
      %v2720 = vadd.f32 %v2570, %v2690
      %v2721 = vadd.f32 %v2571, %v2695
      %v2722 = vadd.f32 %v2572, %v2698
      %v2723 = vadd.f32 %v2573, %v2703
      %v2724 = vadd.f32 %v2574, %v2706
      %s2725 = scalar_lea.vmem %s2, 24
      %v2726 = vld [vmem:[%s2725] sm:$0x3]
      %v2727 = vld [vmem:[%s856 + $0x8] sm:$0xff]
      %v2728 = vld [vmem:[%s856 + $0x10] sm:$0xff]
      %v2729 = vld [vmem:[%s856 + $0x18] sm:$0xff]
      %v2730 = vld [vmem:[%s856 + $0x20] sm:$0xff]
      %v2731 = vld [vmem:[%s856 + $0x28] sm:$0xff]
      %v2732 = vld [vmem:[%s856 + $0x30] sm:$0xff]
      %v2733 = vld [vmem:[%s856 + $0x38] sm:$0xff]
      %v2734 = vld [vmem:[%s856 + $0x40] sm:$0xff]
      %s2735 = scalar_lea.vmem %s2, 26
      %v2736 = vld [vmem:[%s2735] sm:$0x3]
      %v2738 = vsel %vm366, %v2727, 0
      %v2741 = vsel %vm366, %v2728, 0
      %v2744 = vsel %vm366, %v2729, 0
      %v2747 = vsel %vm366, %v2730, 0
      %v2750 = vsel %vm366, %v2731, 0
      %v2753 = vsel %vm366, %v2732, 0
      %v2756 = vsel %vm366, %v2733, 0
      %v2759 = vsel %vm366, %v2734, 0
      %v2762 = vsel %vm945, %v2736, 0
      %2764 = vmatprep.subr.bf16.mxu0 0
      %2765 = vmatpush1.bf16.msra.mxu0 %v2762
      %2766 = vmatprep.subr.bf16.mxu0 0
      %2767 = vmatpush1.bf16.msra.mxu0 0
      %2768 = vmatprep.subr.bf16.mxu0 0
      %2769 = vmatpush1.bf16.msra.mxu0 0
      %2770 = vmatprep.subr.bf16.mxu0 0
      %2771 = vmatpush1.bf16.msra.mxu0 0
      %2772 = vmatprep.subr.bf16.mxu0 0
      %2773 = vmatpush1.bf16.msra.mxu0 0
      %2774 = vmatprep.subr.bf16.mxu0 0
      %2775 = vmatpush1.bf16.msra.mxu0 0
      %2776 = vmatprep.subr.bf16.mxu0 0
      %2777 = vmatpush1.bf16.msra.mxu0 0
      %2778 = vmatprep.subr.bf16.mxu0 0
      %2779 = vmatpush1.bf16.msra.mxu0 0
      %2780 = vmatprep.subr.bf16.mxu0 0
      %2781 = vmatpush1.bf16.msra.mxu0 0
      %2782 = vmatprep.subr.bf16.mxu0 0
      %2783 = vmatpush1.bf16.msra.mxu0 0
      %2784 = vmatprep.subr.bf16.mxu0 0
      %2785 = vmatpush1.bf16.msra.mxu0 0
      %2786 = vmatprep.subr.bf16.mxu0 0
      %2787 = vmatpush1.bf16.msra.mxu0 0
      %2788 = vmatprep.subr.bf16.mxu0 0
      %2789 = vmatpush1.bf16.msra.mxu0 0
      %2790 = vmatprep.subr.bf16.mxu0 0
      %2791 = vmatpush1.bf16.msra.mxu0 0
      %2792 = vmatprep.subr.bf16.mxu0 0
      %2793 = vmatpush1.bf16.msra.mxu0 0
      %2794 = vmatprep.subr.bf16.mxu0 0
      %2795 = vmatpush1.bf16.msra.mxu0 0
      %2796 = vmatprep.mubr.bf16.mxu0 0
      %2797 = vmatmul.mubr.bf16.gmra.mrb[0].mxu0 %v2738
      %v2798 = vpop.f32.mrb[0].mxu0
      %v2799 = vadd.f32 0.0, %v2798
      %v2800 = vpop.f32.mrb[0].mxu0
      %v2801 = vpop.f32.mrb[0].mxu0
      %v2802 = vadd.f32 0.0, %v2801
      %v2803 = vpop.f32.mrb[0].mxu0
      %2804 = vmatprep.mubr.bf16.mxu0 0
      %2805 = vmatmul.mubr.bf16.gmra.mrb[0].mxu0 %v2741
      %v2806 = vpop.f32.mrb[0].mxu0
      %v2807 = vadd.f32 0.0, %v2806
      %v2808 = vpop.f32.mrb[0].mxu0
      %v2809 = vpop.f32.mrb[0].mxu0
      %v2810 = vadd.f32 0.0, %v2809
      %v2811 = vpop.f32.mrb[0].mxu0
      %2812 = vmatprep.mubr.bf16.mxu0 0
      %2813 = vmatmul.mubr.bf16.gmra.mrb[0].mxu0 %v2744
      %v2814 = vpop.f32.mrb[0].mxu0
      %v2815 = vadd.f32 0.0, %v2814
      %v2816 = vpop.f32.mrb[0].mxu0
      %v2817 = vpop.f32.mrb[0].mxu0
      %v2818 = vadd.f32 0.0, %v2817
      %v2819 = vpop.f32.mrb[0].mxu0
      %2820 = vmatprep.mubr.bf16.mxu0 0
      %2821 = vmatmul.mubr.bf16.gmra.mrb[0].mxu0 %v2747
      %v2822 = vpop.f32.mrb[0].mxu0
      %v2823 = vadd.f32 0.0, %v2822
      %v2824 = vpop.f32.mrb[0].mxu0
      %v2825 = vpop.f32.mrb[0].mxu0
      %v2826 = vadd.f32 0.0, %v2825
      %v2827 = vpop.f32.mrb[0].mxu0
      %2828 = vmatprep.mubr.bf16.mxu0 0
      %2829 = vmatmul.mubr.bf16.gmra.mrb[0].mxu0 %v2750
      %v2830 = vpop.f32.mrb[0].mxu0
      %v2831 = vadd.f32 0.0, %v2830
      %v2832 = vpop.f32.mrb[0].mxu0
      %v2833 = vpop.f32.mrb[0].mxu0
      %v2834 = vadd.f32 0.0, %v2833
      %v2835 = vpop.f32.mrb[0].mxu0
      %2836 = vmatprep.mubr.bf16.mxu0 0
      %2837 = vmatmul.mubr.bf16.gmra.mrb[0].mxu0 %v2753
      %v2838 = vpop.f32.mrb[0].mxu0
      %v2839 = vadd.f32 0.0, %v2838
      %v2840 = vpop.f32.mrb[0].mxu0
      %v2841 = vpop.f32.mrb[0].mxu0
      %v2842 = vadd.f32 0.0, %v2841
      %v2843 = vpop.f32.mrb[0].mxu0
      %2844 = vmatprep.mubr.bf16.mxu0 0
      %2845 = vmatmul.mubr.bf16.gmra.mrb[0].mxu0 %v2756
      %v2846 = vpop.f32.mrb[0].mxu0
      %v2847 = vadd.f32 0.0, %v2846
      %v2848 = vpop.f32.mrb[0].mxu0
      %v2849 = vpop.f32.mrb[0].mxu0
      %v2850 = vadd.f32 0.0, %v2849
      %v2851 = vpop.f32.mrb[0].mxu0
      %2852 = vmatprep.mubr.bf16.mxu0 0
      %2853 = vmatmul.mubr.bf16.gmra.mrb[0].mxu0 %v2759
      %v2854 = vpop.f32.mrb[0].mxu0
      %v2855 = vadd.f32 0.0, %v2854
      %v2856 = vpop.f32.mrb[0].mxu0
      %v2857 = vpop.f32.mrb[0].mxu0
      %v2858 = vadd.f32 0.0, %v2857
      %v2859 = vpop.f32.mrb[0].mxu0
      %2860 = vdwg.mxu0
      %v2862 = vsel %vm945, %v2726, 0
      %2864 = vmatprep.subr.bf16.mxu0 0
      %2865 = vmatpush1.bf16.msra.mxu0 %v2862
      %2866 = vmatprep.subr.bf16.mxu0 0
      %2867 = vmatpush1.bf16.msra.mxu0 0
      %2868 = vmatprep.subr.bf16.mxu0 0
      %2869 = vmatpush1.bf16.msra.mxu0 0
      %2870 = vmatprep.subr.bf16.mxu0 0
      %2871 = vmatpush1.bf16.msra.mxu0 0
      %2872 = vmatprep.subr.bf16.mxu0 0
      %2873 = vmatpush1.bf16.msra.mxu0 0
      %2874 = vmatprep.subr.bf16.mxu0 0
      %2875 = vmatpush1.bf16.msra.mxu0 0
      %2876 = vmatprep.subr.bf16.mxu0 0
      %2877 = vmatpush1.bf16.msra.mxu0 0
      %2878 = vmatprep.subr.bf16.mxu0 0
      %2879 = vmatpush1.bf16.msra.mxu0 0
      %2880 = vmatprep.subr.bf16.mxu0 0
      %2881 = vmatpush1.bf16.msra.mxu0 0
      %2882 = vmatprep.subr.bf16.mxu0 0
      %2883 = vmatpush1.bf16.msra.mxu0 0
      %2884 = vmatprep.subr.bf16.mxu0 0
      %2885 = vmatpush1.bf16.msra.mxu0 0
      %2886 = vmatprep.subr.bf16.mxu0 0
      %2887 = vmatpush1.bf16.msra.mxu0 0
      %2888 = vmatprep.subr.bf16.mxu0 0
      %2889 = vmatpush1.bf16.msra.mxu0 0
      %2890 = vmatprep.subr.bf16.mxu0 0
      %2891 = vmatpush1.bf16.msra.mxu0 0
      %2892 = vmatprep.subr.bf16.mxu0 0
      %2893 = vmatpush1.bf16.msra.mxu0 0
      %2894 = vmatprep.subr.bf16.mxu0 0
      %2895 = vmatpush1.bf16.msra.mxu0 0
      %2896 = vmatprep.mubr.bf16.mxu0 0
      %2897 = vmatmul.mubr.bf16.gmra.mrb[0].mxu0 %v2178
      %v2898 = vpop.f32.mrb[0].mxu0
      %v2899 = vadd.f32 %v2799, %v2898
      %v2900 = vpop.f32.mrb[0].mxu0
      %v2901 = vpop.f32.mrb[0].mxu0
      %v2902 = vadd.f32 %v2802, %v2901
      %v2903 = vpop.f32.mrb[0].mxu0
      %2904 = vmatprep.mubr.bf16.mxu0 0
      %2905 = vmatmul.mubr.bf16.gmra.mrb[0].mxu0 %v2181
      %v2906 = vpop.f32.mrb[0].mxu0
      %v2907 = vadd.f32 %v2807, %v2906
      %v2908 = vpop.f32.mrb[0].mxu0
      %v2909 = vpop.f32.mrb[0].mxu0
      %v2910 = vadd.f32 %v2810, %v2909
      %v2911 = vpop.f32.mrb[0].mxu0
      %2912 = vmatprep.mubr.bf16.mxu0 0
      %2913 = vmatmul.mubr.bf16.gmra.mrb[0].mxu0 %v2184
      %v2914 = vpop.f32.mrb[0].mxu0
      %v2915 = vadd.f32 %v2815, %v2914
      %v2916 = vpop.f32.mrb[0].mxu0
      %v2917 = vpop.f32.mrb[0].mxu0
      %v2918 = vadd.f32 %v2818, %v2917
      %v2919 = vpop.f32.mrb[0].mxu0
      %2920 = vmatprep.mubr.bf16.mxu0 0
      %2921 = vmatmul.mubr.bf16.gmra.mrb[0].mxu0 %v2187
      %v2922 = vpop.f32.mrb[0].mxu0
      %v2923 = vadd.f32 %v2823, %v2922
      %v2924 = vpop.f32.mrb[0].mxu0
      %v2925 = vpop.f32.mrb[0].mxu0
      %v2926 = vadd.f32 %v2826, %v2925
      %v2927 = vpop.f32.mrb[0].mxu0
      %2928 = vmatprep.mubr.bf16.mxu0 0
      %2929 = vmatmul.mubr.bf16.gmra.mrb[0].mxu0 %v2190
      %v2930 = vpop.f32.mrb[0].mxu0
      %v2931 = vadd.f32 %v2831, %v2930
      %v2932 = vpop.f32.mrb[0].mxu0
      %v2933 = vpop.f32.mrb[0].mxu0
      %v2934 = vadd.f32 %v2834, %v2933
      %v2935 = vpop.f32.mrb[0].mxu0
      %2936 = vmatprep.mubr.bf16.mxu0 0
      %2937 = vmatmul.mubr.bf16.gmra.mrb[0].mxu0 %v2193
      %v2938 = vpop.f32.mrb[0].mxu0
      %v2939 = vadd.f32 %v2839, %v2938
      %v2940 = vpop.f32.mrb[0].mxu0
      %v2941 = vpop.f32.mrb[0].mxu0
      %v2942 = vadd.f32 %v2842, %v2941
      %v2943 = vpop.f32.mrb[0].mxu0
      %2944 = vmatprep.mubr.bf16.mxu0 0
      %2945 = vmatmul.mubr.bf16.gmra.mrb[0].mxu0 %v2196
      %v2946 = vpop.f32.mrb[0].mxu0
      %v2947 = vadd.f32 %v2847, %v2946
      %v2948 = vpop.f32.mrb[0].mxu0
      %v2949 = vpop.f32.mrb[0].mxu0
      %v2950 = vadd.f32 %v2850, %v2949
      %v2951 = vpop.f32.mrb[0].mxu0
      %2952 = vmatprep.mubr.bf16.mxu0 0
      %2953 = vmatmul.mubr.bf16.gmra.mrb[0].mxu0 %v2199
      %v2954 = vpop.f32.mrb[0].mxu0
      %v2955 = vadd.f32 %v2855, %v2954
      %v2956 = vpop.f32.mrb[0].mxu0
      %v2957 = vpop.f32.mrb[0].mxu0
      %v2958 = vadd.f32 %v2858, %v2957
      %v2959 = vpop.f32.mrb[0].mxu0
      %2960 = vdwg.mxu0
      %s2961 = scalar_lea.vmem %s2, 28
      %v2962 = vld [vmem:[%s2961] sm:$0x3]
      %v2964 = vsel %vm945, %v2962, 0
      %2966 = vmatprep.subr.bf16.mxu0 0
      %2967 = vmatpush1.bf16.msra.mxu0 %v2964
      %2968 = vmatprep.subr.bf16.mxu0 0
      %2969 = vmatpush1.bf16.msra.mxu0 0
      %2970 = vmatprep.subr.bf16.mxu0 0
      %2971 = vmatpush1.bf16.msra.mxu0 0
      %2972 = vmatprep.subr.bf16.mxu0 0
      %2973 = vmatpush1.bf16.msra.mxu0 0
      %2974 = vmatprep.subr.bf16.mxu0 0
      %2975 = vmatpush1.bf16.msra.mxu0 0
      %2976 = vmatprep.subr.bf16.mxu0 0
      %2977 = vmatpush1.bf16.msra.mxu0 0
      %2978 = vmatprep.subr.bf16.mxu0 0
      %2979 = vmatpush1.bf16.msra.mxu0 0
      %2980 = vmatprep.subr.bf16.mxu0 0
      %2981 = vmatpush1.bf16.msra.mxu0 0
      %2982 = vmatprep.subr.bf16.mxu0 0
      %2983 = vmatpush1.bf16.msra.mxu0 0
      %2984 = vmatprep.subr.bf16.mxu0 0
      %2985 = vmatpush1.bf16.msra.mxu0 0
      %2986 = vmatprep.subr.bf16.mxu0 0
      %2987 = vmatpush1.bf16.msra.mxu0 0
      %2988 = vmatprep.subr.bf16.mxu0 0
      %2989 = vmatpush1.bf16.msra.mxu0 0
      %2990 = vmatprep.subr.bf16.mxu0 0
      %2991 = vmatpush1.bf16.msra.mxu0 0
      %2992 = vmatprep.subr.bf16.mxu0 0
      %2993 = vmatpush1.bf16.msra.mxu0 0
      %2994 = vmatprep.subr.bf16.mxu0 0
      %2995 = vmatpush1.bf16.msra.mxu0 0
      %2996 = vmatprep.subr.bf16.mxu0 0
      %2997 = vmatpush1.bf16.msra.mxu0 0
      %2998 = vmatprep.mubr.bf16.mxu0 0
      %2999 = vmatmul.mubr.bf16.gmra.mrb[0].mxu0 %v2586
      %v3000 = vpop.f32.mrb[0].mxu0
      %v3001 = vadd.f32 0.0, %v3000
      %v3002 = vpop.f32.mrb[0].mxu0
      %v3003 = vpop.f32.mrb[0].mxu0
      %v3004 = vadd.f32 0.0, %v3003
      %v3005 = vpop.f32.mrb[0].mxu0
      %3006 = vmatprep.mubr.bf16.mxu0 0
      %3007 = vmatmul.mubr.bf16.gmra.mrb[0].mxu0 %v2589
      %v3008 = vpop.f32.mrb[0].mxu0
      %v3009 = vadd.f32 0.0, %v3008
      %v3010 = vpop.f32.mrb[0].mxu0
      %v3011 = vpop.f32.mrb[0].mxu0
      %v3012 = vadd.f32 0.0, %v3011
      %v3013 = vpop.f32.mrb[0].mxu0
      %3014 = vmatprep.mubr.bf16.mxu0 0
      %3015 = vmatmul.mubr.bf16.gmra.mrb[0].mxu0 %v2592
      %v3016 = vpop.f32.mrb[0].mxu0
      %v3017 = vadd.f32 0.0, %v3016
      %v3018 = vpop.f32.mrb[0].mxu0
      %v3019 = vpop.f32.mrb[0].mxu0
      %v3020 = vadd.f32 0.0, %v3019
      %v3021 = vpop.f32.mrb[0].mxu0
      %3022 = vmatprep.mubr.bf16.mxu0 0
      %3023 = vmatmul.mubr.bf16.gmra.mrb[0].mxu0 %v2595
      %v3024 = vpop.f32.mrb[0].mxu0
      %v3025 = vadd.f32 0.0, %v3024
      %v3026 = vpop.f32.mrb[0].mxu0
      %v3027 = vpop.f32.mrb[0].mxu0
      %v3028 = vadd.f32 0.0, %v3027
      %v3029 = vpop.f32.mrb[0].mxu0
      %3030 = vmatprep.mubr.bf16.mxu0 0
      %3031 = vmatmul.mubr.bf16.gmra.mrb[0].mxu0 %v2598
      %v3032 = vpop.f32.mrb[0].mxu0
      %v3033 = vadd.f32 0.0, %v3032
      %v3034 = vpop.f32.mrb[0].mxu0
      %v3035 = vpop.f32.mrb[0].mxu0
      %v3036 = vadd.f32 0.0, %v3035
      %v3037 = vpop.f32.mrb[0].mxu0
      %3038 = vmatprep.mubr.bf16.mxu0 0
      %3039 = vmatmul.mubr.bf16.gmra.mrb[0].mxu0 %v2601
      %v3040 = vpop.f32.mrb[0].mxu0
      %v3041 = vadd.f32 0.0, %v3040
      %v3042 = vpop.f32.mrb[0].mxu0
      %v3043 = vpop.f32.mrb[0].mxu0
      %v3044 = vadd.f32 0.0, %v3043
      %v3045 = vpop.f32.mrb[0].mxu0
      %3046 = vmatprep.mubr.bf16.mxu0 0
      %3047 = vmatmul.mubr.bf16.gmra.mrb[0].mxu0 %v2604
      %v3048 = vpop.f32.mrb[0].mxu0
      %v3049 = vadd.f32 0.0, %v3048
      %v3050 = vpop.f32.mrb[0].mxu0
      %v3051 = vpop.f32.mrb[0].mxu0
      %v3052 = vadd.f32 0.0, %v3051
      %v3053 = vpop.f32.mrb[0].mxu0
      %3054 = vmatprep.mubr.bf16.mxu0 0
      %3055 = vmatmul.mubr.bf16.gmra.mrb[0].mxu0 %v2607
      %v3056 = vpop.f32.mrb[0].mxu0
      %v3057 = vadd.f32 0.0, %v3056
      %v3058 = vpop.f32.mrb[0].mxu0
      %v3059 = vpop.f32.mrb[0].mxu0
      %v3060 = vadd.f32 0.0, %v3059
      %v3061 = vpop.f32.mrb[0].mxu0
      %3062 = vdwg.mxu0
      %v3063 = vadd.f32 %v2899, %v3001
      %v3064 = vadd.f32 %v2902, %v3004
      %v3065 = vadd.f32 %v2907, %v3009
      %v3066 = vadd.f32 %v2910, %v3012
      %v3067 = vadd.f32 %v2915, %v3017
      %v3068 = vadd.f32 %v2918, %v3020
      %v3069 = vadd.f32 %v2923, %v3025
      %v3070 = vadd.f32 %v2926, %v3028
      %v3071 = vadd.f32 %v2931, %v3033
      %v3072 = vadd.f32 %v2934, %v3036
      %v3073 = vadd.f32 %v2939, %v3041
      %v3074 = vadd.f32 %v2942, %v3044
      %v3075 = vadd.f32 %v2947, %v3049
      %v3076 = vadd.f32 %v2950, %v3052
      %v3077 = vadd.f32 %v2955, %v3057
      %v3078 = vadd.f32 %v2958, %v3060
      %v3079 = vld [vmem:[%s856 + $0x10] sm:$0xff]
      %v3080 = vld [vmem:[%s856 + $0x18] sm:$0xff]
      %v3081 = vld [vmem:[%s856 + $0x20] sm:$0xff]
      %v3082 = vld [vmem:[%s856 + $0x28] sm:$0xff]
      %v3083 = vld [vmem:[%s856 + $0x30] sm:$0xff]
      %v3084 = vld [vmem:[%s856 + $0x38] sm:$0xff]
      %v3085 = vld [vmem:[%s856 + $0x40] sm:$0xff]
      %v3086 = vld [vmem:[%s856 + $0x48] sm:$0xff]
      %s3087 = scalar_lea.vmem %s2, 30
      %v3088 = vld [vmem:[%s3087] sm:$0x3]
      %v3090 = vsel %vm366, %v3079, 0
      %v3093 = vsel %vm366, %v3080, 0
      %v3096 = vsel %vm366, %v3081, 0
      %v3099 = vsel %vm366, %v3082, 0
      %v3102 = vsel %vm366, %v3083, 0
      %v3105 = vsel %vm366, %v3084, 0
      %v3108 = vsel %vm366, %v3085, 0
      %v3111 = vsel %vm366, %v3086, 0
      %v3114 = vsel %vm945, %v3088, 0
      %3116 = vmatprep.subr.bf16.mxu0 0
      %3117 = vmatpush1.bf16.msra.mxu0 %v3114
      %3118 = vmatprep.subr.bf16.mxu0 0
      %3119 = vmatpush1.bf16.msra.mxu0 0
      %3120 = vmatprep.subr.bf16.mxu0 0
      %3121 = vmatpush1.bf16.msra.mxu0 0
      %3122 = vmatprep.subr.bf16.mxu0 0
      %3123 = vmatpush1.bf16.msra.mxu0 0
      %3124 = vmatprep.subr.bf16.mxu0 0
      %3125 = vmatpush1.bf16.msra.mxu0 0
      %3126 = vmatprep.subr.bf16.mxu0 0
      %3127 = vmatpush1.bf16.msra.mxu0 0
      %3128 = vmatprep.subr.bf16.mxu0 0
      %3129 = vmatpush1.bf16.msra.mxu0 0
      %3130 = vmatprep.subr.bf16.mxu0 0
      %3131 = vmatpush1.bf16.msra.mxu0 0
      %3132 = vmatprep.subr.bf16.mxu0 0
      %3133 = vmatpush1.bf16.msra.mxu0 0
      %3134 = vmatprep.subr.bf16.mxu0 0
      %3135 = vmatpush1.bf16.msra.mxu0 0
      %3136 = vmatprep.subr.bf16.mxu0 0
      %3137 = vmatpush1.bf16.msra.mxu0 0
      %3138 = vmatprep.subr.bf16.mxu0 0
      %3139 = vmatpush1.bf16.msra.mxu0 0
      %3140 = vmatprep.subr.bf16.mxu0 0
      %3141 = vmatpush1.bf16.msra.mxu0 0
      %3142 = vmatprep.subr.bf16.mxu0 0
      %3143 = vmatpush1.bf16.msra.mxu0 0
      %3144 = vmatprep.subr.bf16.mxu0 0
      %3145 = vmatpush1.bf16.msra.mxu0 0
      %3146 = vmatprep.subr.bf16.mxu0 0
      %3147 = vmatpush1.bf16.msra.mxu0 0
      %3148 = vmatprep.mubr.bf16.mxu0 0
      %3149 = vmatmul.mubr.bf16.gmra.mrb[0].mxu0 %v3090
      %v3150 = vpop.f32.mrb[0].mxu0
      %v3151 = vadd.f32 0.0, %v3150
      %v3152 = vpop.f32.mrb[0].mxu0
      %v3153 = vpop.f32.mrb[0].mxu0
      %v3154 = vadd.f32 0.0, %v3153
      %v3155 = vpop.f32.mrb[0].mxu0
      %3156 = vmatprep.mubr.bf16.mxu0 0
      %3157 = vmatmul.mubr.bf16.gmra.mrb[0].mxu0 %v3093
      %v3158 = vpop.f32.mrb[0].mxu0
      %v3159 = vadd.f32 0.0, %v3158
      %v3160 = vpop.f32.mrb[0].mxu0
      %v3161 = vpop.f32.mrb[0].mxu0
      %v3162 = vadd.f32 0.0, %v3161
      %v3163 = vpop.f32.mrb[0].mxu0
      %3164 = vmatprep.mubr.bf16.mxu0 0
      %3165 = vmatmul.mubr.bf16.gmra.mrb[0].mxu0 %v3096
      %v3166 = vpop.f32.mrb[0].mxu0
      %v3167 = vadd.f32 0.0, %v3166
      %v3168 = vpop.f32.mrb[0].mxu0
      %v3169 = vpop.f32.mrb[0].mxu0
      %v3170 = vadd.f32 0.0, %v3169
      %v3171 = vpop.f32.mrb[0].mxu0
      %3172 = vmatprep.mubr.bf16.mxu0 0
      %3173 = vmatmul.mubr.bf16.gmra.mrb[0].mxu0 %v3099
      %v3174 = vpop.f32.mrb[0].mxu0
      %v3175 = vadd.f32 0.0, %v3174
      %v3176 = vpop.f32.mrb[0].mxu0
      %v3177 = vpop.f32.mrb[0].mxu0
      %v3178 = vadd.f32 0.0, %v3177
      %v3179 = vpop.f32.mrb[0].mxu0
      %3180 = vmatprep.mubr.bf16.mxu0 0
      %3181 = vmatmul.mubr.bf16.gmra.mrb[0].mxu0 %v3102
      %v3182 = vpop.f32.mrb[0].mxu0
      %v3183 = vadd.f32 0.0, %v3182
      %v3184 = vpop.f32.mrb[0].mxu0
      %v3185 = vpop.f32.mrb[0].mxu0
      %v3186 = vadd.f32 0.0, %v3185
      %v3187 = vpop.f32.mrb[0].mxu0
      %3188 = vmatprep.mubr.bf16.mxu0 0
      %3189 = vmatmul.mubr.bf16.gmra.mrb[0].mxu0 %v3105
      %v3190 = vpop.f32.mrb[0].mxu0
      %v3191 = vadd.f32 0.0, %v3190
      %v3192 = vpop.f32.mrb[0].mxu0
      %v3193 = vpop.f32.mrb[0].mxu0
      %v3194 = vadd.f32 0.0, %v3193
      %v3195 = vpop.f32.mrb[0].mxu0
      %3196 = vmatprep.mubr.bf16.mxu0 0
      %3197 = vmatmul.mubr.bf16.gmra.mrb[0].mxu0 %v3108
      %v3198 = vpop.f32.mrb[0].mxu0
      %v3199 = vadd.f32 0.0, %v3198
      %v3200 = vpop.f32.mrb[0].mxu0
      %v3201 = vpop.f32.mrb[0].mxu0
      %v3202 = vadd.f32 0.0, %v3201
      %v3203 = vpop.f32.mrb[0].mxu0
      %3204 = vmatprep.mubr.bf16.mxu0 0
      %3205 = vmatmul.mubr.bf16.gmra.mrb[0].mxu0 %v3111
      %v3206 = vpop.f32.mrb[0].mxu0
      %v3207 = vadd.f32 0.0, %v3206
      %v3208 = vpop.f32.mrb[0].mxu0
      %v3209 = vpop.f32.mrb[0].mxu0
      %v3210 = vadd.f32 0.0, %v3209
      %v3211 = vpop.f32.mrb[0].mxu0
      %3212 = vdwg.mxu0
      %v3213 = vadd.f32 %v3063, %v3151
      %v3214 = vadd.f32 %v3064, %v3154
      %v3215 = vadd.f32 %v3065, %v3159
      %v3216 = vadd.f32 %v3066, %v3162
      %v3217 = vadd.f32 %v3067, %v3167
      %v3218 = vadd.f32 %v3068, %v3170
      %v3219 = vadd.f32 %v3069, %v3175
      %v3220 = vadd.f32 %v3070, %v3178
      %v3221 = vadd.f32 %v3071, %v3183
      %v3222 = vadd.f32 %v3072, %v3186
      %v3223 = vadd.f32 %v3073, %v3191
      %v3224 = vadd.f32 %v3074, %v3194
      %v3225 = vadd.f32 %v3075, %v3199
      %v3226 = vadd.f32 %v3076, %v3202
      %v3227 = vadd.f32 %v3077, %v3207
      %v3228 = vadd.f32 %v3078, %v3210
      %3245 = vrot.lane.b32.xlu0 %v3213, 4
      %v3246 = vpop.permute.xlu0 %3245
      %3247 = vrot.lane.b32.xlu0 %v3214, 4
      %v3248 = vpop.permute.xlu0 %3247
      %3249 = vrot.lane.b32.xlu0 %v3215, 4
      %v3250 = vpop.permute.xlu0 %3249
      %3251 = vrot.lane.b32.xlu0 %v3216, 4
      %v3252 = vpop.permute.xlu0 %3251
      %3253 = vrot.lane.b32.xlu0 %v3217, 4
      %v3254 = vpop.permute.xlu0 %3253
      %3255 = vrot.lane.b32.xlu0 %v3218, 4
      %v3256 = vpop.permute.xlu0 %3255
      %3257 = vrot.lane.b32.xlu0 %v3219, 4
      %v3258 = vpop.permute.xlu0 %3257
      %3259 = vrot.lane.b32.xlu0 %v3220, 4
      %v3260 = vpop.permute.xlu0 %3259
      %3261 = vrot.lane.b32.xlu0 %v3221, 4
      %v3262 = vpop.permute.xlu0 %3261
      %3263 = vrot.lane.b32.xlu0 %v3222, 4
      %v3264 = vpop.permute.xlu0 %3263
      %3265 = vrot.lane.b32.xlu0 %v3223, 4
      %v3266 = vpop.permute.xlu0 %3265
      %3267 = vrot.lane.b32.xlu0 %v3224, 4
      %v3268 = vpop.permute.xlu0 %3267
      %3269 = vrot.lane.b32.xlu0 %v3225, 4
      %v3270 = vpop.permute.xlu0 %3269
      %3271 = vrot.lane.b32.xlu0 %v3226, 4
      %v3272 = vpop.permute.xlu0 %3271
      %3273 = vrot.lane.b32.xlu0 %v3227, 4
      %v3274 = vpop.permute.xlu0 %3273
      %3275 = vrot.lane.b32.xlu0 %v3228, 4
      %v3276 = vpop.permute.xlu0 %3275
      %v3293 = vsel %vm366, %v2709, %v3246
      %v3294 = vsel %vm366, %v2710, %v3248
      %v3295 = vsel %vm366, %v2711, %v3250
      %v3296 = vsel %vm366, %v2712, %v3252
      %v3297 = vsel %vm366, %v2713, %v3254
      %v3298 = vsel %vm366, %v2714, %v3256
      %v3299 = vsel %vm366, %v2715, %v3258
      %v3300 = vsel %vm366, %v2716, %v3260
      %v3301 = vsel %vm366, %v2717, %v3262
      %v3302 = vsel %vm366, %v2718, %v3264
      %v3303 = vsel %vm366, %v2719, %v3266
      %v3304 = vsel %vm366, %v2720, %v3268
      %v3305 = vsel %vm366, %v2721, %v3270
      %v3306 = vsel %vm366, %v2722, %v3272
      %v3307 = vsel %vm366, %v2723, %v3274
      %v3308 = vsel %vm366, %v2724, %v3276
      %v3309 = vadd.f32 %v3293, %v2058
      %v3310 = vadd.f32 %v3294, %v2058
      %v3311 = vadd.f32 %v3295, %v2058
      %v3312 = vadd.f32 %v3296, %v2058
      %v3313 = vadd.f32 %v3297, %v2058
      %v3314 = vadd.f32 %v3298, %v2058
      %v3315 = vadd.f32 %v3299, %v2058
      %v3316 = vadd.f32 %v3300, %v2058
      %v3317 = vadd.f32 %v3301, %v2058
      %v3318 = vadd.f32 %v3302, %v2058
      %v3319 = vadd.f32 %v3303, %v2058
      %v3320 = vadd.f32 %v3304, %v2058
      %v3321 = vadd.f32 %v3305, %v2058
      %v3322 = vadd.f32 %v3306, %v2058
      %v3323 = vadd.f32 %v3307, %v2058
      %v3324 = vadd.f32 %v3308, %v2058
      %v3325 = vpack.c.bf16 %v3310, %v3309
      %v3326 = vpack.c.bf16 %v3312, %v3311
      %v3327 = vpack.c.bf16 %v3314, %v3313
      %v3328 = vpack.c.bf16 %v3316, %v3315
      %v3329 = vpack.c.bf16 %v3318, %v3317
      %v3330 = vpack.c.bf16 %v3320, %v3319
      %v3331 = vpack.c.bf16 %v3322, %v3321
      %v3332 = vpack.c.bf16 %v3324, %v3323
      %v3341 = vunpack.c.l.b16 %v3325
      %v3342 = vunpack.c.h.b16 %v3325
      %v3343 = vunpack.c.l.b16 %v3326
      %v3344 = vunpack.c.h.b16 %v3326
      %v3345 = vunpack.c.l.b16 %v3327
      %v3346 = vunpack.c.h.b16 %v3327
      %v3347 = vunpack.c.l.b16 %v3328
      %v3348 = vunpack.c.h.b16 %v3328
      %v3349 = vunpack.c.l.b16 %v3329
      %v3350 = vunpack.c.h.b16 %v3329
      %v3351 = vunpack.c.l.b16 %v3330
      %v3352 = vunpack.c.h.b16 %v3330
      %v3353 = vunpack.c.l.b16 %v3331
      %v3354 = vunpack.c.h.b16 %v3331
      %v3355 = vunpack.c.l.b16 %v3332
      %v3356 = vunpack.c.h.b16 %v3332
      %v3357 = vpack.c.b16 %v3341, %v3341
      %v3358 = vpack.c.b16 %v3342, %v3342
      %v3359 = vpack.c.b16 %v3343, %v3343
      %v3360 = vpack.c.b16 %v3344, %v3344
      %v3361 = vpack.c.b16 %v3345, %v3345
      %v3362 = vpack.c.b16 %v3346, %v3346
      %v3363 = vpack.c.b16 %v3347, %v3347
      %v3364 = vpack.c.b16 %v3348, %v3348
      %v3365 = vpack.c.b16 %v3349, %v3349
      %v3366 = vpack.c.b16 %v3350, %v3350
      %v3367 = vpack.c.b16 %v3351, %v3351
      %v3368 = vpack.c.b16 %v3352, %v3352
      %v3369 = vpack.c.b16 %v3353, %v3353
      %v3370 = vpack.c.b16 %v3354, %v3354
      %v3371 = vpack.c.b16 %v3355, %v3355
      %v3372 = vpack.c.b16 %v3356, %v3356
      %s3389 = scalar_lea.vmem %s299, 8
      %3390 = vst.msk [vmem:[%s3389] sm:$0xf] %vm2140, %v3357
      %3391 = vst.msk [vmem:[%s3389 + $0x4] sm:$0xf] %vm2140, %v3358
      %3392 = vst.msk [vmem:[%s3389 + $0x10] sm:$0xf] %vm2140, %v3359
      %3393 = vst.msk [vmem:[%s3389 + $0x14] sm:$0xf] %vm2140, %v3360
      %3394 = vst.msk [vmem:[%s3389 + $0x20] sm:$0xf] %vm2140, %v3361
      %3395 = vst.msk [vmem:[%s3389 + $0x24] sm:$0xf] %vm2140, %v3362
      %3396 = vst.msk [vmem:[%s3389 + $0x30] sm:$0xf] %vm2140, %v3363
      %3397 = vst.msk [vmem:[%s3389 + $0x34] sm:$0xf] %vm2140, %v3364
      %3398 = vst.msk [vmem:[%s3389 + $0x40] sm:$0xf] %vm2140, %v3365
      %3399 = vst.msk [vmem:[%s3389 + $0x44] sm:$0xf] %vm2140, %v3366
      %3400 = vst.msk [vmem:[%s3389 + $0x50] sm:$0xf] %vm2140, %v3367
      %3401 = vst.msk [vmem:[%s3389 + $0x54] sm:$0xf] %vm2140, %v3368
      %3402 = vst.msk [vmem:[%s3389 + $0x60] sm:$0xf] %vm2140, %v3369
      %3403 = vst.msk [vmem:[%s3389 + $0x64] sm:$0xf] %vm2140, %v3370
      %3404 = vst.msk [vmem:[%s3389 + $0x70] sm:$0xf] %vm2140, %v3371
      %3405 = vst.msk [vmem:[%s3389 + $0x74] sm:$0xf] %vm2140, %v3372
      %s3406 = smul.u32 8, %s20
      %p3407 = scmp.lt.s32.totalorder %s19, 1
      %s3408 = scalar_select %p3407, %s19, 1
      %p3409 = scmp.lt.s32.totalorder %s3406, 15
      %s3410 = scalar_select %p3409, %s3406, 15
      %s3411 = smul.addr %s3410, 4
      %s3412 = smul.addr %s3408, 64
      %s3413 = sadd.s32 %s3411, %s3412
      %s3414 = smul.addr %s3413, 4
      %s3415 = scalar_lea.vmem %s4, %s3414
      // Predicated region
      $region37: #{tpu_custom_call.1} parent=35 // pred_check
        %p3416 = pneg %p145
      $region38: #{tpu_custom_call.1} parent=35 // pred_check_branch
        %3418 = sbr.rel (%p3416) target = $region40
      $region39: #{tpu_custom_call.1} parent=35 // pred_region
        %s3419 = smul.u32 8, %s20
      $region40: #{tpu_custom_call.1} parent=35 // pred_fallthru
        _
    $region36: #{tpu_custom_call.1} parent=5 // pred_fallthru
      _
    %p3420 = scmp.le.s32.totalorder 2, %s10
    // Predicated region
    $region41: #{tpu_custom_call.1} parent=5 // pred_check
      %p3421 = pneg %p3420
    $region42: #{tpu_custom_call.1} parent=5 // pred_check_branch
      %3423 = sbr.rel (%p3421) target = $region44
    $region43: #{tpu_custom_call.1} parent=5 // pred_region
      %s3424 = ssub.s32 %s10, 2
      // Predicated region
      $region45: #{tpu_custom_call.1} parent=43 // pred_check
        %p3425 = pneg %p151
      $region46: #{tpu_custom_call.1} parent=43 // pred_check_branch
        %3427 = sbr.rel (%p3425) target = $region48
      $region47: #{tpu_custom_call.1} parent=43 // pred_region
        %s3428 = smul.u32 8, %s22
        %p3429 = scmp.lt.s32.totalorder %s21, 1
        %s3430 = scalar_select %p3429, %s21, 1
        %p3431 = scmp.lt.s32.totalorder %s3428, 15
        %s3432 = scalar_select %p3431, %s3428, 15
        %s3433 = smul.addr %s3432, 4
        %s3434 = smul.addr %s3430, 64
        %s3435 = sadd.s32 %s3433, %s3434
        %s3436 = smul.addr %s3435, 4
        %s3437 = scalar_lea.vmem %s4, %s3436
      $region48: #{tpu_custom_call.1} parent=43 // pred_fallthru
        _
    $region44: #{tpu_custom_call.1} parent=5 // pred_fallthru
      _
  $region6: #{tpu_custom_call.1} parent=0 // loop_footer
    %s14 = sadd.s32 1, %s10
  $region7: #{tpu_custom_call.1} parent=0 // loop_footer_branch
    %9 = sbr.rel target = $region3
  $region8: #{tpu_custom_call.1} parent=0 // loop_exit
    _

</llo_original>
